<compile_context>
chip_gen: v7x
topology: tpu7x:2x2x1
jax: 0.10.0
libtpu: 0.0.40
codegen_flags: <defaults>
</compile_context>

<pallas_src>
import math
from functools import partial

import jax
import jax.numpy as jnp
from jax.experimental import pallas as pl
from jax.experimental.pallas import tpu as pltpu

EPS = 1e-5
IMG_H, IMG_W = 28, 28
IN_FLAT = IMG_H * IMG_W          # 784
N_CODES = 16

LANE = 128
SUBLANE = 8


def _ceil_to(x, m):
    return ((x + m - 1) // m) * m


def _pad_dim(d):
    return _ceil_to(d, LANE)


# Layer widths.  Decoder widths are AFTER folding the nearest upsamples into
# the following Linear weights.
ENC_DIMS = [(IN_FLAT, 392), (392, 196), (196, 98), (98, 49), (49, 32), (32, N_CODES)]
DEC_DIMS = [(N_CODES, 16), (16, 64), (64, 256), (256, IN_FLAT)]
ALL_DIMS = ENC_DIMS + DEC_DIMS
ALL_PAD = [(_pad_dim(k), _pad_dim(n)) for k, n in ALL_DIMS]
PAD_OUT = [n for _, n in ALL_PAD]
BIAS_OFF = [sum(PAD_OUT[:i]) for i in range(len(PAD_OUT))]   # lane-aligned offsets
BIAS_TOTAL = sum(PAD_OUT)                                    # 2688

# Layers whose padded weight is exactly (128, 128): stacked into one slab.
SMALL_LAYERS = (3, 4, 5, 6, 7)

# Real feature widths feeding each encoder BatchNorm (stats use these counts).
ENC_BN_WIDTHS = [392.0, 196.0, 98.0, 49.0, 32.0]


# ------------------------------------------------------------------
# Per-generation knobs
# ------------------------------------------------------------------
def _pick_act_dtype():
    # bf16 VPU/EUP exist on v6e/v7x; keep f32 activations on v5e and older.
    try:
        kind = jax.devices()[0].device_kind.lower()
    except Exception:
        return jnp.bfloat16
    if any(v in kind for v in ("v2", "v3", "v4", "v5")):
        return jnp.float32
    return jnp.bfloat16


def _pick_vmem_limit():
    # Re-derive from physical VMEM (128 MiB v5e/v6e, 64 MiB v7x), leaving
    # ~16 MiB headroom for compiler-internal scratch.
    cap = 128 * 1024 * 1024
    try:
        cap = int(pltpu.get_tpu_info().vmem_capacity_bytes)
    except Exception:
        try:
            if "v7" in jax.devices()[0].device_kind.lower():
                cap = 64 * 1024 * 1024
        except Exception:
            pass
    return int(max(32 << 20, min(cap - (16 << 20), 112 << 20)))


ACT_DTYPE = _pick_act_dtype()
VMEM_LIMIT = _pick_vmem_limit()


# ------------------------------------------------------------------
# Kernel
# ------------------------------------------------------------------
def autoencoder_kernel(b_ref, x_ref, we1, we2, we3, wsm, wd3, wd4, bias_ref,
                       out_ref, *, act_dtype):
    b_real = b_ref[0]                                  # runtime batch size (SMEM)
    b_real_f = b_real.astype(jnp.float32)

    def lin(h, w, layer):
        # bf16 MXU operands, f32 accumulation, f32 bias add (static bias slice).
        off, width = BIAS_OFF[layer], PAD_OUT[layer]
        bias = bias_ref[:, off:off + width]            # [1, width] f32
        return jnp.dot(h.astype(jnp.bfloat16), w,
                       preferred_element_type=jnp.float32) + bias

    def bn_tanh(h, l_real):
        # BatchNorm1d(num_features=1) training mode on [B, 1, L]: normalize over
        # (batch, length), biased variance.  Only a ROW mask is needed: padded
        # columns entering every BN are exactly zero (zero weight cols + zero
        # bias), so they contribute nothing to the sums; padded rows are masked.
        rows = jax.lax.broadcasted_iota(jnp.int32, h.shape, 0)
        hm = jnp.where(rows < b_real, h, 0.0)
        inv_cnt = 1.0 / (b_real_f * l_real)
        mean = jnp.sum(hm) * inv_cnt
        var = jnp.sum(hm * hm) * inv_cnt - mean * mean
        y = (h - mean) * jax.lax.rsqrt(var + EPS)      # f32 normalize
        return jnp.tanh(y.astype(act_dtype))           # activation in act_dtype

    h = x_ref[...]                                     # [Bp, 896] bf16

    # ------------------ Encoder ------------------
    h = bn_tanh(lin(h, we1[...], 0), ENC_BN_WIDTHS[0])     # 392
    h = bn_tanh(lin(h, we2[...], 1), ENC_BN_WIDTHS[1])     # 196
    h = bn_tanh(lin(h, we3[...], 2), ENC_BN_WIDTHS[2])     # 98
    h = bn_tanh(lin(h, wsm[0], 3), ENC_BN_WIDTHS[3])       # 49
    h = bn_tanh(lin(h, wsm[1], 4), ENC_BN_WIDTHS[4])       # 32
    codes = jnp.tanh(lin(h, wsm[2], 5).astype(act_dtype))  # 16 codes (pad 128)

    # --------- Decoder (upsamples folded into layers 7 / 8) ---------
    d = jnp.tanh(lin(codes, wsm[3], 6).astype(act_dtype))        # 16
    d = jnp.tanh(lin(d, wsm[4], 7).astype(act_dtype))            # 64  (U2 folded)
    d = jax.nn.sigmoid(lin(d, wd3[...], 8).astype(act_dtype))    # 256 (U3 folded)
    d = jax.nn.sigmoid(lin(d, wd4[...], 9))                      # 784, f32 sigmoid
    out_ref[...] = d.astype(out_ref.dtype)


# ------------------------------------------------------------------
# Parameter construction (deterministic, mirrors the PyTorch __init__)
# ------------------------------------------------------------------
def _xavier_uniform(key, fan_in, fan_out):
    bound = math.sqrt(6.0 / (fan_in + fan_out))
    return jax.random.uniform(key, (fan_in, fan_out), jnp.float32, -bound, bound)


def _default_bias(key, fan_in, fan_out):
    bound = 1.0 / math.sqrt(fan_in)
    return jax.random.uniform(key, (fan_out,), jnp.float32, -bound, bound)


def _nearest_upsample_matrix(length, scale):
    rows = jnp.arange(length)[:, None]
    cols = jnp.arange(length * scale)[None, :]
    return (cols // scale == rows).astype(jnp.float32)


def _pad_weight(w, kp, np_):
    return jnp.zeros((kp, np_), jnp.float32).at[: w.shape[0], : w.shape[1]].set(w)


def _pad_bias(b, np_):
    return jnp.zeros((1, np_), jnp.float32).at[0, : b.shape[0]].set(b)


def init_params(key):
    """Packed params: (we1, we2, we3, w_small[5,128,128], wd3, wd4, bias_cat)."""
    raw_enc = ENC_DIMS
    raw_dec = [(N_CODES, 16), (16 * 2, 64), (64 * 3, 256), (256, IN_FLAT)]

    keys = jax.random.split(key, 2 * (len(raw_enc) + len(raw_dec)))
    ki = 0
    ws, bs = [], []
    for fan_in, fan_out in raw_enc + raw_dec:
        ws.append(_xavier_uniform(keys[ki], fan_in, fan_out)); ki += 1
        bs.append(_default_bias(keys[ki], fan_in, fan_out)); ki += 1

    # Fold nn.Upsample(scale_factor=2/3, mode='nearest') into following Linears.
    u2 = _nearest_upsample_matrix(16, 2)   # [16, 32]
    u3 = _nearest_upsample_matrix(64, 3)   # [64, 192]
    ws[7] = u2 @ ws[7]                     # [32, 64]   -> [16, 64]
    ws[8] = u3 @ ws[8]                     # [192, 256] -> [64, 256]

    wpad = [_pad_weight(w, kp, np_).astype(jnp.bfloat16)
            for (kp, np_), w in zip(ALL_PAD, ws)]
    bpad = [_pad_bias(b, np_) for (_, np_), b in zip(ALL_PAD, bs)]

    we1, we2, we3 = wpad[0], wpad[1], wpad[2]
    wsm = jnp.stack([wpad[i] for i in SMALL_LAYERS])     # [5, 128, 128] bf16
    wd3, wd4 = wpad[8], wpad[9]
    bias_cat = jnp.concatenate(bpad, axis=1)             # [1, 2688] f32
    return (we1, we2, we3, wsm, wd3, wd4, bias_cat)


# ------------------------------------------------------------------
# Wrapper: glue reshapes / padding in plain JAX, hot path in the kernel
# ------------------------------------------------------------------
@jax.jit
def complex_autoencoder_forward(x_nchw, params):
    b = x_nchw.shape[0]
    x2d = x_nchw.reshape(b, IN_FLAT).astype(jnp.float32)
    inflat = x2d.reshape(b, 1, IN_FLAT)            # Encoder's nn.Flatten(-2,-1) output

    b_pad = max(SUBLANE, _ceil_to(b, SUBLANE))
    in_pad = _pad_dim(IN_FLAT)                     # 896 (lane-dense)
    # bf16 input: halves the largest entry DMA; first matmul operand is bf16 anyway.
    x_pad = jnp.zeros((b_pad, in_pad), jnp.bfloat16).at[:b, :IN_FLAT].set(
        x2d.astype(jnp.bfloat16))
    b_smem = jnp.full((1,), b, jnp.int32)

    we1, we2, we3, wsm, wd3, wd4, bias_cat = params

    # Advisory cost estimate so XLA schedules surrounding ops around the call.
    mm_flops = 2 * b_pad * sum(kp * np_ for kp, np_ in ALL_PAD)
    trans = b_pad * sum(PAD_OUT)
    w_bytes = sum(int(p.size) * int(p.dtype.itemsize) for p in params)
    bytes_accessed = w_bytes + b_pad * in_pad * 2 + b_pad * in_pad * 4

    # NOTE: no batch grid on purpose -- BatchNorm1d stats span the whole batch,
    # so the full logical batch must live in one invocation to match PyTorch.
    out_pad = pl.pallas_call(
        partial(autoencoder_kernel, act_dtype=ACT_DTYPE),
        out_shape=jax.ShapeDtypeStruct((b_pad, in_pad), jnp.float32),
        in_specs=[pl.BlockSpec(memory_space=pltpu.MemorySpace.SMEM)]
                 + [pl.BlockSpec(memory_space=pltpu.MemorySpace.VMEM)] * 8,
        out_specs=pl.BlockSpec(memory_space=pltpu.MemorySpace.VMEM),
        cost_estimate=pl.CostEstimate(
            flops=mm_flops, transcendentals=trans, bytes_accessed=bytes_accessed),
        compiler_params=pltpu.CompilerParams(vmem_limit_bytes=VMEM_LIMIT),
    )(b_smem, x_pad, we1, we2, we3, wsm, wd3, wd4, bias_cat)

    out0_2d = out_pad[:b, :IN_FLAT]                # slice off batch + lane padding
    out0 = out0_2d.reshape(b, 1, IN_FLAT)          # decoder flat output [B, 1, 784]
    out = out0_2d.reshape(b, 1, IMG_H, IMG_W)      # torch.reshape(out0, [B, 1, 28, 28])
    return out, out0, inflat


if __name__ == "__main__":
    key = jax.random.PRNGKey(0)
    pkey, xkey = jax.random.split(key)

    params = init_params(pkey)
    x = jax.random.uniform(xkey, (2, 1, IMG_H, IMG_W), jnp.float32)

    out, out0, inflat = complex_autoencoder_forward(x, params)
    jax.block_until_ready((out, out0, inflat))

    assert out.shape == (2, 1, 28, 28)
    assert out0.shape == (2, 1, 784)
    assert inflat.shape == (2, 1, 784)
    assert bool(jnp.all(jnp.isfinite(out)))
    # decoder ends in Sigmoid -> outputs in (0, 1)
    assert bool(jnp.all((out0 > 0.0) & (out0 < 1.0)))

    print("KERNEL_OK")
</pallas_src>

<mosaic_0001>
module attributes {stable_mosaic.version = 11 : i64} {
  func.func @autoencoder_kernel(%arg0: memref<1xi32, #tpu.memory_space<smem>>, %arg1: memref<8x896xbf16, #tpu.memory_space<vmem>>, %arg2: memref<896x512xbf16, #tpu.memory_space<vmem>>, %arg3: memref<512x256xbf16, #tpu.memory_space<vmem>>, %arg4: memref<256x128xbf16, #tpu.memory_space<vmem>>, %arg5: memref<5x128x128xbf16, #tpu.memory_space<vmem>>, %arg6: memref<128x256xbf16, #tpu.memory_space<vmem>>, %arg7: memref<256x896xbf16, #tpu.memory_space<vmem>>, %arg8: memref<1x2688xf32, #tpu.memory_space<vmem>>, %arg9: memref<8x896xf32, #tpu.memory_space<vmem>>) attributes {dimension_semantics = [], scalar_prefetch = 0 : i64, scratch_operands = 0 : i64, tpu.core_type = #tpu.core_type<tc>} {
    %c0 = arith.constant 0 : index
    %0 = memref.load %arg0[%c0] : memref<1xi32, #tpu.memory_space<smem>>
    %1 = arith.sitofp %0 : i32 to f32
    %c0_0 = arith.constant 0 : index
    %c0_1 = arith.constant 0 : index
    %2 = vector.load %arg1[%c0_0, %c0_1] : memref<8x896xbf16, #tpu.memory_space<vmem>>, vector<8x896xbf16>
    %c0_2 = arith.constant 0 : index
    %c0_3 = arith.constant 0 : index
    %3 = vector.load %arg2[%c0_2, %c0_3] : memref<896x512xbf16, #tpu.memory_space<vmem>>, vector<896x512xbf16>
    %c0_4 = arith.constant 0 : index
    %c0_5 = arith.constant 0 : index
    %4 = vector.load %arg8[%c0_4, %c0_5] : memref<1x2688xf32, #tpu.memory_space<vmem>>, vector<1x512xf32>
    %cst = arith.constant dense<0.000000e+00> : vector<8x512xf32>
    %5 = tpu.matmul %2, %3, %cst {dimension_numbers = #tpu.dot_dimension_numbers<[1], [0], [0], [1], [0, 0, 1, 1], [], []>} : vector<8x896xbf16>, vector<896x512xbf16>, vector<8x512xf32> -> vector<8x512xf32>
    %6 = vector.broadcast %4 : vector<1x512xf32> to vector<8x512xf32>
    %7 = arith.addf %5, %6 : vector<8x512xf32>
    %8 = tpu.iota {dimensions = array<i32: 0>} : vector<8x512xi32>
    %9 = vector.broadcast %0 : i32 to vector<8x512xi32>
    %10 = arith.cmpi slt, %8, %9 : vector<8x512xi32>
    %cst_6 = arith.constant 0.000000e+00 : f32
    %11 = vector.broadcast %cst_6 : f32 to vector<8x512xf32>
    %12 = arith.select %10, %7, %11 : vector<8x512xi1>, vector<8x512xf32>
    %cst_7 = arith.constant 3.920000e+02 : f32
    %13 = arith.mulf %1, %cst_7 : f32
    %cst_8 = arith.constant 1.000000e+00 : f32
    %14 = arith.divf %cst_8, %13 : f32
    %15 = vector.shape_cast %12 : vector<8x512xf32> to vector<1x8x512xf32>
    %cst_9 = arith.constant dense<0.000000e+00> : vector<1xf32>
    %16 = vector.multi_reduction <add>, %15, %cst_9 [1, 2] : vector<1x8x512xf32> to vector<1xf32>
    %17 = vector.shape_cast %16 : vector<1xf32> to vector<1x1x1xf32>
    %18 = vector.extract %17[0, 0, 0] : f32 from vector<1x1x1xf32>
    %19 = arith.mulf %18, %14 : f32
    %20 = arith.mulf %12, %12 : vector<8x512xf32>
    %21 = vector.shape_cast %20 : vector<8x512xf32> to vector<1x8x512xf32>
    %cst_10 = arith.constant dense<0.000000e+00> : vector<1xf32>
    %22 = vector.multi_reduction <add>, %21, %cst_10 [1, 2] : vector<1x8x512xf32> to vector<1xf32>
    %23 = vector.shape_cast %22 : vector<1xf32> to vector<1x1x1xf32>
    %24 = vector.extract %23[0, 0, 0] : f32 from vector<1x1x1xf32>
    %25 = arith.mulf %24, %14 : f32
    %26 = arith.mulf %19, %19 : f32
    %27 = arith.subf %25, %26 : f32
    %28 = vector.broadcast %19 : f32 to vector<8x512xf32>
    %29 = arith.subf %7, %28 : vector<8x512xf32>
    %cst_11 = arith.constant 9.99999974E-6 : f32
    %30 = arith.addf %27, %cst_11 : f32
    %31 = math.rsqrt %30 : f32
    %32 = vector.broadcast %31 : f32 to vector<8x512xf32>
    %33 = arith.mulf %29, %32 : vector<8x512xf32>
    %34 = arith.truncf %33 : vector<8x512xf32> to vector<8x512xbf16>
    %35 = math.tanh %34 : vector<8x512xbf16>
    %c0_12 = arith.constant 0 : index
    %c0_13 = arith.constant 0 : index
    %36 = vector.load %arg3[%c0_12, %c0_13] : memref<512x256xbf16, #tpu.memory_space<vmem>>, vector<512x256xbf16>
    %c0_14 = arith.constant 0 : index
    %c512 = arith.constant 512 : index
    %37 = vector.load %arg8[%c0_14, %c512] : memref<1x2688xf32, #tpu.memory_space<vmem>>, vector<1x256xf32>
    %cst_15 = arith.constant dense<0.000000e+00> : vector<8x256xf32>
    %38 = tpu.matmul %35, %36, %cst_15 {dimension_numbers = #tpu.dot_dimension_numbers<[1], [0], [0], [1], [0, 0, 1, 1], [], []>} : vector<8x512xbf16>, vector<512x256xbf16>, vector<8x256xf32> -> vector<8x256xf32>
    %39 = vector.broadcast %37 : vector<1x256xf32> to vector<8x256xf32>
    %40 = arith.addf %38, %39 : vector<8x256xf32>
    %41 = tpu.iota {dimensions = array<i32: 0>} : vector<8x256xi32>
    %42 = vector.broadcast %0 : i32 to vector<8x256xi32>
    %43 = arith.cmpi slt, %41, %42 : vector<8x256xi32>
    %cst_16 = arith.constant 0.000000e+00 : f32
    %44 = vector.broadcast %cst_16 : f32 to vector<8x256xf32>
    %45 = arith.select %43, %40, %44 : vector<8x256xi1>, vector<8x256xf32>
    %cst_17 = arith.constant 1.960000e+02 : f32
    %46 = arith.mulf %1, %cst_17 : f32
    %cst_18 = arith.constant 1.000000e+00 : f32
    %47 = arith.divf %cst_18, %46 : f32
    %48 = vector.shape_cast %45 : vector<8x256xf32> to vector<1x8x256xf32>
    %cst_19 = arith.constant dense<0.000000e+00> : vector<1xf32>
    %49 = vector.multi_reduction <add>, %48, %cst_19 [1, 2] : vector<1x8x256xf32> to vector<1xf32>
    %50 = vector.shape_cast %49 : vector<1xf32> to vector<1x1x1xf32>
    %51 = vector.extract %50[0, 0, 0] : f32 from vector<1x1x1xf32>
    %52 = arith.mulf %51, %47 : f32
    %53 = arith.mulf %45, %45 : vector<8x256xf32>
    %54 = vector.shape_cast %53 : vector<8x256xf32> to vector<1x8x256xf32>
    %cst_20 = arith.constant dense<0.000000e+00> : vector<1xf32>
    %55 = vector.multi_reduction <add>, %54, %cst_20 [1, 2] : vector<1x8x256xf32> to vector<1xf32>
    %56 = vector.shape_cast %55 : vector<1xf32> to vector<1x1x1xf32>
    %57 = vector.extract %56[0, 0, 0] : f32 from vector<1x1x1xf32>
    %58 = arith.mulf %57, %47 : f32
    %59 = arith.mulf %52, %52 : f32
    %60 = arith.subf %58, %59 : f32
    %61 = vector.broadcast %52 : f32 to vector<8x256xf32>
    %62 = arith.subf %40, %61 : vector<8x256xf32>
    %cst_21 = arith.constant 9.99999974E-6 : f32
    %63 = arith.addf %60, %cst_21 : f32
    %64 = math.rsqrt %63 : f32
    %65 = vector.broadcast %64 : f32 to vector<8x256xf32>
    %66 = arith.mulf %62, %65 : vector<8x256xf32>
    %67 = arith.truncf %66 : vector<8x256xf32> to vector<8x256xbf16>
    %68 = math.tanh %67 : vector<8x256xbf16>
    %c0_22 = arith.constant 0 : index
    %c0_23 = arith.constant 0 : index
    %69 = vector.load %arg4[%c0_22, %c0_23] : memref<256x128xbf16, #tpu.memory_space<vmem>>, vector<256x128xbf16>
    %c0_24 = arith.constant 0 : index
    %c768 = arith.constant 768 : index
    %70 = vector.load %arg8[%c0_24, %c768] : memref<1x2688xf32, #tpu.memory_space<vmem>>, vector<1x128xf32>
    %cst_25 = arith.constant dense<0.000000e+00> : vector<8x128xf32>
    %71 = tpu.matmul %68, %69, %cst_25 {dimension_numbers = #tpu.dot_dimension_numbers<[1], [0], [0], [1], [0, 0, 1, 1], [], []>} : vector<8x256xbf16>, vector<256x128xbf16>, vector<8x128xf32> -> vector<8x128xf32>
    %72 = vector.broadcast %70 : vector<1x128xf32> to vector<8x128xf32>
    %73 = arith.addf %71, %72 : vector<8x128xf32>
    %74 = tpu.iota {dimensions = array<i32: 0>} : vector<8x128xi32>
    %75 = vector.broadcast %0 : i32 to vector<8x128xi32>
    %76 = arith.cmpi slt, %74, %75 : vector<8x128xi32>
    %cst_26 = arith.constant 0.000000e+00 : f32
    %77 = vector.broadcast %cst_26 : f32 to vector<8x128xf32>
    %78 = arith.select %76, %73, %77 : vector<8x128xi1>, vector<8x128xf32>
    %cst_27 = arith.constant 9.800000e+01 : f32
    %79 = arith.mulf %1, %cst_27 : f32
    %cst_28 = arith.constant 1.000000e+00 : f32
    %80 = arith.divf %cst_28, %79 : f32
    %81 = vector.shape_cast %78 : vector<8x128xf32> to vector<1x8x128xf32>
    %cst_29 = arith.constant dense<0.000000e+00> : vector<1xf32>
    %82 = vector.multi_reduction <add>, %81, %cst_29 [1, 2] : vector<1x8x128xf32> to vector<1xf32>
    %83 = vector.shape_cast %82 : vector<1xf32> to vector<1x1x1xf32>
    %84 = vector.extract %83[0, 0, 0] : f32 from vector<1x1x1xf32>
    %85 = arith.mulf %84, %80 : f32
    %86 = arith.mulf %78, %78 : vector<8x128xf32>
    %87 = vector.shape_cast %86 : vector<8x128xf32> to vector<1x8x128xf32>
    %cst_30 = arith.constant dense<0.000000e+00> : vector<1xf32>
    %88 = vector.multi_reduction <add>, %87, %cst_30 [1, 2] : vector<1x8x128xf32> to vector<1xf32>
    %89 = vector.shape_cast %88 : vector<1xf32> to vector<1x1x1xf32>
    %90 = vector.extract %89[0, 0, 0] : f32 from vector<1x1x1xf32>
    %91 = arith.mulf %90, %80 : f32
    %92 = arith.mulf %85, %85 : f32
    %93 = arith.subf %91, %92 : f32
    %94 = vector.broadcast %85 : f32 to vector<8x128xf32>
    %95 = arith.subf %73, %94 : vector<8x128xf32>
    %cst_31 = arith.constant 9.99999974E-6 : f32
    %96 = arith.addf %93, %cst_31 : f32
    %97 = math.rsqrt %96 : f32
    %98 = vector.broadcast %97 : f32 to vector<8x128xf32>
    %99 = arith.mulf %95, %98 : vector<8x128xf32>
    %100 = arith.truncf %99 : vector<8x128xf32> to vector<8x128xbf16>
    %101 = math.tanh %100 : vector<8x128xbf16>
    %c0_32 = arith.constant 0 : index
    %c0_33 = arith.constant 0 : index
    %c0_34 = arith.constant 0 : index
    %102 = vector.load %arg5[%c0_32, %c0_33, %c0_34] : memref<5x128x128xbf16, #tpu.memory_space<vmem>>, vector<1x128x128xbf16>
    %103 = vector.shape_cast %102 : vector<1x128x128xbf16> to vector<128x128xbf16>
    %c0_35 = arith.constant 0 : index
    %c896 = arith.constant 896 : index
    %104 = vector.load %arg8[%c0_35, %c896] : memref<1x2688xf32, #tpu.memory_space<vmem>>, vector<1x128xf32>
    %cst_36 = arith.constant dense<0.000000e+00> : vector<8x128xf32>
    %105 = tpu.matmul %101, %103, %cst_36 {dimension_numbers = #tpu.dot_dimension_numbers<[1], [0], [0], [1], [0, 0, 1, 1], [], []>} : vector<8x128xbf16>, vector<128x128xbf16>, vector<8x128xf32> -> vector<8x128xf32>
    %106 = vector.broadcast %104 : vector<1x128xf32> to vector<8x128xf32>
    %107 = arith.addf %105, %106 : vector<8x128xf32>
    %108 = tpu.iota {dimensions = array<i32: 0>} : vector<8x128xi32>
    %109 = vector.broadcast %0 : i32 to vector<8x128xi32>
    %110 = arith.cmpi slt, %108, %109 : vector<8x128xi32>
    %cst_37 = arith.constant 0.000000e+00 : f32
    %111 = vector.broadcast %cst_37 : f32 to vector<8x128xf32>
    %112 = arith.select %110, %107, %111 : vector<8x128xi1>, vector<8x128xf32>
    %cst_38 = arith.constant 4.900000e+01 : f32
    %113 = arith.mulf %1, %cst_38 : f32
    %cst_39 = arith.constant 1.000000e+00 : f32
    %114 = arith.divf %cst_39, %113 : f32
    %115 = vector.shape_cast %112 : vector<8x128xf32> to vector<1x8x128xf32>
    %cst_40 = arith.constant dense<0.000000e+00> : vector<1xf32>
    %116 = vector.multi_reduction <add>, %115, %cst_40 [1, 2] : vector<1x8x128xf32> to vector<1xf32>
    %117 = vector.shape_cast %116 : vector<1xf32> to vector<1x1x1xf32>
    %118 = vector.extract %117[0, 0, 0] : f32 from vector<1x1x1xf32>
    %119 = arith.mulf %118, %114 : f32
    %120 = arith.mulf %112, %112 : vector<8x128xf32>
    %121 = vector.shape_cast %120 : vector<8x128xf32> to vector<1x8x128xf32>
    %cst_41 = arith.constant dense<0.000000e+00> : vector<1xf32>
    %122 = vector.multi_reduction <add>, %121, %cst_41 [1, 2] : vector<1x8x128xf32> to vector<1xf32>
    %123 = vector.shape_cast %122 : vector<1xf32> to vector<1x1x1xf32>
    %124 = vector.extract %123[0, 0, 0] : f32 from vector<1x1x1xf32>
    %125 = arith.mulf %124, %114 : f32
    %126 = arith.mulf %119, %119 : f32
    %127 = arith.subf %125, %126 : f32
    %128 = vector.broadcast %119 : f32 to vector<8x128xf32>
    %129 = arith.subf %107, %128 : vector<8x128xf32>
    %cst_42 = arith.constant 9.99999974E-6 : f32
    %130 = arith.addf %127, %cst_42 : f32
    %131 = math.rsqrt %130 : f32
    %132 = vector.broadcast %131 : f32 to vector<8x128xf32>
    %133 = arith.mulf %129, %132 : vector<8x128xf32>
    %134 = arith.truncf %133 : vector<8x128xf32> to vector<8x128xbf16>
    %135 = math.tanh %134 : vector<8x128xbf16>
    %c1 = arith.constant 1 : index
    %c0_43 = arith.constant 0 : index
    %c0_44 = arith.constant 0 : index
    %136 = vector.load %arg5[%c1, %c0_43, %c0_44] : memref<5x128x128xbf16, #tpu.memory_space<vmem>>, vector<1x128x128xbf16>
    %137 = vector.shape_cast %136 : vector<1x128x128xbf16> to vector<128x128xbf16>
    %c0_45 = arith.constant 0 : index
    %c1024 = arith.constant 1024 : index
    %138 = vector.load %arg8[%c0_45, %c1024] : memref<1x2688xf32, #tpu.memory_space<vmem>>, vector<1x128xf32>
    %cst_46 = arith.constant dense<0.000000e+00> : vector<8x128xf32>
    %139 = tpu.matmul %135, %137, %cst_46 {dimension_numbers = #tpu.dot_dimension_numbers<[1], [0], [0], [1], [0, 0, 1, 1], [], []>} : vector<8x128xbf16>, vector<128x128xbf16>, vector<8x128xf32> -> vector<8x128xf32>
    %140 = vector.broadcast %138 : vector<1x128xf32> to vector<8x128xf32>
    %141 = arith.addf %139, %140 : vector<8x128xf32>
    %142 = tpu.iota {dimensions = array<i32: 0>} : vector<8x128xi32>
    %143 = vector.broadcast %0 : i32 to vector<8x128xi32>
    %144 = arith.cmpi slt, %142, %143 : vector<8x128xi32>
    %cst_47 = arith.constant 0.000000e+00 : f32
    %145 = vector.broadcast %cst_47 : f32 to vector<8x128xf32>
    %146 = arith.select %144, %141, %145 : vector<8x128xi1>, vector<8x128xf32>
    %cst_48 = arith.constant 3.200000e+01 : f32
    %147 = arith.mulf %1, %cst_48 : f32
    %cst_49 = arith.constant 1.000000e+00 : f32
    %148 = arith.divf %cst_49, %147 : f32
    %149 = vector.shape_cast %146 : vector<8x128xf32> to vector<1x8x128xf32>
    %cst_50 = arith.constant dense<0.000000e+00> : vector<1xf32>
    %150 = vector.multi_reduction <add>, %149, %cst_50 [1, 2] : vector<1x8x128xf32> to vector<1xf32>
    %151 = vector.shape_cast %150 : vector<1xf32> to vector<1x1x1xf32>
    %152 = vector.extract %151[0, 0, 0] : f32 from vector<1x1x1xf32>
    %153 = arith.mulf %152, %148 : f32
    %154 = arith.mulf %146, %146 : vector<8x128xf32>
    %155 = vector.shape_cast %154 : vector<8x128xf32> to vector<1x8x128xf32>
    %cst_51 = arith.constant dense<0.000000e+00> : vector<1xf32>
    %156 = vector.multi_reduction <add>, %155, %cst_51 [1, 2] : vector<1x8x128xf32> to vector<1xf32>
    %157 = vector.shape_cast %156 : vector<1xf32> to vector<1x1x1xf32>
    %158 = vector.extract %157[0, 0, 0] : f32 from vector<1x1x1xf32>
    %159 = arith.mulf %158, %148 : f32
    %160 = arith.mulf %153, %153 : f32
    %161 = arith.subf %159, %160 : f32
    %162 = vector.broadcast %153 : f32 to vector<8x128xf32>
    %163 = arith.subf %141, %162 : vector<8x128xf32>
    %cst_52 = arith.constant 9.99999974E-6 : f32
    %164 = arith.addf %161, %cst_52 : f32
    %165 = math.rsqrt %164 : f32
    %166 = vector.broadcast %165 : f32 to vector<8x128xf32>
    %167 = arith.mulf %163, %166 : vector<8x128xf32>
    %168 = arith.truncf %167 : vector<8x128xf32> to vector<8x128xbf16>
    %169 = math.tanh %168 : vector<8x128xbf16>
    %c2 = arith.constant 2 : index
    %c0_53 = arith.constant 0 : index
    %c0_54 = arith.constant 0 : index
    %170 = vector.load %arg5[%c2, %c0_53, %c0_54] : memref<5x128x128xbf16, #tpu.memory_space<vmem>>, vector<1x128x128xbf16>
    %171 = vector.shape_cast %170 : vector<1x128x128xbf16> to vector<128x128xbf16>
    %c0_55 = arith.constant 0 : index
    %c1152 = arith.constant 1152 : index
    %172 = vector.load %arg8[%c0_55, %c1152] : memref<1x2688xf32, #tpu.memory_space<vmem>>, vector<1x128xf32>
    %cst_56 = arith.constant dense<0.000000e+00> : vector<8x128xf32>
    %173 = tpu.matmul %169, %171, %cst_56 {dimension_numbers = #tpu.dot_dimension_numbers<[1], [0], [0], [1], [0, 0, 1, 1], [], []>} : vector<8x128xbf16>, vector<128x128xbf16>, vector<8x128xf32> -> vector<8x128xf32>
    %174 = vector.broadcast %172 : vector<1x128xf32> to vector<8x128xf32>
    %175 = arith.addf %173, %174 : vector<8x128xf32>
    %176 = arith.truncf %175 : vector<8x128xf32> to vector<8x128xbf16>
    %177 = math.tanh %176 : vector<8x128xbf16>
    %c3 = arith.constant 3 : index
    %c0_57 = arith.constant 0 : index
    %c0_58 = arith.constant 0 : index
    %178 = vector.load %arg5[%c3, %c0_57, %c0_58] : memref<5x128x128xbf16, #tpu.memory_space<vmem>>, vector<1x128x128xbf16>
    %179 = vector.shape_cast %178 : vector<1x128x128xbf16> to vector<128x128xbf16>
    %c0_59 = arith.constant 0 : index
    %c1280 = arith.constant 1280 : index
    %180 = vector.load %arg8[%c0_59, %c1280] : memref<1x2688xf32, #tpu.memory_space<vmem>>, vector<1x128xf32>
    %cst_60 = arith.constant dense<0.000000e+00> : vector<8x128xf32>
    %181 = tpu.matmul %177, %179, %cst_60 {dimension_numbers = #tpu.dot_dimension_numbers<[1], [0], [0], [1], [0, 0, 1, 1], [], []>} : vector<8x128xbf16>, vector<128x128xbf16>, vector<8x128xf32> -> vector<8x128xf32>
    %182 = vector.broadcast %180 : vector<1x128xf32> to vector<8x128xf32>
    %183 = arith.addf %181, %182 : vector<8x128xf32>
    %184 = arith.truncf %183 : vector<8x128xf32> to vector<8x128xbf16>
    %185 = math.tanh %184 : vector<8x128xbf16>
    %c4 = arith.constant 4 : index
    %c0_61 = arith.constant 0 : index
    %c0_62 = arith.constant 0 : index
    %186 = vector.load %arg5[%c4, %c0_61, %c0_62] : memref<5x128x128xbf16, #tpu.memory_space<vmem>>, vector<1x128x128xbf16>
    %187 = vector.shape_cast %186 : vector<1x128x128xbf16> to vector<128x128xbf16>
    %c0_63 = arith.constant 0 : index
    %c1408 = arith.constant 1408 : index
    %188 = vector.load %arg8[%c0_63, %c1408] : memref<1x2688xf32, #tpu.memory_space<vmem>>, vector<1x128xf32>
    %cst_64 = arith.constant dense<0.000000e+00> : vector<8x128xf32>
    %189 = tpu.matmul %185, %187, %cst_64 {dimension_numbers = #tpu.dot_dimension_numbers<[1], [0], [0], [1], [0, 0, 1, 1], [], []>} : vector<8x128xbf16>, vector<128x128xbf16>, vector<8x128xf32> -> vector<8x128xf32>
    %190 = vector.broadcast %188 : vector<1x128xf32> to vector<8x128xf32>
    %191 = arith.addf %189, %190 : vector<8x128xf32>
    %192 = arith.truncf %191 : vector<8x128xf32> to vector<8x128xbf16>
    %193 = math.tanh %192 : vector<8x128xbf16>
    %c0_65 = arith.constant 0 : index
    %c0_66 = arith.constant 0 : index
    %194 = vector.load %arg6[%c0_65, %c0_66] : memref<128x256xbf16, #tpu.memory_space<vmem>>, vector<128x256xbf16>
    %c0_67 = arith.constant 0 : index
    %c1536 = arith.constant 1536 : index
    %195 = vector.load %arg8[%c0_67, %c1536] : memref<1x2688xf32, #tpu.memory_space<vmem>>, vector<1x256xf32>
    %cst_68 = arith.constant dense<0.000000e+00> : vector<8x256xf32>
    %196 = tpu.matmul %193, %194, %cst_68 {dimension_numbers = #tpu.dot_dimension_numbers<[1], [0], [0], [1], [0, 0, 1, 1], [], []>} : vector<8x128xbf16>, vector<128x256xbf16>, vector<8x256xf32> -> vector<8x256xf32>
    %197 = vector.broadcast %195 : vector<1x256xf32> to vector<8x256xf32>
    %198 = arith.addf %196, %197 : vector<8x256xf32>
    %199 = arith.truncf %198 : vector<8x256xf32> to vector<8x256xbf16>
    %200 = arith.negf %199 : vector<8x256xbf16>
    %201 = math.exp %200 : vector<8x256xbf16>
    %cst_69 = arith.constant 1.000000e+00 : bf16
    %202 = vector.broadcast %cst_69 : bf16 to vector<8x256xbf16>
    %203 = arith.addf %202, %201 : vector<8x256xbf16>
    %204 = arith.divf %202, %203 : vector<8x256xbf16>
    %c0_70 = arith.constant 0 : index
    %c0_71 = arith.constant 0 : index
    %205 = vector.load %arg7[%c0_70, %c0_71] : memref<256x896xbf16, #tpu.memory_space<vmem>>, vector<256x896xbf16>
    %c0_72 = arith.constant 0 : index
    %c1792 = arith.constant 1792 : index
    %206 = vector.load %arg8[%c0_72, %c1792] : memref<1x2688xf32, #tpu.memory_space<vmem>>, vector<1x896xf32>
    %cst_73 = arith.constant dense<0.000000e+00> : vector<8x896xf32>
    %207 = tpu.matmul %204, %205, %cst_73 {dimension_numbers = #tpu.dot_dimension_numbers<[1], [0], [0], [1], [0, 0, 1, 1], [], []>} : vector<8x256xbf16>, vector<256x896xbf16>, vector<8x896xf32> -> vector<8x896xf32>
    %208 = vector.broadcast %206 : vector<1x896xf32> to vector<8x896xf32>
    %209 = arith.addf %207, %208 : vector<8x896xf32>
    %210 = arith.negf %209 : vector<8x896xf32>
    %211 = math.exp %210 : vector<8x896xf32>
    %cst_74 = arith.constant 1.000000e+00 : f32
    %212 = vector.broadcast %cst_74 : f32 to vector<8x896xf32>
    %213 = arith.addf %212, %211 : vector<8x896xf32>
    %214 = arith.divf %212, %213 : vector<8x896xf32>
    %c0_75 = arith.constant 0 : index
    %c0_76 = arith.constant 0 : index
    %215 = vector.load %arg9[%c0_75, %c0_76] : memref<8x896xf32, #tpu.memory_space<vmem>>, vector<8x896xf32>
    tpu.vector_store %arg9[%c0_75, %c0_76], %214 {strides = array<i32>} : memref<8x896xf32, #tpu.memory_space<vmem>>, vector<8x896xf32>,
    return
  }
}

</mosaic_0001>

<llo_original>
// kernel: complex_autoencoder_forward.1
$region0: #{complex_autoencoder_forward.1}
  #allocation0 [shape = 'u32[]', space=smem, size = 0x4, offset = 0x4, fixed_abs, tag = 'smem constant byte address 0x4 - core index']
  #allocation1 [shape = 'u32[144,128]{1,0:T(1,128)}', space=vmem, size = 0x12000, scoped, tag = 'internal scratch']
  #allocation2 [shape = 's32[1]{0:T(128)S(6)}', space=smem, size = 0x200, scoped, tag = 'scoped memory for complex_autoencoder_forward.1']
  %s0 = inlined_call_operand.<no memory space> [shape: s32[1], index: 0, kind: input, shape index: {}]
  %s1 = inlined_call_operand.hbm [shape: bf16[8,896], index: 1, kind: input, shape index: {}]
  %s2 = inlined_call_operand.hbm [shape: bf16[896,512], index: 2, kind: input, shape index: {}]
  %s3 = inlined_call_operand.hbm [shape: bf16[512,256], index: 3, kind: input, shape index: {}]
  %s4 = inlined_call_operand.hbm [shape: bf16[256,128], index: 4, kind: input, shape index: {}]
  %s5 = inlined_call_operand.hbm [shape: bf16[5,128,128], index: 5, kind: input, shape index: {}]
  %s6 = inlined_call_operand.hbm [shape: bf16[128,256], index: 6, kind: input, shape index: {}]
  %s7 = inlined_call_operand.hbm [shape: bf16[256,896], index: 7, kind: input, shape index: {}]
  %s8 = inlined_call_operand.hbm [shape: f32[1,2688], index: 8, kind: input, shape index: {}]
  %s9 = inlined_call_operand.hbm [shape: f32[8,896], index: 9, kind: output, shape index: {}]
  %s10 = sld [smem:[#allocation0]]
  $region78: #{complex_autoencoder_forward.1} parent=0
    _
  %s12 = ssub.s32 1, %s10
  %s13 = scalar_select 0, %s12, %s10
  %14 = sst [smem:[#allocation2]] %s0
  $region1: #{complex_autoencoder_forward.1} parent=0
    #allocation3 [shape = 'u8[14336]{0}', space=vmem, size = 0x3800, scoped, tag = 'input window, operand 1, single buffered']
    #allocation4 [shape = 's32[1]{0}', space=sflag, size = 0x4, scoped, tag = 'scoped memory for complex_autoencoder_forward.1']
    #allocation5 [shape = 's32[1]{0}', space=sflag, size = 0x4, scoped, tag = 'scoped memory for complex_autoencoder_forward.1']
    #allocation6 [shape = 'u8[917504]{0}', space=vmem, size = 0xe0000, scoped, tag = 'input window, operand 2, single buffered']
    #allocation7 [shape = 's32[1]{0}', space=sflag, size = 0x4, scoped, tag = 'scoped memory for complex_autoencoder_forward.1']
    #allocation8 [shape = 'u8[262144]{0}', space=vmem, size = 0x40000, scoped, tag = 'input window, operand 3, single buffered']
    #allocation9 [shape = 'u8[65536]{0}', space=vmem, size = 0x10000, scoped, tag = 'input window, operand 4, single buffered']
    #allocation10 [shape = 's32[1]{0}', space=sflag, size = 0x4, scoped, tag = 'scoped memory for complex_autoencoder_forward.1']
    #allocation11 [shape = 'u8[163840]{0}', space=vmem, size = 0x28000, scoped, tag = 'input window, operand 5, single buffered']
    #allocation12 [shape = 'u8[65536]{0}', space=vmem, size = 0x10000, scoped, tag = 'input window, operand 6, single buffered']
    #allocation13 [shape = 's32[1]{0}', space=sflag, size = 0x4, scoped, tag = 'scoped memory for complex_autoencoder_forward.1']
    #allocation14 [shape = 'u8[458752]{0}', space=vmem, size = 0x70000, scoped, tag = 'input window, operand 7, single buffered']
    #allocation15 [shape = 'u8[10752]{0}', space=vmem, size = 0x2c00, scoped, tag = 'input window, operand 8, single buffered']
    #allocation16 [shape = 's32[1]{0}', space=sflag, size = 0x4, scoped, tag = 'scoped memory for complex_autoencoder_forward.1']
    #allocation17 [shape = 'u8[28672]{0}', space=vmem, size = 0x7000, scoped, tag = 'output window, operand 0, single buffered']
    %15 = vsyncpa [#allocation4], 0
    %16 = vsyncpa [#allocation7], 0
    %17 = vsyncpa [#allocation10], 0
    %18 = vsyncpa [#allocation13], 0
    %19 = vsyncpa [#allocation16], 0
    %20 = vsyncpa [#allocation5], 0
    // Predicated region
    $region2: #{complex_autoencoder_forward.1} parent=1 // pred_check
      _
    $region3: #{complex_autoencoder_forward.1} parent=1 // pred_check_branch
      %22 = sbr.rel (0) target = $region5
    $region4: #{complex_autoencoder_forward.1} parent=1 // pred_region
      _
    $region5: #{complex_autoencoder_forward.1} parent=1 // pred_fallthru
      _
    // Predicated region
    $region6: #{complex_autoencoder_forward.1} parent=1 // pred_check
      _
    $region7: #{complex_autoencoder_forward.1} parent=1 // pred_check_branch
      %24 = sbr.rel (0) target = $region9
    $region8: #{complex_autoencoder_forward.1} parent=1 // pred_region
      %s26 = ssub.s32 448, 448
      %27 = vsyncadd [#allocation4], %s26
      %s29 = sshll.u32 [#allocation3], 4
      %s30 = int_to_ptr.vmem [resolvable:$true] %s29
      %32 = dma.hbm_to_vmem [thread:$0]  %s1, 448, %s30, [#allocation4]
    $region9: #{complex_autoencoder_forward.1} parent=1 // pred_fallthru
      _
    // Predicated region
    $region10: #{complex_autoencoder_forward.1} parent=1 // pred_check
      _
    $region11: #{complex_autoencoder_forward.1} parent=1 // pred_check_branch
      %34 = sbr.rel (0) target = $region13
    $region12: #{complex_autoencoder_forward.1} parent=1 // pred_region
      %s36 = ssub.s32 28672, 28672
      %37 = vsyncadd [#allocation7], %s36
      %s38 = sshll.u32 [#allocation6], 4
      %s39 = int_to_ptr.vmem [resolvable:$true] %s38
      %44 = dma.hbm_to_vmem [thread:$0]  %s2, 28672, %s39, [#allocation7], 256, 256, 16
    $region13: #{complex_autoencoder_forward.1} parent=1 // pred_fallthru
      _
    // Predicated region
    $region14: #{complex_autoencoder_forward.1} parent=1 // pred_check
      _
    $region15: #{complex_autoencoder_forward.1} parent=1 // pred_check_branch
      %46 = sbr.rel (0) target = $region17
    $region16: #{complex_autoencoder_forward.1} parent=1 // pred_region
      %s48 = ssub.s32 8192, 8192
      %49 = vsyncadd [#allocation7], %s48
      %s50 = sshll.u32 [#allocation8], 4
      %s51 = int_to_ptr.vmem [resolvable:$true] %s50
      %56 = dma.hbm_to_vmem [thread:$0]  %s3, 8192, %s51, [#allocation7], 128, 128, 8
    $region17: #{complex_autoencoder_forward.1} parent=1 // pred_fallthru
      _
    // Predicated region
    $region18: #{complex_autoencoder_forward.1} parent=1 // pred_check
      _
    $region19: #{complex_autoencoder_forward.1} parent=1 // pred_check_branch
      %58 = sbr.rel (0) target = $region21
    $region20: #{complex_autoencoder_forward.1} parent=1 // pred_region
      %s60 = ssub.s32 2048, 2048
      %61 = vsyncadd [#allocation10], %s60
      %s62 = sshll.u32 [#allocation9], 4
      %s63 = int_to_ptr.vmem [resolvable:$true] %s62
      %68 = dma.hbm_to_vmem [thread:$0]  %s4, 2048, %s63, [#allocation10], 64, 64, 4
    $region21: #{complex_autoencoder_forward.1} parent=1 // pred_fallthru
      _
    // Predicated region
    $region22: #{complex_autoencoder_forward.1} parent=1 // pred_check
      _
    $region23: #{complex_autoencoder_forward.1} parent=1 // pred_check_branch
      %70 = sbr.rel (0) target = $region25
    $region24: #{complex_autoencoder_forward.1} parent=1 // pred_region
      %s72 = ssub.s32 5120, 5120
      %73 = vsyncadd [#allocation10], %s72
      %s74 = sshll.u32 [#allocation11], 4
      %s75 = int_to_ptr.vmem [resolvable:$true] %s74
      %80 = dma.hbm_to_vmem [thread:$0]  %s5, 5120, %s75, [#allocation10], 64, 64, 4
    $region25: #{complex_autoencoder_forward.1} parent=1 // pred_fallthru
      _
    // Predicated region
    $region26: #{complex_autoencoder_forward.1} parent=1 // pred_check
      _
    $region27: #{complex_autoencoder_forward.1} parent=1 // pred_check_branch
      %82 = sbr.rel (0) target = $region29
    $region28: #{complex_autoencoder_forward.1} parent=1 // pred_region
      %s84 = ssub.s32 2048, 2048
      %85 = vsyncadd [#allocation13], %s84
      %s86 = sshll.u32 [#allocation12], 4
      %s87 = int_to_ptr.vmem [resolvable:$true] %s86
      %92 = dma.hbm_to_vmem [thread:$0]  %s6, 2048, %s87, [#allocation13], 128, 128, 8
    $region29: #{complex_autoencoder_forward.1} parent=1 // pred_fallthru
      _
    // Predicated region
    $region30: #{complex_autoencoder_forward.1} parent=1 // pred_check
      _
    $region31: #{complex_autoencoder_forward.1} parent=1 // pred_check_branch
      %94 = sbr.rel (0) target = $region33
    $region32: #{complex_autoencoder_forward.1} parent=1 // pred_region
      %s96 = ssub.s32 14336, 14336
      %97 = vsyncadd [#allocation13], %s96
      %s98 = sshll.u32 [#allocation14], 4
      %s99 = int_to_ptr.vmem [resolvable:$true] %s98
      %104 = dma.hbm_to_vmem [thread:$0]  %s7, 14336, %s99, [#allocation13], 448, 448, 28
    $region33: #{complex_autoencoder_forward.1} parent=1 // pred_fallthru
      _
    // Predicated region
    $region34: #{complex_autoencoder_forward.1} parent=1 // pred_check
      _
    $region35: #{complex_autoencoder_forward.1} parent=1 // pred_check_branch
      %106 = sbr.rel (0) target = $region37
    $region36: #{complex_autoencoder_forward.1} parent=1 // pred_region
      %s108 = ssub.s32 336, 336
      %109 = vsyncadd [#allocation16], %s108
      %s111 = sshll.u32 [#allocation15], 4
      %s112 = int_to_ptr.vmem [resolvable:$true] %s111
      %114 = dma.hbm_to_vmem [thread:$0]  %s8, 336, %s112, [#allocation16]
    $region37: #{complex_autoencoder_forward.1} parent=1 // pred_fallthru
      _
    // Predicated region
    $region38: #{complex_autoencoder_forward.1} parent=1 // pred_check
      _
    $region39: #{complex_autoencoder_forward.1} parent=1 // pred_check_branch
      %116 = sbr.rel (0) target = $region41
    $region40: #{complex_autoencoder_forward.1} parent=1 // pred_region
      %117 = dma.done [#allocation4], 448
    $region41: #{complex_autoencoder_forward.1} parent=1 // pred_fallthru
      _
    // Predicated region
    $region42: #{complex_autoencoder_forward.1} parent=1 // pred_check
      _
    $region43: #{complex_autoencoder_forward.1} parent=1 // pred_check_branch
      %119 = sbr.rel (0) target = $region45
    $region44: #{complex_autoencoder_forward.1} parent=1 // pred_region
      %120 = dma.done [#allocation7], 28672
    $region45: #{complex_autoencoder_forward.1} parent=1 // pred_fallthru
      _
    // Predicated region
    $region46: #{complex_autoencoder_forward.1} parent=1 // pred_check
      _
    $region47: #{complex_autoencoder_forward.1} parent=1 // pred_check_branch
      %122 = sbr.rel (0) target = $region49
    $region48: #{complex_autoencoder_forward.1} parent=1 // pred_region
      %123 = dma.done [#allocation7], 8192
    $region49: #{complex_autoencoder_forward.1} parent=1 // pred_fallthru
      _
    // Predicated region
    $region50: #{complex_autoencoder_forward.1} parent=1 // pred_check
      _
    $region51: #{complex_autoencoder_forward.1} parent=1 // pred_check_branch
      %125 = sbr.rel (0) target = $region53
    $region52: #{complex_autoencoder_forward.1} parent=1 // pred_region
      %126 = dma.done [#allocation10], 2048
    $region53: #{complex_autoencoder_forward.1} parent=1 // pred_fallthru
      _
    // Predicated region
    $region54: #{complex_autoencoder_forward.1} parent=1 // pred_check
      _
    $region55: #{complex_autoencoder_forward.1} parent=1 // pred_check_branch
      %128 = sbr.rel (0) target = $region57
    $region56: #{complex_autoencoder_forward.1} parent=1 // pred_region
      %129 = dma.done [#allocation10], 5120
    $region57: #{complex_autoencoder_forward.1} parent=1 // pred_fallthru
      _
    // Predicated region
    $region58: #{complex_autoencoder_forward.1} parent=1 // pred_check
      _
    $region59: #{complex_autoencoder_forward.1} parent=1 // pred_check_branch
      %131 = sbr.rel (0) target = $region61
    $region60: #{complex_autoencoder_forward.1} parent=1 // pred_region
      %132 = dma.done [#allocation13], 2048
    $region61: #{complex_autoencoder_forward.1} parent=1 // pred_fallthru
      _
    // Predicated region
    $region62: #{complex_autoencoder_forward.1} parent=1 // pred_check
      _
    $region63: #{complex_autoencoder_forward.1} parent=1 // pred_check_branch
      %134 = sbr.rel (0) target = $region65
    $region64: #{complex_autoencoder_forward.1} parent=1 // pred_region
      %135 = dma.done [#allocation13], 14336
    $region65: #{complex_autoencoder_forward.1} parent=1 // pred_fallthru
      _
    // Predicated region
    $region66: #{complex_autoencoder_forward.1} parent=1 // pred_check
      _
    $region67: #{complex_autoencoder_forward.1} parent=1 // pred_check_branch
      %137 = sbr.rel (0) target = $region69
    $region68: #{complex_autoencoder_forward.1} parent=1 // pred_region
      %138 = dma.done [#allocation16], 336
    $region69: #{complex_autoencoder_forward.1} parent=1 // pred_fallthru
      _
    %s141 = sld [smem:[#allocation2]]
    %s142 = scvt.s32.f32 %s141
    %v143 = vld [vmem:[#allocation3] sm:$0xff]
    %v144 = vld [vmem:[#allocation3 + $0x8] sm:$0xff]
    %v145 = vld [vmem:[#allocation3 + $0x10] sm:$0xff]
    %v146 = vld [vmem:[#allocation3 + $0x18] sm:$0xf]
    %v147 = vld [vmem:[#allocation6] sm:$0xff]
    %v148 = vld [vmem:[#allocation6 + $0x8] sm:$0xff]
    %v149 = vld [vmem:[#allocation6 + $0x10] sm:$0xff]
    %v150 = vld [vmem:[#allocation6 + $0x18] sm:$0xff]
    %v151 = vld [vmem:[#allocation6 + $0x20] sm:$0xff]
    %v152 = vld [vmem:[#allocation6 + $0x28] sm:$0xff]
    %v153 = vld [vmem:[#allocation6 + $0x30] sm:$0xff]
    %v154 = vld [vmem:[#allocation6 + $0x38] sm:$0xff]
    %v155 = vld [vmem:[#allocation6 + $0x40] sm:$0xff]
    %v156 = vld [vmem:[#allocation6 + $0x48] sm:$0xff]
    %v157 = vld [vmem:[#allocation6 + $0x50] sm:$0xff]
    %v158 = vld [vmem:[#allocation6 + $0x58] sm:$0xff]
    %v159 = vld [vmem:[#allocation6 + $0x60] sm:$0xff]
    %v160 = vld [vmem:[#allocation6 + $0x68] sm:$0xff]
    %v161 = vld [vmem:[#allocation6 + $0x70] sm:$0xff]
    %v162 = vld [vmem:[#allocation6 + $0x78] sm:$0xff]
    %v163 = vld [vmem:[#allocation6 + $0x80] sm:$0xff]
    %v164 = vld [vmem:[#allocation6 + $0x88] sm:$0xff]
    %v165 = vld [vmem:[#allocation6 + $0x90] sm:$0xff]
    %v166 = vld [vmem:[#allocation6 + $0x98] sm:$0xff]
    %v167 = vld [vmem:[#allocation6 + $0xa0] sm:$0xff]
    %v168 = vld [vmem:[#allocation6 + $0xa8] sm:$0xff]
    %v169 = vld [vmem:[#allocation6 + $0xb0] sm:$0xff]
    %v170 = vld [vmem:[#allocation6 + $0xb8] sm:$0xff]
    %v171 = vld [vmem:[#allocation6 + $0xc0] sm:$0xff]
    %v172 = vld [vmem:[#allocation6 + $0xc8] sm:$0xff]
    %v173 = vld [vmem:[#allocation6 + $0xd0] sm:$0xff]
    %v174 = vld [vmem:[#allocation6 + $0xd8] sm:$0xff]
    %v175 = vld [vmem:[#allocation6 + $0xe0] sm:$0xff]
    %v176 = vld [vmem:[#allocation6 + $0xe8] sm:$0xff]
    %v177 = vld [vmem:[#allocation6 + $0xf0] sm:$0xff]
    %v178 = vld [vmem:[#allocation6 + $0xf8] sm:$0xff]
    %v179 = vld [vmem:[#allocation6 + $0x100] sm:$0xff]
    %v180 = vld [vmem:[#allocation6 + $0x108] sm:$0xff]
    %v181 = vld [vmem:[#allocation6 + $0x110] sm:$0xff]
    %v182 = vld [vmem:[#allocation6 + $0x118] sm:$0xff]
    %v183 = vld [vmem:[#allocation6 + $0x120] sm:$0xff]
    %v184 = vld [vmem:[#allocation6 + $0x128] sm:$0xff]
    %v185 = vld [vmem:[#allocation6 + $0x130] sm:$0xff]
    %v186 = vld [vmem:[#allocation6 + $0x138] sm:$0xff]
    %v187 = vld [vmem:[#allocation6 + $0x140] sm:$0xff]
    %v188 = vld [vmem:[#allocation6 + $0x148] sm:$0xff]
    %v189 = vld [vmem:[#allocation6 + $0x150] sm:$0xff]
    %v190 = vld [vmem:[#allocation6 + $0x158] sm:$0xff]
    %v191 = vld [vmem:[#allocation6 + $0x160] sm:$0xff]
    %v192 = vld [vmem:[#allocation6 + $0x168] sm:$0xff]
    %v193 = vld [vmem:[#allocation6 + $0x170] sm:$0xff]
    %v194 = vld [vmem:[#allocation6 + $0x178] sm:$0xff]
    %v195 = vld [vmem:[#allocation6 + $0x180] sm:$0xff]
    %v196 = vld [vmem:[#allocation6 + $0x188] sm:$0xff]
    %v197 = vld [vmem:[#allocation6 + $0x190] sm:$0xff]
    %v198 = vld [vmem:[#allocation6 + $0x198] sm:$0xff]
    %v199 = vld [vmem:[#allocation6 + $0x1a0] sm:$0xff]
    %v200 = vld [vmem:[#allocation6 + $0x1a8] sm:$0xff]
    %v201 = vld [vmem:[#allocation6 + $0x1b0] sm:$0xff]
    %v202 = vld [vmem:[#allocation6 + $0x1b8] sm:$0xff]
    %v203 = vld [vmem:[#allocation6 + $0x1c0] sm:$0xff]
    %v204 = vld [vmem:[#allocation6 + $0x1c8] sm:$0xff]
    %v205 = vld [vmem:[#allocation6 + $0x1d0] sm:$0xff]
    %v206 = vld [vmem:[#allocation6 + $0x1d8] sm:$0xff]
    %v207 = vld [vmem:[#allocation6 + $0x1e0] sm:$0xff]
    %v208 = vld [vmem:[#allocation6 + $0x1e8] sm:$0xff]
    %v209 = vld [vmem:[#allocation6 + $0x1f0] sm:$0xff]
    %v210 = vld [vmem:[#allocation6 + $0x1f8] sm:$0xff]
    %v211 = vld [vmem:[#allocation6 + $0x200] sm:$0xff]
    %v212 = vld [vmem:[#allocation6 + $0x208] sm:$0xff]
    %v213 = vld [vmem:[#allocation6 + $0x210] sm:$0xff]
    %v214 = vld [vmem:[#allocation6 + $0x218] sm:$0xff]
    %v215 = vld [vmem:[#allocation6 + $0x220] sm:$0xff]
    %v216 = vld [vmem:[#allocation6 + $0x228] sm:$0xff]
    %v217 = vld [vmem:[#allocation6 + $0x230] sm:$0xff]
    %v218 = vld [vmem:[#allocation6 + $0x238] sm:$0xff]
    %v219 = vld [vmem:[#allocation6 + $0x240] sm:$0xff]
    %v220 = vld [vmem:[#allocation6 + $0x248] sm:$0xff]
    %v221 = vld [vmem:[#allocation6 + $0x250] sm:$0xff]
    %v222 = vld [vmem:[#allocation6 + $0x258] sm:$0xff]
    %v223 = vld [vmem:[#allocation6 + $0x260] sm:$0xff]
    %v224 = vld [vmem:[#allocation6 + $0x268] sm:$0xff]
    %v225 = vld [vmem:[#allocation6 + $0x270] sm:$0xff]
    %v226 = vld [vmem:[#allocation6 + $0x278] sm:$0xff]
    %v227 = vld [vmem:[#allocation6 + $0x280] sm:$0xff]
    %v228 = vld [vmem:[#allocation6 + $0x288] sm:$0xff]
    %v229 = vld [vmem:[#allocation6 + $0x290] sm:$0xff]
    %v230 = vld [vmem:[#allocation6 + $0x298] sm:$0xff]
    %v231 = vld [vmem:[#allocation6 + $0x2a0] sm:$0xff]
    %v232 = vld [vmem:[#allocation6 + $0x2a8] sm:$0xff]
    %v233 = vld [vmem:[#allocation6 + $0x2b0] sm:$0xff]
    %v234 = vld [vmem:[#allocation6 + $0x2b8] sm:$0xff]
    %v235 = vld [vmem:[#allocation6 + $0x2c0] sm:$0xff]
    %v236 = vld [vmem:[#allocation6 + $0x2c8] sm:$0xff]
    %v237 = vld [vmem:[#allocation6 + $0x2d0] sm:$0xff]
    %v238 = vld [vmem:[#allocation6 + $0x2d8] sm:$0xff]
    %v239 = vld [vmem:[#allocation6 + $0x2e0] sm:$0xff]
    %v240 = vld [vmem:[#allocation6 + $0x2e8] sm:$0xff]
    %v241 = vld [vmem:[#allocation6 + $0x2f0] sm:$0xff]
    %v242 = vld [vmem:[#allocation6 + $0x2f8] sm:$0xff]
    %v243 = vld [vmem:[#allocation6 + $0x300] sm:$0xff]
    %v244 = vld [vmem:[#allocation6 + $0x308] sm:$0xff]
    %v245 = vld [vmem:[#allocation6 + $0x310] sm:$0xff]
    %v246 = vld [vmem:[#allocation6 + $0x318] sm:$0xff]
    %v247 = vld [vmem:[#allocation6 + $0x320] sm:$0xff]
    %v248 = vld [vmem:[#allocation6 + $0x328] sm:$0xff]
    %v249 = vld [vmem:[#allocation6 + $0x330] sm:$0xff]
    %v250 = vld [vmem:[#allocation6 + $0x338] sm:$0xff]
    %v251 = vld [vmem:[#allocation6 + $0x340] sm:$0xff]
    %v252 = vld [vmem:[#allocation6 + $0x348] sm:$0xff]
    %v253 = vld [vmem:[#allocation6 + $0x350] sm:$0xff]
    %v254 = vld [vmem:[#allocation6 + $0x358] sm:$0xff]
    %v255 = vld [vmem:[#allocation6 + $0x360] sm:$0xff]
    %v256 = vld [vmem:[#allocation6 + $0x368] sm:$0xff]
    %v257 = vld [vmem:[#allocation6 + $0x370] sm:$0xff]
    %v258 = vld [vmem:[#allocation6 + $0x378] sm:$0xff]
    %v259 = vld [vmem:[#allocation6 + $0x380] sm:$0xff]
    %v260 = vld [vmem:[#allocation6 + $0x388] sm:$0xff]
    %v261 = vld [vmem:[#allocation6 + $0x390] sm:$0xff]
    %v262 = vld [vmem:[#allocation6 + $0x398] sm:$0xff]
    %v263 = vld [vmem:[#allocation6 + $0x3a0] sm:$0xff]
    %v264 = vld [vmem:[#allocation6 + $0x3a8] sm:$0xff]
    %v265 = vld [vmem:[#allocation6 + $0x3b0] sm:$0xff]
    %v266 = vld [vmem:[#allocation6 + $0x3b8] sm:$0xff]
    %v267 = vld [vmem:[#allocation6 + $0x3c0] sm:$0xff]
    %v268 = vld [vmem:[#allocation6 + $0x3c8] sm:$0xff]
    %v269 = vld [vmem:[#allocation6 + $0x3d0] sm:$0xff]
    %v270 = vld [vmem:[#allocation6 + $0x3d8] sm:$0xff]
    %v271 = vld [vmem:[#allocation6 + $0x3e0] sm:$0xff]
    %v272 = vld [vmem:[#allocation6 + $0x3e8] sm:$0xff]
    %v273 = vld [vmem:[#allocation6 + $0x3f0] sm:$0xff]
    %v274 = vld [vmem:[#allocation6 + $0x3f8] sm:$0xff]
    %v275 = vld [vmem:[#allocation6 + $0x400] sm:$0xff]
    %v276 = vld [vmem:[#allocation6 + $0x408] sm:$0xff]
    %v277 = vld [vmem:[#allocation6 + $0x410] sm:$0xff]
    %v278 = vld [vmem:[#allocation6 + $0x418] sm:$0xff]
    %v279 = vld [vmem:[#allocation6 + $0x420] sm:$0xff]
    %v280 = vld [vmem:[#allocation6 + $0x428] sm:$0xff]
    %v281 = vld [vmem:[#allocation6 + $0x430] sm:$0xff]
    %v282 = vld [vmem:[#allocation6 + $0x438] sm:$0xff]
    %v283 = vld [vmem:[#allocation6 + $0x440] sm:$0xff]
    %v284 = vld [vmem:[#allocation6 + $0x448] sm:$0xff]
    %v285 = vld [vmem:[#allocation6 + $0x450] sm:$0xff]
    %v286 = vld [vmem:[#allocation6 + $0x458] sm:$0xff]
    %v287 = vld [vmem:[#allocation6 + $0x460] sm:$0xff]
    %v288 = vld [vmem:[#allocation6 + $0x468] sm:$0xff]
    %v289 = vld [vmem:[#allocation6 + $0x470] sm:$0xff]
    %v290 = vld [vmem:[#allocation6 + $0x478] sm:$0xff]
    %v291 = vld [vmem:[#allocation6 + $0x480] sm:$0xff]
    %v292 = vld [vmem:[#allocation6 + $0x488] sm:$0xff]
    %v293 = vld [vmem:[#allocation6 + $0x490] sm:$0xff]
    %v294 = vld [vmem:[#allocation6 + $0x498] sm:$0xff]
    %v295 = vld [vmem:[#allocation6 + $0x4a0] sm:$0xff]
    %v296 = vld [vmem:[#allocation6 + $0x4a8] sm:$0xff]
    %v297 = vld [vmem:[#allocation6 + $0x4b0] sm:$0xff]
    %v298 = vld [vmem:[#allocation6 + $0x4b8] sm:$0xff]
    %v299 = vld [vmem:[#allocation6 + $0x4c0] sm:$0xff]
    %v300 = vld [vmem:[#allocation6 + $0x4c8] sm:$0xff]
    %v301 = vld [vmem:[#allocation6 + $0x4d0] sm:$0xff]
    %v302 = vld [vmem:[#allocation6 + $0x4d8] sm:$0xff]
    %v303 = vld [vmem:[#allocation6 + $0x4e0] sm:$0xff]
    %v304 = vld [vmem:[#allocation6 + $0x4e8] sm:$0xff]
    %v305 = vld [vmem:[#allocation6 + $0x4f0] sm:$0xff]
    %v306 = vld [vmem:[#allocation6 + $0x4f8] sm:$0xff]
    %v307 = vld [vmem:[#allocation6 + $0x500] sm:$0xff]
    %v308 = vld [vmem:[#allocation6 + $0x508] sm:$0xff]
    %v309 = vld [vmem:[#allocation6 + $0x510] sm:$0xff]
    %v310 = vld [vmem:[#allocation6 + $0x518] sm:$0xff]
    %v311 = vld [vmem:[#allocation6 + $0x520] sm:$0xff]
    %v312 = vld [vmem:[#allocation6 + $0x528] sm:$0xff]
    %v313 = vld [vmem:[#allocation6 + $0x530] sm:$0xff]
    %v314 = vld [vmem:[#allocation6 + $0x538] sm:$0xff]
    %v315 = vld [vmem:[#allocation6 + $0x540] sm:$0xff]
    %v316 = vld [vmem:[#allocation6 + $0x548] sm:$0xff]
    %v317 = vld [vmem:[#allocation6 + $0x550] sm:$0xff]
    %v318 = vld [vmem:[#allocation6 + $0x558] sm:$0xff]
    %v319 = vld [vmem:[#allocation6 + $0x560] sm:$0xff]
    %v320 = vld [vmem:[#allocation6 + $0x568] sm:$0xff]
    %v321 = vld [vmem:[#allocation6 + $0x570] sm:$0xff]
    %v322 = vld [vmem:[#allocation6 + $0x578] sm:$0xff]
    %v323 = vld [vmem:[#allocation6 + $0x580] sm:$0xff]
    %v324 = vld [vmem:[#allocation6 + $0x588] sm:$0xff]
    %v325 = vld [vmem:[#allocation6 + $0x590] sm:$0xff]
    %v326 = vld [vmem:[#allocation6 + $0x598] sm:$0xff]
    %v327 = vld [vmem:[#allocation6 + $0x5a0] sm:$0xff]
    %v328 = vld [vmem:[#allocation6 + $0x5a8] sm:$0xff]
    %v329 = vld [vmem:[#allocation6 + $0x5b0] sm:$0xff]
    %v330 = vld [vmem:[#allocation6 + $0x5b8] sm:$0xff]
    %v331 = vld [vmem:[#allocation6 + $0x5c0] sm:$0xff]
    %v332 = vld [vmem:[#allocation6 + $0x5c8] sm:$0xff]
    %v333 = vld [vmem:[#allocation6 + $0x5d0] sm:$0xff]
    %v334 = vld [vmem:[#allocation6 + $0x5d8] sm:$0xff]
    %v335 = vld [vmem:[#allocation6 + $0x5e0] sm:$0xff]
    %v336 = vld [vmem:[#allocation6 + $0x5e8] sm:$0xff]
    %v337 = vld [vmem:[#allocation6 + $0x5f0] sm:$0xff]
    %v338 = vld [vmem:[#allocation6 + $0x5f8] sm:$0xff]
    %v339 = vld [vmem:[#allocation6 + $0x600] sm:$0xff]
    %v340 = vld [vmem:[#allocation6 + $0x608] sm:$0xff]
    %v341 = vld [vmem:[#allocation6 + $0x610] sm:$0xff]
    %v342 = vld [vmem:[#allocation6 + $0x618] sm:$0xff]
    %v343 = vld [vmem:[#allocation6 + $0x620] sm:$0xff]
    %v344 = vld [vmem:[#allocation6 + $0x628] sm:$0xff]
    %v345 = vld [vmem:[#allocation6 + $0x630] sm:$0xff]
    %v346 = vld [vmem:[#allocation6 + $0x638] sm:$0xff]
    %v347 = vld [vmem:[#allocation6 + $0x640] sm:$0xff]
    %v348 = vld [vmem:[#allocation6 + $0x648] sm:$0xff]
    %v349 = vld [vmem:[#allocation6 + $0x650] sm:$0xff]
    %v350 = vld [vmem:[#allocation6 + $0x658] sm:$0xff]
    %v351 = vld [vmem:[#allocation6 + $0x660] sm:$0xff]
    %v352 = vld [vmem:[#allocation6 + $0x668] sm:$0xff]
    %v353 = vld [vmem:[#allocation6 + $0x670] sm:$0xff]
    %v354 = vld [vmem:[#allocation6 + $0x678] sm:$0xff]
    %v355 = vld [vmem:[#allocation6 + $0x680] sm:$0xff]
    %v356 = vld [vmem:[#allocation6 + $0x688] sm:$0xff]
    %v357 = vld [vmem:[#allocation6 + $0x690] sm:$0xff]
    %v358 = vld [vmem:[#allocation6 + $0x698] sm:$0xff]
    %v359 = vld [vmem:[#allocation6 + $0x6a0] sm:$0xff]
    %v360 = vld [vmem:[#allocation6 + $0x6a8] sm:$0xff]
    %v361 = vld [vmem:[#allocation6 + $0x6b0] sm:$0xff]
    %v362 = vld [vmem:[#allocation6 + $0x6b8] sm:$0xff]
    %v363 = vld [vmem:[#allocation6 + $0x6c0] sm:$0xff]
    %v364 = vld [vmem:[#allocation6 + $0x6c8] sm:$0xff]
    %v365 = vld [vmem:[#allocation6 + $0x6d0] sm:$0xff]
    %v366 = vld [vmem:[#allocation6 + $0x6d8] sm:$0xff]
    %v367 = vld [vmem:[#allocation6 + $0x6e0] sm:$0xff]
    %v368 = vld [vmem:[#allocation6 + $0x6e8] sm:$0xff]
    %v369 = vld [vmem:[#allocation6 + $0x6f0] sm:$0xff]
    %v370 = vld [vmem:[#allocation6 + $0x6f8] sm:$0xff]
    %v371 = vld [vmem:[#allocation15] sm:$0xf]
    %v373 = vlaneseq
    %v374 = vshrl.u32 %v373, 7
    %v375 = vsub.s32 0, %v374
    %v376 = vrot.slane %v371, %v375
    %v377 = vlaneseq
    %v378 = vshrl.u32 %v377, 7
    %v379 = vsub.s32 1, %v378
    %v380 = vrot.slane %v371, %v379
    %v381 = vlaneseq
    %v382 = vshrl.u32 %v381, 7
    %v383 = vsub.s32 2, %v382
    %v384 = vrot.slane %v371, %v383
    %v385 = vlaneseq
    %v386 = vshrl.u32 %v385, 7
    %v387 = vsub.s32 3, %v386
    %v388 = vrot.slane %v371, %v387
    %v397 = vunpack.c.l.b16 %v143
    %v398 = vunpack.c.h.b16 %v143
    %v399 = vunpack.c.l.b16 %v144
    %v400 = vunpack.c.h.b16 %v144
    %v401 = vunpack.c.l.b16 %v145
    %v402 = vunpack.c.h.b16 %v145
    %v403 = vunpack.c.l.b16 %v146
    %v404 = vpack.c.b16 %v397, %v397
    %v405 = vpack.c.b16 %v398, %v398
    %v406 = vpack.c.b16 %v399, %v399
    %v407 = vpack.c.b16 %v400, %v400
    %v408 = vpack.c.b16 %v401, %v401
    %v409 = vpack.c.b16 %v402, %v402
    %v410 = vpack.c.b16 %v403, %v403
    %v642 = vunpack.c.l.b16 %v147
    %v643 = vunpack.c.h.b16 %v147
    %v644 = vunpack.c.l.b16 %v148
    %v645 = vunpack.c.h.b16 %v148
    %v646 = vunpack.c.l.b16 %v149
    %v647 = vunpack.c.h.b16 %v149
    %v648 = vunpack.c.l.b16 %v150
    %v649 = vunpack.c.h.b16 %v150
    %v650 = vunpack.c.l.b16 %v151
    %v651 = vunpack.c.h.b16 %v151
    %v652 = vunpack.c.l.b16 %v152
    %v653 = vunpack.c.h.b16 %v152
    %v654 = vunpack.c.l.b16 %v153
    %v655 = vunpack.c.h.b16 %v153
    %v656 = vunpack.c.l.b16 %v154
    %v657 = vunpack.c.h.b16 %v154
    %v658 = vunpack.c.l.b16 %v155
    %v659 = vunpack.c.h.b16 %v155
    %v660 = vunpack.c.l.b16 %v156
    %v661 = vunpack.c.h.b16 %v156
    %v662 = vunpack.c.l.b16 %v157
    %v663 = vunpack.c.h.b16 %v157
    %v664 = vunpack.c.l.b16 %v158
    %v665 = vunpack.c.h.b16 %v158
    %v666 = vunpack.c.l.b16 %v159
    %v667 = vunpack.c.h.b16 %v159
    %v668 = vunpack.c.l.b16 %v160
    %v669 = vunpack.c.h.b16 %v160
    %v670 = vunpack.c.l.b16 %v161
    %v671 = vunpack.c.h.b16 %v161
    %v672 = vunpack.c.l.b16 %v162
    %v673 = vunpack.c.h.b16 %v162
    %v674 = vunpack.c.l.b16 %v163
    %v675 = vunpack.c.h.b16 %v163
    %v676 = vunpack.c.l.b16 %v164
    %v677 = vunpack.c.h.b16 %v164
    %v678 = vunpack.c.l.b16 %v165
    %v679 = vunpack.c.h.b16 %v165
    %v680 = vunpack.c.l.b16 %v166
    %v681 = vunpack.c.h.b16 %v166
    %v682 = vunpack.c.l.b16 %v167
    %v683 = vunpack.c.h.b16 %v167
    %v684 = vunpack.c.l.b16 %v168
    %v685 = vunpack.c.h.b16 %v168
    %v686 = vunpack.c.l.b16 %v169
    %v687 = vunpack.c.h.b16 %v169
    %v688 = vunpack.c.l.b16 %v170
    %v689 = vunpack.c.h.b16 %v170
    %v690 = vunpack.c.l.b16 %v171
    %v691 = vunpack.c.h.b16 %v171
    %v692 = vunpack.c.l.b16 %v172
    %v693 = vunpack.c.h.b16 %v172
    %v694 = vunpack.c.l.b16 %v173
    %v695 = vunpack.c.h.b16 %v173
    %v696 = vunpack.c.l.b16 %v174
    %v697 = vunpack.c.h.b16 %v174
    %v698 = vunpack.c.l.b16 %v175
    %v699 = vunpack.c.h.b16 %v175
    %v700 = vunpack.c.l.b16 %v176
    %v701 = vunpack.c.h.b16 %v176
    %v702 = vunpack.c.l.b16 %v177
    %v703 = vunpack.c.h.b16 %v177
    %v704 = vunpack.c.l.b16 %v178
    %v705 = vunpack.c.h.b16 %v178
    %v706 = vunpack.c.l.b16 %v179
    %v707 = vunpack.c.h.b16 %v179
    %v708 = vunpack.c.l.b16 %v180
    %v709 = vunpack.c.h.b16 %v180
    %v710 = vunpack.c.l.b16 %v181
    %v711 = vunpack.c.h.b16 %v181
    %v712 = vunpack.c.l.b16 %v182
    %v713 = vunpack.c.h.b16 %v182
    %v714 = vunpack.c.l.b16 %v183
    %v715 = vunpack.c.h.b16 %v183
    %v716 = vunpack.c.l.b16 %v184
    %v717 = vunpack.c.h.b16 %v184
    %v718 = vunpack.c.l.b16 %v185
    %v719 = vunpack.c.h.b16 %v185
    %v720 = vunpack.c.l.b16 %v186
    %v721 = vunpack.c.h.b16 %v186
    %v722 = vunpack.c.l.b16 %v187
    %v723 = vunpack.c.h.b16 %v187
    %v724 = vunpack.c.l.b16 %v188
    %v725 = vunpack.c.h.b16 %v188
    %v726 = vunpack.c.l.b16 %v189
    %v727 = vunpack.c.h.b16 %v189
    %v728 = vunpack.c.l.b16 %v190
    %v729 = vunpack.c.h.b16 %v190
    %v730 = vunpack.c.l.b16 %v191
    %v731 = vunpack.c.h.b16 %v191
    %v732 = vunpack.c.l.b16 %v192
    %v733 = vunpack.c.h.b16 %v192
    %v734 = vunpack.c.l.b16 %v193
    %v735 = vunpack.c.h.b16 %v193
    %v736 = vunpack.c.l.b16 %v194
    %v737 = vunpack.c.h.b16 %v194
    %v738 = vunpack.c.l.b16 %v195
    %v739 = vunpack.c.h.b16 %v195
    %v740 = vunpack.c.l.b16 %v196
    %v741 = vunpack.c.h.b16 %v196
    %v742 = vunpack.c.l.b16 %v197
    %v743 = vunpack.c.h.b16 %v197
    %v744 = vunpack.c.l.b16 %v198
    %v745 = vunpack.c.h.b16 %v198
    %v746 = vunpack.c.l.b16 %v199
    %v747 = vunpack.c.h.b16 %v199
    %v748 = vunpack.c.l.b16 %v200
    %v749 = vunpack.c.h.b16 %v200
    %v750 = vunpack.c.l.b16 %v201
    %v751 = vunpack.c.h.b16 %v201
    %v752 = vunpack.c.l.b16 %v202
    %v753 = vunpack.c.h.b16 %v202
    %v754 = vunpack.c.l.b16 %v203
    %v755 = vunpack.c.h.b16 %v203
    %v756 = vunpack.c.l.b16 %v204
    %v757 = vunpack.c.h.b16 %v204
    %v758 = vunpack.c.l.b16 %v205
    %v759 = vunpack.c.h.b16 %v205
    %v760 = vunpack.c.l.b16 %v206
    %v761 = vunpack.c.h.b16 %v206
    %v762 = vunpack.c.l.b16 %v207
    %v763 = vunpack.c.h.b16 %v207
    %v764 = vunpack.c.l.b16 %v208
    %v765 = vunpack.c.h.b16 %v208
    %v766 = vunpack.c.l.b16 %v209
    %v767 = vunpack.c.h.b16 %v209
    %v768 = vunpack.c.l.b16 %v210
    %v769 = vunpack.c.h.b16 %v210
    %v770 = vunpack.c.l.b16 %v211
    %v771 = vunpack.c.h.b16 %v211
    %v772 = vunpack.c.l.b16 %v212
    %v773 = vunpack.c.h.b16 %v212
    %v774 = vunpack.c.l.b16 %v213
    %v775 = vunpack.c.h.b16 %v213
    %v776 = vunpack.c.l.b16 %v214
    %v777 = vunpack.c.h.b16 %v214
    %v778 = vunpack.c.l.b16 %v215
    %v779 = vunpack.c.h.b16 %v215
    %v780 = vunpack.c.l.b16 %v216
    %v781 = vunpack.c.h.b16 %v216
    %v782 = vunpack.c.l.b16 %v217
    %v783 = vunpack.c.h.b16 %v217
    %v784 = vunpack.c.l.b16 %v218
    %v785 = vunpack.c.h.b16 %v218
    %v786 = vunpack.c.l.b16 %v219
    %v787 = vunpack.c.h.b16 %v219
    %v788 = vunpack.c.l.b16 %v220
    %v789 = vunpack.c.h.b16 %v220
    %v790 = vunpack.c.l.b16 %v221
    %v791 = vunpack.c.h.b16 %v221
    %v792 = vunpack.c.l.b16 %v222
    %v793 = vunpack.c.h.b16 %v222
    %v794 = vunpack.c.l.b16 %v223
    %v795 = vunpack.c.h.b16 %v223
    %v796 = vunpack.c.l.b16 %v224
    %v797 = vunpack.c.h.b16 %v224
    %v798 = vunpack.c.l.b16 %v225
    %v799 = vunpack.c.h.b16 %v225
    %v800 = vunpack.c.l.b16 %v226
    %v801 = vunpack.c.h.b16 %v226
    %v802 = vunpack.c.l.b16 %v227
    %v803 = vunpack.c.h.b16 %v227
    %v804 = vunpack.c.l.b16 %v228
    %v805 = vunpack.c.h.b16 %v228
    %v806 = vunpack.c.l.b16 %v229
    %v807 = vunpack.c.h.b16 %v229
    %v808 = vunpack.c.l.b16 %v230
    %v809 = vunpack.c.h.b16 %v230
    %v810 = vunpack.c.l.b16 %v231
    %v811 = vunpack.c.h.b16 %v231
    %v812 = vunpack.c.l.b16 %v232
    %v813 = vunpack.c.h.b16 %v232
    %v814 = vunpack.c.l.b16 %v233
    %v815 = vunpack.c.h.b16 %v233
    %v816 = vunpack.c.l.b16 %v234
    %v817 = vunpack.c.h.b16 %v234
    %v818 = vunpack.c.l.b16 %v235
    %v819 = vunpack.c.h.b16 %v235
    %v820 = vunpack.c.l.b16 %v236
    %v821 = vunpack.c.h.b16 %v236
    %v822 = vunpack.c.l.b16 %v237
    %v823 = vunpack.c.h.b16 %v237
    %v824 = vunpack.c.l.b16 %v238
    %v825 = vunpack.c.h.b16 %v238
    %v826 = vunpack.c.l.b16 %v239
    %v827 = vunpack.c.h.b16 %v239
    %v828 = vunpack.c.l.b16 %v240
    %v829 = vunpack.c.h.b16 %v240
    %v830 = vunpack.c.l.b16 %v241
    %v831 = vunpack.c.h.b16 %v241
    %v832 = vunpack.c.l.b16 %v242
    %v833 = vunpack.c.h.b16 %v242
    %v834 = vunpack.c.l.b16 %v243
    %v835 = vunpack.c.h.b16 %v243
    %v836 = vunpack.c.l.b16 %v244
    %v837 = vunpack.c.h.b16 %v244
    %v838 = vunpack.c.l.b16 %v245
    %v839 = vunpack.c.h.b16 %v245
    %v840 = vunpack.c.l.b16 %v246
    %v841 = vunpack.c.h.b16 %v246
    %v842 = vunpack.c.l.b16 %v247
    %v843 = vunpack.c.h.b16 %v247
    %v844 = vunpack.c.l.b16 %v248
    %v845 = vunpack.c.h.b16 %v248
    %v846 = vunpack.c.l.b16 %v249
    %v847 = vunpack.c.h.b16 %v249
    %v848 = vunpack.c.l.b16 %v250
    %v849 = vunpack.c.h.b16 %v250
    %v850 = vunpack.c.l.b16 %v251
    %v851 = vunpack.c.h.b16 %v251
    %v852 = vunpack.c.l.b16 %v252
    %v853 = vunpack.c.h.b16 %v252
    %v854 = vunpack.c.l.b16 %v253
    %v855 = vunpack.c.h.b16 %v253
    %v856 = vunpack.c.l.b16 %v254
    %v857 = vunpack.c.h.b16 %v254
    %v858 = vunpack.c.l.b16 %v255
    %v859 = vunpack.c.h.b16 %v255
    %v860 = vunpack.c.l.b16 %v256
    %v861 = vunpack.c.h.b16 %v256
    %v862 = vunpack.c.l.b16 %v257
    %v863 = vunpack.c.h.b16 %v257
    %v864 = vunpack.c.l.b16 %v258
    %v865 = vunpack.c.h.b16 %v258
    %v866 = vunpack.c.l.b16 %v259
    %v867 = vunpack.c.h.b16 %v259
    %v868 = vunpack.c.l.b16 %v260
    %v869 = vunpack.c.h.b16 %v260
    %v870 = vunpack.c.l.b16 %v261
    %v871 = vunpack.c.h.b16 %v261
    %v872 = vunpack.c.l.b16 %v262
    %v873 = vunpack.c.h.b16 %v262
    %v874 = vunpack.c.l.b16 %v263
    %v875 = vunpack.c.h.b16 %v263
    %v876 = vunpack.c.l.b16 %v264
    %v877 = vunpack.c.h.b16 %v264
    %v878 = vunpack.c.l.b16 %v265
    %v879 = vunpack.c.h.b16 %v265
    %v880 = vunpack.c.l.b16 %v266
    %v881 = vunpack.c.h.b16 %v266
    %v882 = vunpack.c.l.b16 %v267
    %v883 = vunpack.c.h.b16 %v267
    %v884 = vunpack.c.l.b16 %v268
    %v885 = vunpack.c.h.b16 %v268
    %v886 = vunpack.c.l.b16 %v269
    %v887 = vunpack.c.h.b16 %v269
    %v888 = vunpack.c.l.b16 %v270
    %v889 = vunpack.c.h.b16 %v270
    %v890 = vunpack.c.l.b16 %v271
    %v891 = vunpack.c.h.b16 %v271
    %v892 = vunpack.c.l.b16 %v272
    %v893 = vunpack.c.h.b16 %v272
    %v894 = vunpack.c.l.b16 %v273
    %v895 = vunpack.c.h.b16 %v273
    %v896 = vunpack.c.l.b16 %v274
    %v897 = vunpack.c.h.b16 %v274
    %v898 = vunpack.c.l.b16 %v275
    %v899 = vunpack.c.h.b16 %v275
    %v900 = vunpack.c.l.b16 %v276
    %v901 = vunpack.c.h.b16 %v276
    %v902 = vunpack.c.l.b16 %v277
    %v903 = vunpack.c.h.b16 %v277
    %v904 = vunpack.c.l.b16 %v278
    %v905 = vunpack.c.h.b16 %v278
    %v906 = vunpack.c.l.b16 %v279
    %v907 = vunpack.c.h.b16 %v279
    %v908 = vunpack.c.l.b16 %v280
    %v909 = vunpack.c.h.b16 %v280
    %v910 = vunpack.c.l.b16 %v281
    %v911 = vunpack.c.h.b16 %v281
    %v912 = vunpack.c.l.b16 %v282
    %v913 = vunpack.c.h.b16 %v282
    %v914 = vunpack.c.l.b16 %v283
    %v915 = vunpack.c.h.b16 %v283
    %v916 = vunpack.c.l.b16 %v284
    %v917 = vunpack.c.h.b16 %v284
    %v918 = vunpack.c.l.b16 %v285
    %v919 = vunpack.c.h.b16 %v285
    %v920 = vunpack.c.l.b16 %v286
    %v921 = vunpack.c.h.b16 %v286
    %v922 = vunpack.c.l.b16 %v287
    %v923 = vunpack.c.h.b16 %v287
    %v924 = vunpack.c.l.b16 %v288
    %v925 = vunpack.c.h.b16 %v288
    %v926 = vunpack.c.l.b16 %v289
    %v927 = vunpack.c.h.b16 %v289
    %v928 = vunpack.c.l.b16 %v290
    %v929 = vunpack.c.h.b16 %v290
    %v930 = vunpack.c.l.b16 %v291
    %v931 = vunpack.c.h.b16 %v291
    %v932 = vunpack.c.l.b16 %v292
    %v933 = vunpack.c.h.b16 %v292
    %v934 = vunpack.c.l.b16 %v293
    %v935 = vunpack.c.h.b16 %v293
    %v936 = vunpack.c.l.b16 %v294
    %v937 = vunpack.c.h.b16 %v294
    %v938 = vunpack.c.l.b16 %v295
    %v939 = vunpack.c.h.b16 %v295
    %v940 = vunpack.c.l.b16 %v296
    %v941 = vunpack.c.h.b16 %v296
    %v942 = vunpack.c.l.b16 %v297
    %v943 = vunpack.c.h.b16 %v297
    %v944 = vunpack.c.l.b16 %v298
    %v945 = vunpack.c.h.b16 %v298
    %v946 = vunpack.c.l.b16 %v299
    %v947 = vunpack.c.h.b16 %v299
    %v948 = vunpack.c.l.b16 %v300
    %v949 = vunpack.c.h.b16 %v300
    %v950 = vunpack.c.l.b16 %v301
    %v951 = vunpack.c.h.b16 %v301
    %v952 = vunpack.c.l.b16 %v302
    %v953 = vunpack.c.h.b16 %v302
    %v954 = vunpack.c.l.b16 %v303
    %v955 = vunpack.c.h.b16 %v303
    %v956 = vunpack.c.l.b16 %v304
    %v957 = vunpack.c.h.b16 %v304
    %v958 = vunpack.c.l.b16 %v305
    %v959 = vunpack.c.h.b16 %v305
    %v960 = vunpack.c.l.b16 %v306
    %v961 = vunpack.c.h.b16 %v306
    %v962 = vunpack.c.l.b16 %v307
    %v963 = vunpack.c.h.b16 %v307
    %v964 = vunpack.c.l.b16 %v308
    %v965 = vunpack.c.h.b16 %v308
    %v966 = vunpack.c.l.b16 %v309
    %v967 = vunpack.c.h.b16 %v309
    %v968 = vunpack.c.l.b16 %v310
    %v969 = vunpack.c.h.b16 %v310
    %v970 = vunpack.c.l.b16 %v311
    %v971 = vunpack.c.h.b16 %v311
    %v972 = vunpack.c.l.b16 %v312
    %v973 = vunpack.c.h.b16 %v312
    %v974 = vunpack.c.l.b16 %v313
    %v975 = vunpack.c.h.b16 %v313
    %v976 = vunpack.c.l.b16 %v314
    %v977 = vunpack.c.h.b16 %v314
    %v978 = vunpack.c.l.b16 %v315
    %v979 = vunpack.c.h.b16 %v315
    %v980 = vunpack.c.l.b16 %v316
    %v981 = vunpack.c.h.b16 %v316
    %v982 = vunpack.c.l.b16 %v317
    %v983 = vunpack.c.h.b16 %v317
    %v984 = vunpack.c.l.b16 %v318
    %v985 = vunpack.c.h.b16 %v318
    %v986 = vunpack.c.l.b16 %v319
    %v987 = vunpack.c.h.b16 %v319
    %v988 = vunpack.c.l.b16 %v320
    %v989 = vunpack.c.h.b16 %v320
    %v990 = vunpack.c.l.b16 %v321
    %v991 = vunpack.c.h.b16 %v321
    %v992 = vunpack.c.l.b16 %v322
    %v993 = vunpack.c.h.b16 %v322
    %v994 = vunpack.c.l.b16 %v323
    %v995 = vunpack.c.h.b16 %v323
    %v996 = vunpack.c.l.b16 %v324
    %v997 = vunpack.c.h.b16 %v324
    %v998 = vunpack.c.l.b16 %v325
    %v999 = vunpack.c.h.b16 %v325
    %v1000 = vunpack.c.l.b16 %v326
    %v1001 = vunpack.c.h.b16 %v326
    %v1002 = vunpack.c.l.b16 %v327
    %v1003 = vunpack.c.h.b16 %v327
    %v1004 = vunpack.c.l.b16 %v328
    %v1005 = vunpack.c.h.b16 %v328
    %v1006 = vunpack.c.l.b16 %v329
    %v1007 = vunpack.c.h.b16 %v329
    %v1008 = vunpack.c.l.b16 %v330
    %v1009 = vunpack.c.h.b16 %v330
    %v1010 = vunpack.c.l.b16 %v331
    %v1011 = vunpack.c.h.b16 %v331
    %v1012 = vunpack.c.l.b16 %v332
    %v1013 = vunpack.c.h.b16 %v332
    %v1014 = vunpack.c.l.b16 %v333
    %v1015 = vunpack.c.h.b16 %v333
    %v1016 = vunpack.c.l.b16 %v334
    %v1017 = vunpack.c.h.b16 %v334
    %v1018 = vunpack.c.l.b16 %v335
    %v1019 = vunpack.c.h.b16 %v335
    %v1020 = vunpack.c.l.b16 %v336
    %v1021 = vunpack.c.h.b16 %v336
    %v1022 = vunpack.c.l.b16 %v337
    %v1023 = vunpack.c.h.b16 %v337
    %v1024 = vunpack.c.l.b16 %v338
    %v1025 = vunpack.c.h.b16 %v338
    %v1026 = vunpack.c.l.b16 %v339
    %v1027 = vunpack.c.h.b16 %v339
    %v1028 = vunpack.c.l.b16 %v340
    %v1029 = vunpack.c.h.b16 %v340
    %v1030 = vunpack.c.l.b16 %v341
    %v1031 = vunpack.c.h.b16 %v341
    %v1032 = vunpack.c.l.b16 %v342
    %v1033 = vunpack.c.h.b16 %v342
    %v1034 = vunpack.c.l.b16 %v343
    %v1035 = vunpack.c.h.b16 %v343
    %v1036 = vunpack.c.l.b16 %v344
    %v1037 = vunpack.c.h.b16 %v344
    %v1038 = vunpack.c.l.b16 %v345
    %v1039 = vunpack.c.h.b16 %v345
    %v1040 = vunpack.c.l.b16 %v346
    %v1041 = vunpack.c.h.b16 %v346
    %v1042 = vunpack.c.l.b16 %v347
    %v1043 = vunpack.c.h.b16 %v347
    %v1044 = vunpack.c.l.b16 %v348
    %v1045 = vunpack.c.h.b16 %v348
    %v1046 = vunpack.c.l.b16 %v349
    %v1047 = vunpack.c.h.b16 %v349
    %v1048 = vunpack.c.l.b16 %v350
    %v1049 = vunpack.c.h.b16 %v350
    %v1050 = vunpack.c.l.b16 %v351
    %v1051 = vunpack.c.h.b16 %v351
    %v1052 = vunpack.c.l.b16 %v352
    %v1053 = vunpack.c.h.b16 %v352
    %v1054 = vunpack.c.l.b16 %v353
    %v1055 = vunpack.c.h.b16 %v353
    %v1056 = vunpack.c.l.b16 %v354
    %v1057 = vunpack.c.h.b16 %v354
    %v1058 = vunpack.c.l.b16 %v355
    %v1059 = vunpack.c.h.b16 %v355
    %v1060 = vunpack.c.l.b16 %v356
    %v1061 = vunpack.c.h.b16 %v356
    %v1062 = vunpack.c.l.b16 %v357
    %v1063 = vunpack.c.h.b16 %v357
    %v1064 = vunpack.c.l.b16 %v358
    %v1065 = vunpack.c.h.b16 %v358
    %v1066 = vunpack.c.l.b16 %v359
    %v1067 = vunpack.c.h.b16 %v359
    %v1068 = vunpack.c.l.b16 %v360
    %v1069 = vunpack.c.h.b16 %v360
    %v1070 = vunpack.c.l.b16 %v361
    %v1071 = vunpack.c.h.b16 %v361
    %v1072 = vunpack.c.l.b16 %v362
    %v1073 = vunpack.c.h.b16 %v362
    %v1074 = vunpack.c.l.b16 %v363
    %v1075 = vunpack.c.h.b16 %v363
    %v1076 = vunpack.c.l.b16 %v364
    %v1077 = vunpack.c.h.b16 %v364
    %v1078 = vunpack.c.l.b16 %v365
    %v1079 = vunpack.c.h.b16 %v365
    %v1080 = vunpack.c.l.b16 %v366
    %v1081 = vunpack.c.h.b16 %v366
    %v1082 = vunpack.c.l.b16 %v367
    %v1083 = vunpack.c.h.b16 %v367
    %v1084 = vunpack.c.l.b16 %v368
    %v1085 = vunpack.c.h.b16 %v368
    %v1086 = vunpack.c.l.b16 %v369
    %v1087 = vunpack.c.h.b16 %v369
    %v1088 = vunpack.c.l.b16 %v370
    %v1089 = vunpack.c.h.b16 %v370
    %v1090 = vpack.c.b16 %v646, %v642
    %v1091 = vpack.c.b16 %v647, %v643
    %v1092 = vpack.c.b16 %v648, %v644
    %v1093 = vpack.c.b16 %v649, %v645
    %v1094 = vpack.c.b16 %v654, %v650
    %v1095 = vpack.c.b16 %v655, %v651
    %v1096 = vpack.c.b16 %v656, %v652
    %v1097 = vpack.c.b16 %v657, %v653
    %v1098 = vpack.c.b16 %v662, %v658
    %v1099 = vpack.c.b16 %v663, %v659
    %v1100 = vpack.c.b16 %v664, %v660
    %v1101 = vpack.c.b16 %v665, %v661
    %v1102 = vpack.c.b16 %v670, %v666
    %v1103 = vpack.c.b16 %v671, %v667
    %v1104 = vpack.c.b16 %v672, %v668
    %v1105 = vpack.c.b16 %v673, %v669
    %v1106 = vpack.c.b16 %v678, %v674
    %v1107 = vpack.c.b16 %v679, %v675
    %v1108 = vpack.c.b16 %v680, %v676
    %v1109 = vpack.c.b16 %v681, %v677
    %v1110 = vpack.c.b16 %v686, %v682
    %v1111 = vpack.c.b16 %v687, %v683
    %v1112 = vpack.c.b16 %v688, %v684
    %v1113 = vpack.c.b16 %v689, %v685
    %v1114 = vpack.c.b16 %v694, %v690
    %v1115 = vpack.c.b16 %v695, %v691
    %v1116 = vpack.c.b16 %v696, %v692
    %v1117 = vpack.c.b16 %v697, %v693
    %v1118 = vpack.c.b16 %v702, %v698
    %v1119 = vpack.c.b16 %v703, %v699
    %v1120 = vpack.c.b16 %v704, %v700
    %v1121 = vpack.c.b16 %v705, %v701
    %v1122 = vpack.c.b16 %v710, %v706
    %v1123 = vpack.c.b16 %v711, %v707
    %v1124 = vpack.c.b16 %v712, %v708
    %v1125 = vpack.c.b16 %v713, %v709
    %v1126 = vpack.c.b16 %v718, %v714
    %v1127 = vpack.c.b16 %v719, %v715
    %v1128 = vpack.c.b16 %v720, %v716
    %v1129 = vpack.c.b16 %v721, %v717
    %v1130 = vpack.c.b16 %v726, %v722
    %v1131 = vpack.c.b16 %v727, %v723
    %v1132 = vpack.c.b16 %v728, %v724
    %v1133 = vpack.c.b16 %v729, %v725
    %v1134 = vpack.c.b16 %v734, %v730
    %v1135 = vpack.c.b16 %v735, %v731
    %v1136 = vpack.c.b16 %v736, %v732
    %v1137 = vpack.c.b16 %v737, %v733
    %v1138 = vpack.c.b16 %v742, %v738
    %v1139 = vpack.c.b16 %v743, %v739
    %v1140 = vpack.c.b16 %v744, %v740
    %v1141 = vpack.c.b16 %v745, %v741
    %v1142 = vpack.c.b16 %v750, %v746
    %v1143 = vpack.c.b16 %v751, %v747
    %v1144 = vpack.c.b16 %v752, %v748
    %v1145 = vpack.c.b16 %v753, %v749
    %v1146 = vpack.c.b16 %v758, %v754
    %v1147 = vpack.c.b16 %v759, %v755
    %v1148 = vpack.c.b16 %v760, %v756
    %v1149 = vpack.c.b16 %v761, %v757
    %v1150 = vpack.c.b16 %v766, %v762
    %v1151 = vpack.c.b16 %v767, %v763
    %v1152 = vpack.c.b16 %v768, %v764
    %v1153 = vpack.c.b16 %v769, %v765
    %v1154 = vpack.c.b16 %v774, %v770
    %v1155 = vpack.c.b16 %v775, %v771
    %v1156 = vpack.c.b16 %v776, %v772
    %v1157 = vpack.c.b16 %v777, %v773
    %v1158 = vpack.c.b16 %v782, %v778
    %v1159 = vpack.c.b16 %v783, %v779
    %v1160 = vpack.c.b16 %v784, %v780
    %v1161 = vpack.c.b16 %v785, %v781
    %v1162 = vpack.c.b16 %v790, %v786
    %v1163 = vpack.c.b16 %v791, %v787
    %v1164 = vpack.c.b16 %v792, %v788
    %v1165 = vpack.c.b16 %v793, %v789
    %v1166 = vpack.c.b16 %v798, %v794
    %v1167 = vpack.c.b16 %v799, %v795
    %v1168 = vpack.c.b16 %v800, %v796
    %v1169 = vpack.c.b16 %v801, %v797
    %v1170 = vpack.c.b16 %v806, %v802
    %v1171 = vpack.c.b16 %v807, %v803
    %v1172 = vpack.c.b16 %v808, %v804
    %v1173 = vpack.c.b16 %v809, %v805
    %v1174 = vpack.c.b16 %v814, %v810
    %v1175 = vpack.c.b16 %v815, %v811
    %v1176 = vpack.c.b16 %v816, %v812
    %v1177 = vpack.c.b16 %v817, %v813
    %v1178 = vpack.c.b16 %v822, %v818
    %v1179 = vpack.c.b16 %v823, %v819
    %v1180 = vpack.c.b16 %v824, %v820
    %v1181 = vpack.c.b16 %v825, %v821
    %v1182 = vpack.c.b16 %v830, %v826
    %v1183 = vpack.c.b16 %v831, %v827
    %v1184 = vpack.c.b16 %v832, %v828
    %v1185 = vpack.c.b16 %v833, %v829
    %v1186 = vpack.c.b16 %v838, %v834
    %v1187 = vpack.c.b16 %v839, %v835
    %v1188 = vpack.c.b16 %v840, %v836
    %v1189 = vpack.c.b16 %v841, %v837
    %v1190 = vpack.c.b16 %v846, %v842
    %v1191 = vpack.c.b16 %v847, %v843
    %v1192 = vpack.c.b16 %v848, %v844
    %v1193 = vpack.c.b16 %v849, %v845
    %v1194 = vpack.c.b16 %v854, %v850
    %v1195 = vpack.c.b16 %v855, %v851
    %v1196 = vpack.c.b16 %v856, %v852
    %v1197 = vpack.c.b16 %v857, %v853
    %v1198 = vpack.c.b16 %v862, %v858
    %v1199 = vpack.c.b16 %v863, %v859
    %v1200 = vpack.c.b16 %v864, %v860
    %v1201 = vpack.c.b16 %v865, %v861
    %v1202 = vpack.c.b16 %v870, %v866
    %v1203 = vpack.c.b16 %v871, %v867
    %v1204 = vpack.c.b16 %v872, %v868
    %v1205 = vpack.c.b16 %v873, %v869
    %v1206 = vpack.c.b16 %v878, %v874
    %v1207 = vpack.c.b16 %v879, %v875
    %v1208 = vpack.c.b16 %v880, %v876
    %v1209 = vpack.c.b16 %v881, %v877
    %v1210 = vpack.c.b16 %v886, %v882
    %v1211 = vpack.c.b16 %v887, %v883
    %v1212 = vpack.c.b16 %v888, %v884
    %v1213 = vpack.c.b16 %v889, %v885
    %v1214 = vpack.c.b16 %v894, %v890
    %v1215 = vpack.c.b16 %v895, %v891
    %v1216 = vpack.c.b16 %v896, %v892
    %v1217 = vpack.c.b16 %v897, %v893
    %v1218 = vpack.c.b16 %v902, %v898
    %v1219 = vpack.c.b16 %v903, %v899
    %v1220 = vpack.c.b16 %v904, %v900
    %v1221 = vpack.c.b16 %v905, %v901
    %v1222 = vpack.c.b16 %v910, %v906
    %v1223 = vpack.c.b16 %v911, %v907
    %v1224 = vpack.c.b16 %v912, %v908
    %v1225 = vpack.c.b16 %v913, %v909
    %v1226 = vpack.c.b16 %v918, %v914
    %v1227 = vpack.c.b16 %v919, %v915
    %v1228 = vpack.c.b16 %v920, %v916
    %v1229 = vpack.c.b16 %v921, %v917
    %v1230 = vpack.c.b16 %v926, %v922
    %v1231 = vpack.c.b16 %v927, %v923
    %v1232 = vpack.c.b16 %v928, %v924
    %v1233 = vpack.c.b16 %v929, %v925
    %v1234 = vpack.c.b16 %v934, %v930
    %v1235 = vpack.c.b16 %v935, %v931
    %v1236 = vpack.c.b16 %v936, %v932
    %v1237 = vpack.c.b16 %v937, %v933
    %v1238 = vpack.c.b16 %v942, %v938
    %v1239 = vpack.c.b16 %v943, %v939
    %v1240 = vpack.c.b16 %v944, %v940
    %v1241 = vpack.c.b16 %v945, %v941
    %v1242 = vpack.c.b16 %v950, %v946
    %v1243 = vpack.c.b16 %v951, %v947
    %v1244 = vpack.c.b16 %v952, %v948
    %v1245 = vpack.c.b16 %v953, %v949
    %v1246 = vpack.c.b16 %v958, %v954
    %v1247 = vpack.c.b16 %v959, %v955
    %v1248 = vpack.c.b16 %v960, %v956
    %v1249 = vpack.c.b16 %v961, %v957
    %v1250 = vpack.c.b16 %v966, %v962
    %v1251 = vpack.c.b16 %v967, %v963
    %v1252 = vpack.c.b16 %v968, %v964
    %v1253 = vpack.c.b16 %v969, %v965
    %v1254 = vpack.c.b16 %v974, %v970
    %v1255 = vpack.c.b16 %v975, %v971
    %v1256 = vpack.c.b16 %v976, %v972
    %v1257 = vpack.c.b16 %v977, %v973
    %v1258 = vpack.c.b16 %v982, %v978
    %v1259 = vpack.c.b16 %v983, %v979
    %v1260 = vpack.c.b16 %v984, %v980
    %v1261 = vpack.c.b16 %v985, %v981
    %v1262 = vpack.c.b16 %v990, %v986
    %v1263 = vpack.c.b16 %v991, %v987
    %v1264 = vpack.c.b16 %v992, %v988
    %v1265 = vpack.c.b16 %v993, %v989
    %v1266 = vpack.c.b16 %v998, %v994
    %v1267 = vpack.c.b16 %v999, %v995
    %v1268 = vpack.c.b16 %v1000, %v996
    %v1269 = vpack.c.b16 %v1001, %v997
    %v1270 = vpack.c.b16 %v1006, %v1002
    %v1271 = vpack.c.b16 %v1007, %v1003
    %v1272 = vpack.c.b16 %v1008, %v1004
    %v1273 = vpack.c.b16 %v1009, %v1005
    %v1274 = vpack.c.b16 %v1014, %v1010
    %v1275 = vpack.c.b16 %v1015, %v1011
    %v1276 = vpack.c.b16 %v1016, %v1012
    %v1277 = vpack.c.b16 %v1017, %v1013
    %v1278 = vpack.c.b16 %v1022, %v1018
    %v1279 = vpack.c.b16 %v1023, %v1019
    %v1280 = vpack.c.b16 %v1024, %v1020
    %v1281 = vpack.c.b16 %v1025, %v1021
    %v1282 = vpack.c.b16 %v1030, %v1026
    %v1283 = vpack.c.b16 %v1031, %v1027
    %v1284 = vpack.c.b16 %v1032, %v1028
    %v1285 = vpack.c.b16 %v1033, %v1029
    %v1286 = vpack.c.b16 %v1038, %v1034
    %v1287 = vpack.c.b16 %v1039, %v1035
    %v1288 = vpack.c.b16 %v1040, %v1036
    %v1289 = vpack.c.b16 %v1041, %v1037
    %v1290 = vpack.c.b16 %v1046, %v1042
    %v1291 = vpack.c.b16 %v1047, %v1043
    %v1292 = vpack.c.b16 %v1048, %v1044
    %v1293 = vpack.c.b16 %v1049, %v1045
    %v1294 = vpack.c.b16 %v1054, %v1050
    %v1295 = vpack.c.b16 %v1055, %v1051
    %v1296 = vpack.c.b16 %v1056, %v1052
    %v1297 = vpack.c.b16 %v1057, %v1053
    %v1298 = vpack.c.b16 %v1062, %v1058
    %v1299 = vpack.c.b16 %v1063, %v1059
    %v1300 = vpack.c.b16 %v1064, %v1060
    %v1301 = vpack.c.b16 %v1065, %v1061
    %v1302 = vpack.c.b16 %v1070, %v1066
    %v1303 = vpack.c.b16 %v1071, %v1067
    %v1304 = vpack.c.b16 %v1072, %v1068
    %v1305 = vpack.c.b16 %v1073, %v1069
    %v1306 = vpack.c.b16 %v1078, %v1074
    %v1307 = vpack.c.b16 %v1079, %v1075
    %v1308 = vpack.c.b16 %v1080, %v1076
    %v1309 = vpack.c.b16 %v1081, %v1077
    %v1310 = vpack.c.b16 %v1086, %v1082
    %v1311 = vpack.c.b16 %v1087, %v1083
    %v1312 = vpack.c.b16 %v1088, %v1084
    %v1313 = vpack.c.b16 %v1089, %v1085
    %1538 = vmatprep.subr.bf16.mxu0 %v1091
    %1539 = vmatpush1.bf16.msra.mxu0 %v1090
    %1540 = vmatprep.subr.bf16.mxu0 %v1095
    %1541 = vmatpush1.bf16.msra.mxu0 %v1094
    %1542 = vmatprep.subr.bf16.mxu0 %v1099
    %1543 = vmatpush1.bf16.msra.mxu0 %v1098
    %1544 = vmatprep.subr.bf16.mxu0 %v1103
    %1545 = vmatpush1.bf16.msra.mxu0 %v1102
    %1546 = vmatprep.subr.bf16.mxu0 %v1107
    %1547 = vmatpush1.bf16.msra.mxu0 %v1106
    %1548 = vmatprep.subr.bf16.mxu0 %v1111
    %1549 = vmatpush1.bf16.msra.mxu0 %v1110
    %1550 = vmatprep.subr.bf16.mxu0 %v1115
    %1551 = vmatpush1.bf16.msra.mxu0 %v1114
    %1552 = vmatprep.subr.bf16.mxu0 %v1119
    %1553 = vmatpush1.bf16.msra.mxu0 %v1118
    %1554 = vmatprep.subr.bf16.mxu0 %v1123
    %1555 = vmatpush1.bf16.msra.mxu0 %v1122
    %1556 = vmatprep.subr.bf16.mxu0 %v1127
    %1557 = vmatpush1.bf16.msra.mxu0 %v1126
    %1558 = vmatprep.subr.bf16.mxu0 %v1131
    %1559 = vmatpush1.bf16.msra.mxu0 %v1130
    %1560 = vmatprep.subr.bf16.mxu0 %v1135
    %1561 = vmatpush1.bf16.msra.mxu0 %v1134
    %1562 = vmatprep.subr.bf16.mxu0 %v1139
    %1563 = vmatpush1.bf16.msra.mxu0 %v1138
    %1564 = vmatprep.subr.bf16.mxu0 %v1143
    %1565 = vmatpush1.bf16.msra.mxu0 %v1142
    %1566 = vmatprep.subr.bf16.mxu0 %v1147
    %1567 = vmatpush1.bf16.msra.mxu0 %v1146
    %1568 = vmatprep.subr.bf16.mxu0 %v1151
    %1569 = vmatpush1.bf16.msra.mxu0 %v1150
    %1570 = vmatprep.mubr.bf16.mxu0 %v405
    %1571 = vmatmul.mubr.bf16.gmra.mrb[0].mxu0 %v404
    %v1572 = vpop.f32.mrb[0].mxu0
    %v1573 = vadd.f32 %v376, %v1572
    %v1574 = vpop.f32.mrb[0].mxu0
    %v1575 = vadd.f32 %v380, %v1574
    %v1576 = vpop.f32.mrb[0].mxu0
    %v1577 = vpop.f32.mrb[0].mxu0
    %1578 = vdwg.mxu0
    %1579 = vmatprep.subr.bf16.mxu0 %v1155
    %1580 = vmatpush1.bf16.msra.mxu0 %v1154
    %1581 = vmatprep.subr.bf16.mxu0 %v1159
    %1582 = vmatpush1.bf16.msra.mxu0 %v1158
    %1583 = vmatprep.subr.bf16.mxu0 %v1163
    %1584 = vmatpush1.bf16.msra.mxu0 %v1162
    %1585 = vmatprep.subr.bf16.mxu0 %v1167
    %1586 = vmatpush1.bf16.msra.mxu0 %v1166
    %1587 = vmatprep.subr.bf16.mxu0 %v1171
    %1588 = vmatpush1.bf16.msra.mxu0 %v1170
    %1589 = vmatprep.subr.bf16.mxu0 %v1175
    %1590 = vmatpush1.bf16.msra.mxu0 %v1174
    %1591 = vmatprep.subr.bf16.mxu0 %v1179
    %1592 = vmatpush1.bf16.msra.mxu0 %v1178
    %1593 = vmatprep.subr.bf16.mxu0 %v1183
    %1594 = vmatpush1.bf16.msra.mxu0 %v1182
    %1595 = vmatprep.subr.bf16.mxu0 %v1187
    %1596 = vmatpush1.bf16.msra.mxu0 %v1186
    %1597 = vmatprep.subr.bf16.mxu0 %v1191
    %1598 = vmatpush1.bf16.msra.mxu0 %v1190
    %1599 = vmatprep.subr.bf16.mxu0 %v1195
    %1600 = vmatpush1.bf16.msra.mxu0 %v1194
    %1601 = vmatprep.subr.bf16.mxu0 %v1199
    %1602 = vmatpush1.bf16.msra.mxu0 %v1198
    %1603 = vmatprep.subr.bf16.mxu0 %v1203
    %1604 = vmatpush1.bf16.msra.mxu0 %v1202
    %1605 = vmatprep.subr.bf16.mxu0 %v1207
    %1606 = vmatpush1.bf16.msra.mxu0 %v1206
    %1607 = vmatprep.subr.bf16.mxu0 %v1211
    %1608 = vmatpush1.bf16.msra.mxu0 %v1210
    %1609 = vmatprep.subr.bf16.mxu0 %v1215
    %1610 = vmatpush1.bf16.msra.mxu0 %v1214
    %1611 = vmatprep.mubr.bf16.mxu0 %v407
    %1612 = vmatmul.mubr.bf16.gmra.mrb[0].mxu0 %v406
    %v1613 = vpop.f32.mrb[0].mxu0
    %v1614 = vadd.f32 %v1573, %v1613
    %v1615 = vpop.f32.mrb[0].mxu0
    %v1616 = vadd.f32 %v1575, %v1615
    %v1617 = vpop.f32.mrb[0].mxu0
    %v1618 = vpop.f32.mrb[0].mxu0
    %1619 = vdwg.mxu0
    %1620 = vmatprep.subr.bf16.mxu0 %v1219
    %1621 = vmatpush1.bf16.msra.mxu0 %v1218
    %1622 = vmatprep.subr.bf16.mxu0 %v1223
    %1623 = vmatpush1.bf16.msra.mxu0 %v1222
    %1624 = vmatprep.subr.bf16.mxu0 %v1227
    %1625 = vmatpush1.bf16.msra.mxu0 %v1226
    %1626 = vmatprep.subr.bf16.mxu0 %v1231
    %1627 = vmatpush1.bf16.msra.mxu0 %v1230
    %1628 = vmatprep.subr.bf16.mxu0 %v1235
    %1629 = vmatpush1.bf16.msra.mxu0 %v1234
    %1630 = vmatprep.subr.bf16.mxu0 %v1239
    %1631 = vmatpush1.bf16.msra.mxu0 %v1238
    %1632 = vmatprep.subr.bf16.mxu0 %v1243
    %1633 = vmatpush1.bf16.msra.mxu0 %v1242
    %1634 = vmatprep.subr.bf16.mxu0 %v1247
    %1635 = vmatpush1.bf16.msra.mxu0 %v1246
    %1636 = vmatprep.subr.bf16.mxu0 %v1251
    %1637 = vmatpush1.bf16.msra.mxu0 %v1250
    %1638 = vmatprep.subr.bf16.mxu0 %v1255
    %1639 = vmatpush1.bf16.msra.mxu0 %v1254
    %1640 = vmatprep.subr.bf16.mxu0 %v1259
    %1641 = vmatpush1.bf16.msra.mxu0 %v1258
    %1642 = vmatprep.subr.bf16.mxu0 %v1263
    %1643 = vmatpush1.bf16.msra.mxu0 %v1262
    %1644 = vmatprep.subr.bf16.mxu0 %v1267
    %1645 = vmatpush1.bf16.msra.mxu0 %v1266
    %1646 = vmatprep.subr.bf16.mxu0 %v1271
    %1647 = vmatpush1.bf16.msra.mxu0 %v1270
    %1648 = vmatprep.subr.bf16.mxu0 %v1275
    %1649 = vmatpush1.bf16.msra.mxu0 %v1274
    %1650 = vmatprep.subr.bf16.mxu0 %v1279
    %1651 = vmatpush1.bf16.msra.mxu0 %v1278
    %1652 = vmatprep.mubr.bf16.mxu0 %v409
    %1653 = vmatmul.mubr.bf16.gmra.mrb[0].mxu0 %v408
    %v1654 = vpop.f32.mrb[0].mxu0
    %v1655 = vadd.f32 %v1614, %v1654
    %v1656 = vpop.f32.mrb[0].mxu0
    %v1657 = vadd.f32 %v1616, %v1656
    %v1658 = vpop.f32.mrb[0].mxu0
    %v1659 = vpop.f32.mrb[0].mxu0
    %1660 = vdwg.mxu0
    %1661 = vmatprep.subr.bf16.mxu0 %v1283
    %1662 = vmatpush1.bf16.msra.mxu0 %v1282
    %1663 = vmatprep.subr.bf16.mxu0 %v1287
    %1664 = vmatpush1.bf16.msra.mxu0 %v1286
    %1665 = vmatprep.subr.bf16.mxu0 %v1291
    %1666 = vmatpush1.bf16.msra.mxu0 %v1290
    %1667 = vmatprep.subr.bf16.mxu0 %v1295
    %1668 = vmatpush1.bf16.msra.mxu0 %v1294
    %1669 = vmatprep.subr.bf16.mxu0 %v1299
    %1670 = vmatpush1.bf16.msra.mxu0 %v1298
    %1671 = vmatprep.subr.bf16.mxu0 %v1303
    %1672 = vmatpush1.bf16.msra.mxu0 %v1302
    %1673 = vmatprep.subr.bf16.mxu0 %v1307
    %1674 = vmatpush1.bf16.msra.mxu0 %v1306
    %1675 = vmatprep.subr.bf16.mxu0 %v1311
    %1676 = vmatpush1.bf16.msra.mxu0 %v1310
    %1677 = vmatprep.subr.bf16.mxu0 0
    %1678 = vmatpush1.bf16.msra.mxu0 0
    %1679 = vmatprep.subr.bf16.mxu0 0
    %1680 = vmatpush1.bf16.msra.mxu0 0
    %1681 = vmatprep.subr.bf16.mxu0 0
    %1682 = vmatpush1.bf16.msra.mxu0 0
    %1683 = vmatprep.subr.bf16.mxu0 0
    %1684 = vmatpush1.bf16.msra.mxu0 0
    %1685 = vmatprep.subr.bf16.mxu0 0
    %1686 = vmatpush1.bf16.msra.mxu0 0
    %1687 = vmatprep.subr.bf16.mxu0 0
    %1688 = vmatpush1.bf16.msra.mxu0 0
    %1689 = vmatprep.subr.bf16.mxu0 0
    %1690 = vmatpush1.bf16.msra.mxu0 0
    %1691 = vmatprep.subr.bf16.mxu0 0
    %1692 = vmatpush1.bf16.msra.mxu0 0
    %1693 = vmatprep.mubr.bf16.mxu0 0
    %1694 = vmatmul.mubr.bf16.gmra.mrb[0].mxu0 %v410
    %v1695 = vpop.f32.mrb[0].mxu0
    %v1696 = vadd.f32 %v1655, %v1695
    %v1697 = vpop.f32.mrb[0].mxu0
    %v1698 = vadd.f32 %v1657, %v1697
    %v1699 = vpop.f32.mrb[0].mxu0
    %v1700 = vpop.f32.mrb[0].mxu0
    %1701 = vdwg.mxu0
    %1702 = vmatprep.subr.bf16.mxu0 %v1093
    %1703 = vmatpush1.bf16.msra.mxu0 %v1092
    %1704 = vmatprep.subr.bf16.mxu0 %v1097
    %1705 = vmatpush1.bf16.msra.mxu0 %v1096
    %1706 = vmatprep.subr.bf16.mxu0 %v1101
    %1707 = vmatpush1.bf16.msra.mxu0 %v1100
    %1708 = vmatprep.subr.bf16.mxu0 %v1105
    %1709 = vmatpush1.bf16.msra.mxu0 %v1104
    %1710 = vmatprep.subr.bf16.mxu0 %v1109
    %1711 = vmatpush1.bf16.msra.mxu0 %v1108
    %1712 = vmatprep.subr.bf16.mxu0 %v1113
    %1713 = vmatpush1.bf16.msra.mxu0 %v1112
    %1714 = vmatprep.subr.bf16.mxu0 %v1117
    %1715 = vmatpush1.bf16.msra.mxu0 %v1116
    %1716 = vmatprep.subr.bf16.mxu0 %v1121
    %1717 = vmatpush1.bf16.msra.mxu0 %v1120
    %1718 = vmatprep.subr.bf16.mxu0 %v1125
    %1719 = vmatpush1.bf16.msra.mxu0 %v1124
    %1720 = vmatprep.subr.bf16.mxu0 %v1129
    %1721 = vmatpush1.bf16.msra.mxu0 %v1128
    %1722 = vmatprep.subr.bf16.mxu0 %v1133
    %1723 = vmatpush1.bf16.msra.mxu0 %v1132
    %1724 = vmatprep.subr.bf16.mxu0 %v1137
    %1725 = vmatpush1.bf16.msra.mxu0 %v1136
    %1726 = vmatprep.subr.bf16.mxu0 %v1141
    %1727 = vmatpush1.bf16.msra.mxu0 %v1140
    %1728 = vmatprep.subr.bf16.mxu0 %v1145
    %1729 = vmatpush1.bf16.msra.mxu0 %v1144
    %1730 = vmatprep.subr.bf16.mxu0 %v1149
    %1731 = vmatpush1.bf16.msra.mxu0 %v1148
    %1732 = vmatprep.subr.bf16.mxu0 %v1153
    %1733 = vmatpush1.bf16.msra.mxu0 %v1152
    %1734 = vmatprep.mubr.bf16.mxu0 %v405
    %1735 = vmatmul.mubr.bf16.gmra.mrb[0].mxu0 %v404
    %v1736 = vpop.f32.mrb[0].mxu0
    %v1737 = vadd.f32 %v384, %v1736
    %v1738 = vpop.f32.mrb[0].mxu0
    %v1739 = vadd.f32 %v388, %v1738
    %v1740 = vpop.f32.mrb[0].mxu0
    %v1741 = vpop.f32.mrb[0].mxu0
    %1742 = vdwg.mxu0
    %1743 = vmatprep.subr.bf16.mxu0 %v1157
    %1744 = vmatpush1.bf16.msra.mxu0 %v1156
    %1745 = vmatprep.subr.bf16.mxu0 %v1161
    %1746 = vmatpush1.bf16.msra.mxu0 %v1160
    %1747 = vmatprep.subr.bf16.mxu0 %v1165
    %1748 = vmatpush1.bf16.msra.mxu0 %v1164
    %1749 = vmatprep.subr.bf16.mxu0 %v1169
    %1750 = vmatpush1.bf16.msra.mxu0 %v1168
    %1751 = vmatprep.subr.bf16.mxu0 %v1173
    %1752 = vmatpush1.bf16.msra.mxu0 %v1172
    %1753 = vmatprep.subr.bf16.mxu0 %v1177
    %1754 = vmatpush1.bf16.msra.mxu0 %v1176
    %1755 = vmatprep.subr.bf16.mxu0 %v1181
    %1756 = vmatpush1.bf16.msra.mxu0 %v1180
    %1757 = vmatprep.subr.bf16.mxu0 %v1185
    %1758 = vmatpush1.bf16.msra.mxu0 %v1184
    %1759 = vmatprep.subr.bf16.mxu0 %v1189
    %1760 = vmatpush1.bf16.msra.mxu0 %v1188
    %1761 = vmatprep.subr.bf16.mxu0 %v1193
    %1762 = vmatpush1.bf16.msra.mxu0 %v1192
    %1763 = vmatprep.subr.bf16.mxu0 %v1197
    %1764 = vmatpush1.bf16.msra.mxu0 %v1196
    %1765 = vmatprep.subr.bf16.mxu0 %v1201
    %1766 = vmatpush1.bf16.msra.mxu0 %v1200
    %1767 = vmatprep.subr.bf16.mxu0 %v1205
    %1768 = vmatpush1.bf16.msra.mxu0 %v1204
    %1769 = vmatprep.subr.bf16.mxu0 %v1209
    %1770 = vmatpush1.bf16.msra.mxu0 %v1208
    %1771 = vmatprep.subr.bf16.mxu0 %v1213
    %1772 = vmatpush1.bf16.msra.mxu0 %v1212
    %1773 = vmatprep.subr.bf16.mxu0 %v1217
    %1774 = vmatpush1.bf16.msra.mxu0 %v1216
    %1775 = vmatprep.mubr.bf16.mxu0 %v407
    %1776 = vmatmul.mubr.bf16.gmra.mrb[0].mxu0 %v406
    %v1777 = vpop.f32.mrb[0].mxu0
    %v1778 = vadd.f32 %v1737, %v1777
    %v1779 = vpop.f32.mrb[0].mxu0
    %v1780 = vadd.f32 %v1739, %v1779
    %v1781 = vpop.f32.mrb[0].mxu0
    %v1782 = vpop.f32.mrb[0].mxu0
    %1783 = vdwg.mxu0
    %1784 = vmatprep.subr.bf16.mxu0 %v1221
    %1785 = vmatpush1.bf16.msra.mxu0 %v1220
    %1786 = vmatprep.subr.bf16.mxu0 %v1225
    %1787 = vmatpush1.bf16.msra.mxu0 %v1224
    %1788 = vmatprep.subr.bf16.mxu0 %v1229
    %1789 = vmatpush1.bf16.msra.mxu0 %v1228
    %1790 = vmatprep.subr.bf16.mxu0 %v1233
    %1791 = vmatpush1.bf16.msra.mxu0 %v1232
    %1792 = vmatprep.subr.bf16.mxu0 %v1237
    %1793 = vmatpush1.bf16.msra.mxu0 %v1236
    %1794 = vmatprep.subr.bf16.mxu0 %v1241
    %1795 = vmatpush1.bf16.msra.mxu0 %v1240
    %1796 = vmatprep.subr.bf16.mxu0 %v1245
    %1797 = vmatpush1.bf16.msra.mxu0 %v1244
    %1798 = vmatprep.subr.bf16.mxu0 %v1249
    %1799 = vmatpush1.bf16.msra.mxu0 %v1248
    %1800 = vmatprep.subr.bf16.mxu0 %v1253
    %1801 = vmatpush1.bf16.msra.mxu0 %v1252
    %1802 = vmatprep.subr.bf16.mxu0 %v1257
    %1803 = vmatpush1.bf16.msra.mxu0 %v1256
    %1804 = vmatprep.subr.bf16.mxu0 %v1261
    %1805 = vmatpush1.bf16.msra.mxu0 %v1260
    %1806 = vmatprep.subr.bf16.mxu0 %v1265
    %1807 = vmatpush1.bf16.msra.mxu0 %v1264
    %1808 = vmatprep.subr.bf16.mxu0 %v1269
    %1809 = vmatpush1.bf16.msra.mxu0 %v1268
    %1810 = vmatprep.subr.bf16.mxu0 %v1273
    %1811 = vmatpush1.bf16.msra.mxu0 %v1272
    %1812 = vmatprep.subr.bf16.mxu0 %v1277
    %1813 = vmatpush1.bf16.msra.mxu0 %v1276
    %1814 = vmatprep.subr.bf16.mxu0 %v1281
    %1815 = vmatpush1.bf16.msra.mxu0 %v1280
    %1816 = vmatprep.mubr.bf16.mxu0 %v409
    %1817 = vmatmul.mubr.bf16.gmra.mrb[0].mxu0 %v408
    %v1818 = vpop.f32.mrb[0].mxu0
    %v1819 = vadd.f32 %v1778, %v1818
    %v1820 = vpop.f32.mrb[0].mxu0
    %v1821 = vadd.f32 %v1780, %v1820
    %v1822 = vpop.f32.mrb[0].mxu0
    %v1823 = vpop.f32.mrb[0].mxu0
    %1824 = vdwg.mxu0
    %1825 = vmatprep.subr.bf16.mxu0 %v1285
    %1826 = vmatpush1.bf16.msra.mxu0 %v1284
    %1827 = vmatprep.subr.bf16.mxu0 %v1289
    %1828 = vmatpush1.bf16.msra.mxu0 %v1288
    %1829 = vmatprep.subr.bf16.mxu0 %v1293
    %1830 = vmatpush1.bf16.msra.mxu0 %v1292
    %1831 = vmatprep.subr.bf16.mxu0 %v1297
    %1832 = vmatpush1.bf16.msra.mxu0 %v1296
    %1833 = vmatprep.subr.bf16.mxu0 %v1301
    %1834 = vmatpush1.bf16.msra.mxu0 %v1300
    %1835 = vmatprep.subr.bf16.mxu0 %v1305
    %1836 = vmatpush1.bf16.msra.mxu0 %v1304
    %1837 = vmatprep.subr.bf16.mxu0 %v1309
    %1838 = vmatpush1.bf16.msra.mxu0 %v1308
    %1839 = vmatprep.subr.bf16.mxu0 %v1313
    %1840 = vmatpush1.bf16.msra.mxu0 %v1312
    %1841 = vmatprep.subr.bf16.mxu0 0
    %1842 = vmatpush1.bf16.msra.mxu0 0
    %1843 = vmatprep.subr.bf16.mxu0 0
    %1844 = vmatpush1.bf16.msra.mxu0 0
    %1845 = vmatprep.subr.bf16.mxu0 0
    %1846 = vmatpush1.bf16.msra.mxu0 0
    %1847 = vmatprep.subr.bf16.mxu0 0
    %1848 = vmatpush1.bf16.msra.mxu0 0
    %1849 = vmatprep.subr.bf16.mxu0 0
    %1850 = vmatpush1.bf16.msra.mxu0 0
    %1851 = vmatprep.subr.bf16.mxu0 0
    %1852 = vmatpush1.bf16.msra.mxu0 0
    %1853 = vmatprep.subr.bf16.mxu0 0
    %1854 = vmatpush1.bf16.msra.mxu0 0
    %1855 = vmatprep.subr.bf16.mxu0 0
    %1856 = vmatpush1.bf16.msra.mxu0 0
    %1857 = vmatprep.mubr.bf16.mxu0 0
    %1858 = vmatmul.mubr.bf16.gmra.mrb[0].mxu0 %v410
    %v1859 = vpop.f32.mrb[0].mxu0
    %v1860 = vadd.f32 %v1819, %v1859
    %v1861 = vpop.f32.mrb[0].mxu0
    %v1862 = vadd.f32 %v1821, %v1861
    %v1863 = vpop.f32.mrb[0].mxu0
    %v1864 = vpop.f32.mrb[0].mxu0
    %1865 = vdwg.mxu0
    %v1866 = vlaneseq
    %v1867 = vshrl.u32 %v1866, 7
    %v1868 = vstv %s141
    %vm1869 = vcmp.lt.s32.totalorder %v1867, %v1868
    %v1870 = vsel %vm1869, %v1696, 0.0
    %v1871 = vsel %vm1869, %v1698, 0.0
    %v1872 = vsel %vm1869, %v1860, 0.0
    %v1873 = vsel %vm1869, %v1862, 0.0
    %s1874 = smul.f32 %s142, 392.0
    %v1875 = vstv %s1874
    %v1876 = vrcp.pop %v1875
    %s1877 = vtos %v1876
    %v1878 = vadd.f32 %v1870, %v1871
    %v1879 = vadd.f32 %v1878, %v1872
    %v1880 = vadd.f32 %v1879, %v1873
    %1881 = vadd.xlane.f32.xlu0 %v1880
    %v1882 = vpop.xlane.xlu0 %1881
    %v1883 = vrot.slane %v1882, 4
    %v1884 = vadd.f32 %v1882, %v1883
    %v1885 = vrot.slane %v1884, 2
    %v1886 = vadd.f32 %v1884, %v1885
    %v1887 = vrot.slane %v1886, 1
    %v1888 = vadd.f32 %v1886, %v1887
    %s1889 = vtos %v1888
    %s1890 = smul.f32 %s1889, %s1877
    %v1891 = vmul.f32 %v1870, %v1870
    %v1892 = vmul.f32 %v1871, %v1871
    %v1893 = vmul.f32 %v1872, %v1872
    %v1894 = vmul.f32 %v1873, %v1873
    %v1895 = vadd.f32 %v1891, %v1892
    %v1896 = vadd.f32 %v1895, %v1893
    %v1897 = vadd.f32 %v1896, %v1894
    %1898 = vadd.xlane.f32.xlu0 %v1897
    %v1899 = vpop.xlane.xlu0 %1898
    %v1900 = vrot.slane %v1899, 4
    %v1901 = vadd.f32 %v1899, %v1900
    %v1902 = vrot.slane %v1901, 2
    %v1903 = vadd.f32 %v1901, %v1902
    %v1904 = vrot.slane %v1903, 1
    %v1905 = vadd.f32 %v1903, %v1904
    %s1906 = vtos %v1905
    %s1907 = smul.f32 %s1906, %s1877
    %s1908 = smul.f32 %s1890, %s1890
    %s1909 = ssub.f32 %s1907, %s1908
    %v1910 = vstv %s1890
    %v1911 = vsub.f32 %v1696, %v1910
    %v1912 = vsub.f32 %v1698, %v1910
    %v1913 = vsub.f32 %v1860, %v1910
    %v1914 = vsub.f32 %v1862, %v1910
    %s1915 = sadd.f32 %s1909, 1e-05
    %v1916 = vstv %s1915
    %v1917 = vrsqrt.pop %v1916
    %s1918 = vtos %v1917
    %v1919 = vstv %s1918
    %v1920 = vmul.f32 %v1911, %v1919
    %v1921 = vmul.f32 %v1912, %v1919
    %v1922 = vmul.f32 %v1913, %v1919
    %v1923 = vmul.f32 %v1914, %v1919
    %v1924 = vpack.c.bf16 %v1920, %v1920
    %v1925 = vpack.c.bf16 %v1921, %v1921
    %v1926 = vpack.c.bf16 %v1922, %v1922
    %v1927 = vpack.c.bf16 %v1923, %v1923
    %v1928 = vtanh.bf16.pop %v1924
    %v1929 = vtanh.bf16.pop %v1925
    %v1930 = vtanh.bf16.pop %v1926
    %v1931 = vtanh.bf16.pop %v1927
    %v1932 = vld [vmem:[#allocation8] sm:$0xff]
    %v1933 = vld [vmem:[#allocation8 + $0x8] sm:$0xff]
    %v1934 = vld [vmem:[#allocation8 + $0x10] sm:$0xff]
    %v1935 = vld [vmem:[#allocation8 + $0x18] sm:$0xff]
    %v1936 = vld [vmem:[#allocation8 + $0x20] sm:$0xff]
    %v1937 = vld [vmem:[#allocation8 + $0x28] sm:$0xff]
    %v1938 = vld [vmem:[#allocation8 + $0x30] sm:$0xff]
    %v1939 = vld [vmem:[#allocation8 + $0x38] sm:$0xff]
    %v1940 = vld [vmem:[#allocation8 + $0x40] sm:$0xff]
    %v1941 = vld [vmem:[#allocation8 + $0x48] sm:$0xff]
    %v1942 = vld [vmem:[#allocation8 + $0x50] sm:$0xff]
    %v1943 = vld [vmem:[#allocation8 + $0x58] sm:$0xff]
    %v1944 = vld [vmem:[#allocation8 + $0x60] sm:$0xff]
    %v1945 = vld [vmem:[#allocation8 + $0x68] sm:$0xff]
    %v1946 = vld [vmem:[#allocation8 + $0x70] sm:$0xff]
    %v1947 = vld [vmem:[#allocation8 + $0x78] sm:$0xff]
    %v1948 = vld [vmem:[#allocation8 + $0x80] sm:$0xff]
    %v1949 = vld [vmem:[#allocation8 + $0x88] sm:$0xff]
    %v1950 = vld [vmem:[#allocation8 + $0x90] sm:$0xff]
    %v1951 = vld [vmem:[#allocation8 + $0x98] sm:$0xff]
    %v1952 = vld [vmem:[#allocation8 + $0xa0] sm:$0xff]
    %v1953 = vld [vmem:[#allocation8 + $0xa8] sm:$0xff]
    %v1954 = vld [vmem:[#allocation8 + $0xb0] sm:$0xff]
    %v1955 = vld [vmem:[#allocation8 + $0xb8] sm:$0xff]
    %v1956 = vld [vmem:[#allocation8 + $0xc0] sm:$0xff]
    %v1957 = vld [vmem:[#allocation8 + $0xc8] sm:$0xff]
    %v1958 = vld [vmem:[#allocation8 + $0xd0] sm:$0xff]
    %v1959 = vld [vmem:[#allocation8 + $0xd8] sm:$0xff]
    %v1960 = vld [vmem:[#allocation8 + $0xe0] sm:$0xff]
    %v1961 = vld [vmem:[#allocation8 + $0xe8] sm:$0xff]
    %v1962 = vld [vmem:[#allocation8 + $0xf0] sm:$0xff]
    %v1963 = vld [vmem:[#allocation8 + $0xf8] sm:$0xff]
    %v1964 = vld [vmem:[#allocation8 + $0x100] sm:$0xff]
    %v1965 = vld [vmem:[#allocation8 + $0x108] sm:$0xff]
    %v1966 = vld [vmem:[#allocation8 + $0x110] sm:$0xff]
    %v1967 = vld [vmem:[#allocation8 + $0x118] sm:$0xff]
    %v1968 = vld [vmem:[#allocation8 + $0x120] sm:$0xff]
    %v1969 = vld [vmem:[#allocation8 + $0x128] sm:$0xff]
    %v1970 = vld [vmem:[#allocation8 + $0x130] sm:$0xff]
    %v1971 = vld [vmem:[#allocation8 + $0x138] sm:$0xff]
    %v1972 = vld [vmem:[#allocation8 + $0x140] sm:$0xff]
    %v1973 = vld [vmem:[#allocation8 + $0x148] sm:$0xff]
    %v1974 = vld [vmem:[#allocation8 + $0x150] sm:$0xff]
    %v1975 = vld [vmem:[#allocation8 + $0x158] sm:$0xff]
    %v1976 = vld [vmem:[#allocation8 + $0x160] sm:$0xff]
    %v1977 = vld [vmem:[#allocation8 + $0x168] sm:$0xff]
    %v1978 = vld [vmem:[#allocation8 + $0x170] sm:$0xff]
    %v1979 = vld [vmem:[#allocation8 + $0x178] sm:$0xff]
    %v1980 = vld [vmem:[#allocation8 + $0x180] sm:$0xff]
    %v1981 = vld [vmem:[#allocation8 + $0x188] sm:$0xff]
    %v1982 = vld [vmem:[#allocation8 + $0x190] sm:$0xff]
    %v1983 = vld [vmem:[#allocation8 + $0x198] sm:$0xff]
    %v1984 = vld [vmem:[#allocation8 + $0x1a0] sm:$0xff]
    %v1985 = vld [vmem:[#allocation8 + $0x1a8] sm:$0xff]
    %v1986 = vld [vmem:[#allocation8 + $0x1b0] sm:$0xff]
    %v1987 = vld [vmem:[#allocation8 + $0x1b8] sm:$0xff]
    %v1988 = vld [vmem:[#allocation8 + $0x1c0] sm:$0xff]
    %v1989 = vld [vmem:[#allocation8 + $0x1c8] sm:$0xff]
    %v1990 = vld [vmem:[#allocation8 + $0x1d0] sm:$0xff]
    %v1991 = vld [vmem:[#allocation8 + $0x1d8] sm:$0xff]
    %v1992 = vld [vmem:[#allocation8 + $0x1e0] sm:$0xff]
    %v1993 = vld [vmem:[#allocation8 + $0x1e8] sm:$0xff]
    %v1994 = vld [vmem:[#allocation8 + $0x1f0] sm:$0xff]
    %v1995 = vld [vmem:[#allocation8 + $0x1f8] sm:$0xff]
    %v1996 = vld [vmem:[#allocation15 + $0x4] sm:$0x3]
    %v1998 = vlaneseq
    %v1999 = vshrl.u32 %v1998, 7
    %v2000 = vsub.s32 0, %v1999
    %v2001 = vrot.slane %v1996, %v2000
    %v2002 = vlaneseq
    %v2003 = vshrl.u32 %v2002, 7
    %v2004 = vsub.s32 1, %v2003
    %v2005 = vrot.slane %v1996, %v2004
    %v2072 = vunpack.c.l.b16 %v1932
    %v2073 = vunpack.c.h.b16 %v1932
    %v2074 = vunpack.c.l.b16 %v1933
    %v2075 = vunpack.c.h.b16 %v1933
    %v2076 = vunpack.c.l.b16 %v1934
    %v2077 = vunpack.c.h.b16 %v1934
    %v2078 = vunpack.c.l.b16 %v1935
    %v2079 = vunpack.c.h.b16 %v1935
    %v2080 = vunpack.c.l.b16 %v1936
    %v2081 = vunpack.c.h.b16 %v1936
    %v2082 = vunpack.c.l.b16 %v1937
    %v2083 = vunpack.c.h.b16 %v1937
    %v2084 = vunpack.c.l.b16 %v1938
    %v2085 = vunpack.c.h.b16 %v1938
    %v2086 = vunpack.c.l.b16 %v1939
    %v2087 = vunpack.c.h.b16 %v1939
    %v2088 = vunpack.c.l.b16 %v1940
    %v2089 = vunpack.c.h.b16 %v1940
    %v2090 = vunpack.c.l.b16 %v1941
    %v2091 = vunpack.c.h.b16 %v1941
    %v2092 = vunpack.c.l.b16 %v1942
    %v2093 = vunpack.c.h.b16 %v1942
    %v2094 = vunpack.c.l.b16 %v1943
    %v2095 = vunpack.c.h.b16 %v1943
    %v2096 = vunpack.c.l.b16 %v1944
    %v2097 = vunpack.c.h.b16 %v1944
    %v2098 = vunpack.c.l.b16 %v1945
    %v2099 = vunpack.c.h.b16 %v1945
    %v2100 = vunpack.c.l.b16 %v1946
    %v2101 = vunpack.c.h.b16 %v1946
    %v2102 = vunpack.c.l.b16 %v1947
    %v2103 = vunpack.c.h.b16 %v1947
    %v2104 = vunpack.c.l.b16 %v1948
    %v2105 = vunpack.c.h.b16 %v1948
    %v2106 = vunpack.c.l.b16 %v1949
    %v2107 = vunpack.c.h.b16 %v1949
    %v2108 = vunpack.c.l.b16 %v1950
    %v2109 = vunpack.c.h.b16 %v1950
    %v2110 = vunpack.c.l.b16 %v1951
    %v2111 = vunpack.c.h.b16 %v1951
    %v2112 = vunpack.c.l.b16 %v1952
    %v2113 = vunpack.c.h.b16 %v1952
    %v2114 = vunpack.c.l.b16 %v1953
    %v2115 = vunpack.c.h.b16 %v1953
    %v2116 = vunpack.c.l.b16 %v1954
    %v2117 = vunpack.c.h.b16 %v1954
    %v2118 = vunpack.c.l.b16 %v1955
    %v2119 = vunpack.c.h.b16 %v1955
    %v2120 = vunpack.c.l.b16 %v1956
    %v2121 = vunpack.c.h.b16 %v1956
    %v2122 = vunpack.c.l.b16 %v1957
    %v2123 = vunpack.c.h.b16 %v1957
    %v2124 = vunpack.c.l.b16 %v1958
    %v2125 = vunpack.c.h.b16 %v1958
    %v2126 = vunpack.c.l.b16 %v1959
    %v2127 = vunpack.c.h.b16 %v1959
    %v2128 = vunpack.c.l.b16 %v1960
    %v2129 = vunpack.c.h.b16 %v1960
    %v2130 = vunpack.c.l.b16 %v1961
    %v2131 = vunpack.c.h.b16 %v1961
    %v2132 = vunpack.c.l.b16 %v1962
    %v2133 = vunpack.c.h.b16 %v1962
    %v2134 = vunpack.c.l.b16 %v1963
    %v2135 = vunpack.c.h.b16 %v1963
    %v2136 = vunpack.c.l.b16 %v1964
    %v2137 = vunpack.c.h.b16 %v1964
    %v2138 = vunpack.c.l.b16 %v1965
    %v2139 = vunpack.c.h.b16 %v1965
    %v2140 = vunpack.c.l.b16 %v1966
    %v2141 = vunpack.c.h.b16 %v1966
    %v2142 = vunpack.c.l.b16 %v1967
    %v2143 = vunpack.c.h.b16 %v1967
    %v2144 = vunpack.c.l.b16 %v1968
    %v2145 = vunpack.c.h.b16 %v1968
    %v2146 = vunpack.c.l.b16 %v1969
    %v2147 = vunpack.c.h.b16 %v1969
    %v2148 = vunpack.c.l.b16 %v1970
    %v2149 = vunpack.c.h.b16 %v1970
    %v2150 = vunpack.c.l.b16 %v1971
    %v2151 = vunpack.c.h.b16 %v1971
    %v2152 = vunpack.c.l.b16 %v1972
    %v2153 = vunpack.c.h.b16 %v1972
    %v2154 = vunpack.c.l.b16 %v1973
    %v2155 = vunpack.c.h.b16 %v1973
    %v2156 = vunpack.c.l.b16 %v1974
    %v2157 = vunpack.c.h.b16 %v1974
    %v2158 = vunpack.c.l.b16 %v1975
    %v2159 = vunpack.c.h.b16 %v1975
    %v2160 = vunpack.c.l.b16 %v1976
    %v2161 = vunpack.c.h.b16 %v1976
    %v2162 = vunpack.c.l.b16 %v1977
    %v2163 = vunpack.c.h.b16 %v1977
    %v2164 = vunpack.c.l.b16 %v1978
    %v2165 = vunpack.c.h.b16 %v1978
    %v2166 = vunpack.c.l.b16 %v1979
    %v2167 = vunpack.c.h.b16 %v1979
    %v2168 = vunpack.c.l.b16 %v1980
    %v2169 = vunpack.c.h.b16 %v1980
    %v2170 = vunpack.c.l.b16 %v1981
    %v2171 = vunpack.c.h.b16 %v1981
    %v2172 = vunpack.c.l.b16 %v1982
    %v2173 = vunpack.c.h.b16 %v1982
    %v2174 = vunpack.c.l.b16 %v1983
    %v2175 = vunpack.c.h.b16 %v1983
    %v2176 = vunpack.c.l.b16 %v1984
    %v2177 = vunpack.c.h.b16 %v1984
    %v2178 = vunpack.c.l.b16 %v1985
    %v2179 = vunpack.c.h.b16 %v1985
    %v2180 = vunpack.c.l.b16 %v1986
    %v2181 = vunpack.c.h.b16 %v1986
    %v2182 = vunpack.c.l.b16 %v1987
    %v2183 = vunpack.c.h.b16 %v1987
    %v2184 = vunpack.c.l.b16 %v1988
    %v2185 = vunpack.c.h.b16 %v1988
    %v2186 = vunpack.c.l.b16 %v1989
    %v2187 = vunpack.c.h.b16 %v1989
    %v2188 = vunpack.c.l.b16 %v1990
    %v2189 = vunpack.c.h.b16 %v1990
    %v2190 = vunpack.c.l.b16 %v1991
    %v2191 = vunpack.c.h.b16 %v1991
    %v2192 = vunpack.c.l.b16 %v1992
    %v2193 = vunpack.c.h.b16 %v1992
    %v2194 = vunpack.c.l.b16 %v1993
    %v2195 = vunpack.c.h.b16 %v1993
    %v2196 = vunpack.c.l.b16 %v1994
    %v2197 = vunpack.c.h.b16 %v1994
    %v2198 = vunpack.c.l.b16 %v1995
    %v2199 = vunpack.c.h.b16 %v1995
    %v2200 = vpack.c.b16 %v2074, %v2072
    %v2201 = vpack.c.b16 %v2075, %v2073
    %v2202 = vpack.c.b16 %v2078, %v2076
    %v2203 = vpack.c.b16 %v2079, %v2077
    %v2204 = vpack.c.b16 %v2082, %v2080
    %v2205 = vpack.c.b16 %v2083, %v2081
    %v2206 = vpack.c.b16 %v2086, %v2084
    %v2207 = vpack.c.b16 %v2087, %v2085
    %v2208 = vpack.c.b16 %v2090, %v2088
    %v2209 = vpack.c.b16 %v2091, %v2089
    %v2210 = vpack.c.b16 %v2094, %v2092
    %v2211 = vpack.c.b16 %v2095, %v2093
    %v2212 = vpack.c.b16 %v2098, %v2096
    %v2213 = vpack.c.b16 %v2099, %v2097
    %v2214 = vpack.c.b16 %v2102, %v2100
    %v2215 = vpack.c.b16 %v2103, %v2101
    %v2216 = vpack.c.b16 %v2106, %v2104
    %v2217 = vpack.c.b16 %v2107, %v2105
    %v2218 = vpack.c.b16 %v2110, %v2108
    %v2219 = vpack.c.b16 %v2111, %v2109
    %v2220 = vpack.c.b16 %v2114, %v2112
    %v2221 = vpack.c.b16 %v2115, %v2113
    %v2222 = vpack.c.b16 %v2118, %v2116
    %v2223 = vpack.c.b16 %v2119, %v2117
    %v2224 = vpack.c.b16 %v2122, %v2120
    %v2225 = vpack.c.b16 %v2123, %v2121
    %v2226 = vpack.c.b16 %v2126, %v2124
    %v2227 = vpack.c.b16 %v2127, %v2125
    %v2228 = vpack.c.b16 %v2130, %v2128
    %v2229 = vpack.c.b16 %v2131, %v2129
    %v2230 = vpack.c.b16 %v2134, %v2132
    %v2231 = vpack.c.b16 %v2135, %v2133
    %v2232 = vpack.c.b16 %v2138, %v2136
    %v2233 = vpack.c.b16 %v2139, %v2137
    %v2234 = vpack.c.b16 %v2142, %v2140
    %v2235 = vpack.c.b16 %v2143, %v2141
    %v2236 = vpack.c.b16 %v2146, %v2144
    %v2237 = vpack.c.b16 %v2147, %v2145
    %v2238 = vpack.c.b16 %v2150, %v2148
    %v2239 = vpack.c.b16 %v2151, %v2149
    %v2240 = vpack.c.b16 %v2154, %v2152
    %v2241 = vpack.c.b16 %v2155, %v2153
    %v2242 = vpack.c.b16 %v2158, %v2156
    %v2243 = vpack.c.b16 %v2159, %v2157
    %v2244 = vpack.c.b16 %v2162, %v2160
    %v2245 = vpack.c.b16 %v2163, %v2161
    %v2246 = vpack.c.b16 %v2166, %v2164
    %v2247 = vpack.c.b16 %v2167, %v2165
    %v2248 = vpack.c.b16 %v2170, %v2168
    %v2249 = vpack.c.b16 %v2171, %v2169
    %v2250 = vpack.c.b16 %v2174, %v2172
    %v2251 = vpack.c.b16 %v2175, %v2173
    %v2252 = vpack.c.b16 %v2178, %v2176
    %v2253 = vpack.c.b16 %v2179, %v2177
    %v2254 = vpack.c.b16 %v2182, %v2180
    %v2255 = vpack.c.b16 %v2183, %v2181
    %v2256 = vpack.c.b16 %v2186, %v2184
    %v2257 = vpack.c.b16 %v2187, %v2185
    %v2258 = vpack.c.b16 %v2190, %v2188
    %v2259 = vpack.c.b16 %v2191, %v2189
    %v2260 = vpack.c.b16 %v2194, %v2192
    %v2261 = vpack.c.b16 %v2195, %v2193
    %v2262 = vpack.c.b16 %v2198, %v2196
    %v2263 = vpack.c.b16 %v2199, %v2197
    %2328 = vmatprep.subr.bf16.mxu0 %v2201
    %2329 = vmatpush1.bf16.msra.mxu0 %v2200
    %2330 = vmatprep.subr.bf16.mxu0 %v2203
    %2331 = vmatpush1.bf16.msra.mxu0 %v2202
    %2332 = vmatprep.subr.bf16.mxu0 %v2205
    %2333 = vmatpush1.bf16.msra.mxu0 %v2204
    %2334 = vmatprep.subr.bf16.mxu0 %v2207
    %2335 = vmatpush1.bf16.msra.mxu0 %v2206
    %2336 = vmatprep.subr.bf16.mxu0 %v2209
    %2337 = vmatpush1.bf16.msra.mxu0 %v2208
    %2338 = vmatprep.subr.bf16.mxu0 %v2211
    %2339 = vmatpush1.bf16.msra.mxu0 %v2210
    %2340 = vmatprep.subr.bf16.mxu0 %v2213
    %2341 = vmatpush1.bf16.msra.mxu0 %v2212
    %2342 = vmatprep.subr.bf16.mxu0 %v2215
    %2343 = vmatpush1.bf16.msra.mxu0 %v2214
    %2344 = vmatprep.subr.bf16.mxu0 %v2217
    %2345 = vmatpush1.bf16.msra.mxu0 %v2216
    %2346 = vmatprep.subr.bf16.mxu0 %v2219
    %2347 = vmatpush1.bf16.msra.mxu0 %v2218
    %2348 = vmatprep.subr.bf16.mxu0 %v2221
    %2349 = vmatpush1.bf16.msra.mxu0 %v2220
    %2350 = vmatprep.subr.bf16.mxu0 %v2223
    %2351 = vmatpush1.bf16.msra.mxu0 %v2222
    %2352 = vmatprep.subr.bf16.mxu0 %v2225
    %2353 = vmatpush1.bf16.msra.mxu0 %v2224
    %2354 = vmatprep.subr.bf16.mxu0 %v2227
    %2355 = vmatpush1.bf16.msra.mxu0 %v2226
    %2356 = vmatprep.subr.bf16.mxu0 %v2229
    %2357 = vmatpush1.bf16.msra.mxu0 %v2228
    %2358 = vmatprep.subr.bf16.mxu0 %v2231
    %2359 = vmatpush1.bf16.msra.mxu0 %v2230
    %2360 = vmatprep.mubr.bf16.mxu0 %v1929
    %2361 = vmatmul.mubr.bf16.gmra.mrb[0].mxu0 %v1928
    %v2362 = vpop.f32.mrb[0].mxu0
    %v2363 = vadd.f32 %v2001, %v2362
    %v2364 = vpop.f32.mrb[0].mxu0
    %v2365 = vadd.f32 %v2005, %v2364
    %v2366 = vpop.f32.mrb[0].mxu0
    %v2367 = vpop.f32.mrb[0].mxu0
    %2368 = vdwg.mxu0
    %2369 = vmatprep.subr.bf16.mxu0 %v2233
    %2370 = vmatpush1.bf16.msra.mxu0 %v2232
    %2371 = vmatprep.subr.bf16.mxu0 %v2235
    %2372 = vmatpush1.bf16.msra.mxu0 %v2234
    %2373 = vmatprep.subr.bf16.mxu0 %v2237
    %2374 = vmatpush1.bf16.msra.mxu0 %v2236
    %2375 = vmatprep.subr.bf16.mxu0 %v2239
    %2376 = vmatpush1.bf16.msra.mxu0 %v2238
    %2377 = vmatprep.subr.bf16.mxu0 %v2241
    %2378 = vmatpush1.bf16.msra.mxu0 %v2240
    %2379 = vmatprep.subr.bf16.mxu0 %v2243
    %2380 = vmatpush1.bf16.msra.mxu0 %v2242
    %2381 = vmatprep.subr.bf16.mxu0 %v2245
    %2382 = vmatpush1.bf16.msra.mxu0 %v2244
    %2383 = vmatprep.subr.bf16.mxu0 %v2247
    %2384 = vmatpush1.bf16.msra.mxu0 %v2246
    %2385 = vmatprep.subr.bf16.mxu0 %v2249
    %2386 = vmatpush1.bf16.msra.mxu0 %v2248
    %2387 = vmatprep.subr.bf16.mxu0 %v2251
    %2388 = vmatpush1.bf16.msra.mxu0 %v2250
    %2389 = vmatprep.subr.bf16.mxu0 %v2253
    %2390 = vmatpush1.bf16.msra.mxu0 %v2252
    %2391 = vmatprep.subr.bf16.mxu0 %v2255
    %2392 = vmatpush1.bf16.msra.mxu0 %v2254
    %2393 = vmatprep.subr.bf16.mxu0 %v2257
    %2394 = vmatpush1.bf16.msra.mxu0 %v2256
    %2395 = vmatprep.subr.bf16.mxu0 %v2259
    %2396 = vmatpush1.bf16.msra.mxu0 %v2258
    %2397 = vmatprep.subr.bf16.mxu0 %v2261
    %2398 = vmatpush1.bf16.msra.mxu0 %v2260
    %2399 = vmatprep.subr.bf16.mxu0 %v2263
    %2400 = vmatpush1.bf16.msra.mxu0 %v2262
    %2401 = vmatprep.mubr.bf16.mxu0 %v1931
    %2402 = vmatmul.mubr.bf16.gmra.mrb[0].mxu0 %v1930
    %v2403 = vpop.f32.mrb[0].mxu0
    %v2404 = vadd.f32 %v2363, %v2403
    %v2405 = vpop.f32.mrb[0].mxu0
    %v2406 = vadd.f32 %v2365, %v2405
    %v2407 = vpop.f32.mrb[0].mxu0
    %v2408 = vpop.f32.mrb[0].mxu0
    %2409 = vdwg.mxu0
    %v2410 = vsel %vm1869, %v2404, 0.0
    %v2411 = vsel %vm1869, %v2406, 0.0
    %s2412 = smul.f32 %s142, 196.0
    %v2413 = vstv %s2412
    %v2414 = vrcp.pop %v2413
    %s2415 = vtos %v2414
    %v2416 = vadd.f32 %v2410, %v2411
    %2417 = vadd.xlane.f32.xlu0 %v2416
    %v2418 = vpop.xlane.xlu0 %2417
    %v2419 = vrot.slane %v2418, 4
    %v2420 = vadd.f32 %v2418, %v2419
    %v2421 = vrot.slane %v2420, 2
    %v2422 = vadd.f32 %v2420, %v2421
    %v2423 = vrot.slane %v2422, 1
    %v2424 = vadd.f32 %v2422, %v2423
    %s2425 = vtos %v2424
    %s2426 = smul.f32 %s2425, %s2415
    %v2427 = vmul.f32 %v2410, %v2410
    %v2428 = vmul.f32 %v2411, %v2411
    %v2429 = vadd.f32 %v2427, %v2428
    %2430 = vadd.xlane.f32.xlu0 %v2429
    %v2431 = vpop.xlane.xlu0 %2430
    %v2432 = vrot.slane %v2431, 4
    %v2433 = vadd.f32 %v2431, %v2432
    %v2434 = vrot.slane %v2433, 2
    %v2435 = vadd.f32 %v2433, %v2434
    %v2436 = vrot.slane %v2435, 1
    %v2437 = vadd.f32 %v2435, %v2436
    %s2438 = vtos %v2437
    %s2439 = smul.f32 %s2438, %s2415
    %s2440 = smul.f32 %s2426, %s2426
    %s2441 = ssub.f32 %s2439, %s2440
    %v2442 = vstv %s2426
    %v2443 = vsub.f32 %v2404, %v2442
    %v2444 = vsub.f32 %v2406, %v2442
    %s2445 = sadd.f32 %s2441, 1e-05
    %v2446 = vstv %s2445
    %v2447 = vrsqrt.pop %v2446
    %s2448 = vtos %v2447
    %v2449 = vstv %s2448
    %v2450 = vmul.f32 %v2443, %v2449
    %v2451 = vmul.f32 %v2444, %v2449
    %v2452 = vpack.c.bf16 %v2450, %v2450
    %v2453 = vpack.c.bf16 %v2451, %v2451
    %v2454 = vtanh.bf16.pop %v2452
    %v2455 = vtanh.bf16.pop %v2453
    %v2456 = vld [vmem:[#allocation9] sm:$0xf]
    %v2457 = vld [vmem:[#allocation9 + $0x4] sm:$0xf]
    %v2458 = vld [vmem:[#allocation9 + $0x8] sm:$0xf]
    %v2459 = vld [vmem:[#allocation9 + $0xc] sm:$0xf]
    %v2460 = vld [vmem:[#allocation9 + $0x10] sm:$0xf]
    %v2461 = vld [vmem:[#allocation9 + $0x14] sm:$0xf]
    %v2462 = vld [vmem:[#allocation9 + $0x18] sm:$0xf]
    %v2463 = vld [vmem:[#allocation9 + $0x1c] sm:$0xf]
    %v2464 = vld [vmem:[#allocation9 + $0x20] sm:$0xf]
    %v2465 = vld [vmem:[#allocation9 + $0x24] sm:$0xf]
    %v2466 = vld [vmem:[#allocation9 + $0x28] sm:$0xf]
    %v2467 = vld [vmem:[#allocation9 + $0x2c] sm:$0xf]
    %v2468 = vld [vmem:[#allocation9 + $0x30] sm:$0xf]
    %v2469 = vld [vmem:[#allocation9 + $0x34] sm:$0xf]
    %v2470 = vld [vmem:[#allocation9 + $0x38] sm:$0xf]
    %v2471 = vld [vmem:[#allocation9 + $0x3c] sm:$0xf]
    %v2472 = vld [vmem:[#allocation9 + $0x40] sm:$0xf]
    %v2473 = vld [vmem:[#allocation9 + $0x44] sm:$0xf]
    %v2474 = vld [vmem:[#allocation9 + $0x48] sm:$0xf]
    %v2475 = vld [vmem:[#allocation9 + $0x4c] sm:$0xf]
    %v2476 = vld [vmem:[#allocation9 + $0x50] sm:$0xf]
    %v2477 = vld [vmem:[#allocation9 + $0x54] sm:$0xf]
    %v2478 = vld [vmem:[#allocation9 + $0x58] sm:$0xf]
    %v2479 = vld [vmem:[#allocation9 + $0x5c] sm:$0xf]
    %v2480 = vld [vmem:[#allocation9 + $0x60] sm:$0xf]
    %v2481 = vld [vmem:[#allocation9 + $0x64] sm:$0xf]
    %v2482 = vld [vmem:[#allocation9 + $0x68] sm:$0xf]
    %v2483 = vld [vmem:[#allocation9 + $0x6c] sm:$0xf]
    %v2484 = vld [vmem:[#allocation9 + $0x70] sm:$0xf]
    %v2485 = vld [vmem:[#allocation9 + $0x74] sm:$0xf]
    %v2486 = vld [vmem:[#allocation9 + $0x78] sm:$0xf]
    %v2487 = vld [vmem:[#allocation9 + $0x7c] sm:$0xf]
    %v2488 = vld [vmem:[#allocation15 + $0x6] sm:$0x1]
    %v2490 = vlaneseq
    %v2491 = vshrl.u32 %v2490, 7
    %v2492 = vsub.s32 0, %v2491
    %v2493 = vrot.slane %v2488, %v2492
    %v2527 = vunpack.c.l.b16 %v2456
    %v2528 = vunpack.c.l.b16 %v2457
    %v2529 = vunpack.c.l.b16 %v2458
    %v2530 = vunpack.c.l.b16 %v2459
    %v2531 = vunpack.c.l.b16 %v2460
    %v2532 = vunpack.c.l.b16 %v2461
    %v2533 = vunpack.c.l.b16 %v2462
    %v2534 = vunpack.c.l.b16 %v2463
    %v2535 = vunpack.c.l.b16 %v2464
    %v2536 = vunpack.c.l.b16 %v2465
    %v2537 = vunpack.c.l.b16 %v2466
    %v2538 = vunpack.c.l.b16 %v2467
    %v2539 = vunpack.c.l.b16 %v2468
    %v2540 = vunpack.c.l.b16 %v2469
    %v2541 = vunpack.c.l.b16 %v2470
    %v2542 = vunpack.c.l.b16 %v2471
    %v2543 = vunpack.c.l.b16 %v2472
    %v2544 = vunpack.c.l.b16 %v2473
    %v2545 = vunpack.c.l.b16 %v2474
    %v2546 = vunpack.c.l.b16 %v2475
    %v2547 = vunpack.c.l.b16 %v2476
    %v2548 = vunpack.c.l.b16 %v2477
    %v2549 = vunpack.c.l.b16 %v2478
    %v2550 = vunpack.c.l.b16 %v2479
    %v2551 = vunpack.c.l.b16 %v2480
    %v2552 = vunpack.c.l.b16 %v2481
    %v2553 = vunpack.c.l.b16 %v2482
    %v2554 = vunpack.c.l.b16 %v2483
    %v2555 = vunpack.c.l.b16 %v2484
    %v2556 = vunpack.c.l.b16 %v2485
    %v2557 = vunpack.c.l.b16 %v2486
    %v2558 = vunpack.c.l.b16 %v2487
    %v2559 = vpack.c.b16 %v2528, %v2527
    %v2560 = vpack.c.b16 %v2530, %v2529
    %v2561 = vpack.c.b16 %v2532, %v2531
    %v2562 = vpack.c.b16 %v2534, %v2533
    %v2563 = vpack.c.b16 %v2536, %v2535
    %v2564 = vpack.c.b16 %v2538, %v2537
    %v2565 = vpack.c.b16 %v2540, %v2539
    %v2566 = vpack.c.b16 %v2542, %v2541
    %v2567 = vpack.c.b16 %v2544, %v2543
    %v2568 = vpack.c.b16 %v2546, %v2545
    %v2569 = vpack.c.b16 %v2548, %v2547
    %v2570 = vpack.c.b16 %v2550, %v2549
    %v2571 = vpack.c.b16 %v2552, %v2551
    %v2572 = vpack.c.b16 %v2554, %v2553
    %v2573 = vpack.c.b16 %v2556, %v2555
    %v2574 = vpack.c.b16 %v2558, %v2557
    %2591 = vmatprep.subr.bf16.mxu0 0
    %2592 = vmatpush1.bf16.msra.mxu0 %v2559
    %2593 = vmatprep.subr.bf16.mxu0 0
    %2594 = vmatpush1.bf16.msra.mxu0 %v2560
    %2595 = vmatprep.subr.bf16.mxu0 0
    %2596 = vmatpush1.bf16.msra.mxu0 %v2561
    %2597 = vmatprep.subr.bf16.mxu0 0
    %2598 = vmatpush1.bf16.msra.mxu0 %v2562
    %2599 = vmatprep.subr.bf16.mxu0 0
    %2600 = vmatpush1.bf16.msra.mxu0 %v2563
    %2601 = vmatprep.subr.bf16.mxu0 0
    %2602 = vmatpush1.bf16.msra.mxu0 %v2564
    %2603 = vmatprep.subr.bf16.mxu0 0
    %2604 = vmatpush1.bf16.msra.mxu0 %v2565
    %2605 = vmatprep.subr.bf16.mxu0 0
    %2606 = vmatpush1.bf16.msra.mxu0 %v2566
    %2607 = vmatprep.subr.bf16.mxu0 0
    %2608 = vmatpush1.bf16.msra.mxu0 %v2567
    %2609 = vmatprep.subr.bf16.mxu0 0
    %2610 = vmatpush1.bf16.msra.mxu0 %v2568
    %2611 = vmatprep.subr.bf16.mxu0 0
    %2612 = vmatpush1.bf16.msra.mxu0 %v2569
    %2613 = vmatprep.subr.bf16.mxu0 0
    %2614 = vmatpush1.bf16.msra.mxu0 %v2570
    %2615 = vmatprep.subr.bf16.mxu0 0
    %2616 = vmatpush1.bf16.msra.mxu0 %v2571
    %2617 = vmatprep.subr.bf16.mxu0 0
    %2618 = vmatpush1.bf16.msra.mxu0 %v2572
    %2619 = vmatprep.subr.bf16.mxu0 0
    %2620 = vmatpush1.bf16.msra.mxu0 %v2573
    %2621 = vmatprep.subr.bf16.mxu0 0
    %2622 = vmatpush1.bf16.msra.mxu0 %v2574
    %2623 = vmatprep.mubr.bf16.mxu0 %v2455
    %2624 = vmatmul.mubr.bf16.gmra.mrb[0].mxu0 %v2454
    %v2625 = vpop.f32.mrb[0].mxu0
    %v2626 = vadd.f32 %v2493, %v2625
    %v2627 = vpop.f32.mrb[0].mxu0
    %v2628 = vpop.f32.mrb[0].mxu0
    %v2629 = vpop.f32.mrb[0].mxu0
    %2630 = vdwg.mxu0
    %v2631 = vsel %vm1869, %v2626, 0.0
    %s2632 = smul.f32 %s142, 98.0
    %v2633 = vstv %s2632
    %v2634 = vrcp.pop %v2633
    %s2635 = vtos %v2634
    %2636 = vadd.xlane.f32.xlu0 %v2631
    %v2637 = vpop.xlane.xlu0 %2636
    %v2638 = vrot.slane %v2637, 4
    %v2639 = vadd.f32 %v2637, %v2638
    %v2640 = vrot.slane %v2639, 2
    %v2641 = vadd.f32 %v2639, %v2640
    %v2642 = vrot.slane %v2641, 1
    %v2643 = vadd.f32 %v2641, %v2642
    %s2644 = vtos %v2643
    %s2645 = smul.f32 %s2644, %s2635
    %v2646 = vmul.f32 %v2631, %v2631
    %2647 = vadd.xlane.f32.xlu0 %v2646
    %v2648 = vpop.xlane.xlu0 %2647
    %v2649 = vrot.slane %v2648, 4
    %v2650 = vadd.f32 %v2648, %v2649
    %v2651 = vrot.slane %v2650, 2
    %v2652 = vadd.f32 %v2650, %v2651
    %v2653 = vrot.slane %v2652, 1
    %v2654 = vadd.f32 %v2652, %v2653
    %s2655 = vtos %v2654
    %s2656 = smul.f32 %s2655, %s2635
    %s2657 = smul.f32 %s2645, %s2645
    %s2658 = ssub.f32 %s2656, %s2657
    %v2659 = vstv %s2645
    %v2660 = vsub.f32 %v2626, %v2659
    %s2661 = sadd.f32 %s2658, 1e-05
    %v2662 = vstv %s2661
    %v2663 = vrsqrt.pop %v2662
    %s2664 = vtos %v2663
    %v2665 = vstv %s2664
    %v2666 = vmul.f32 %v2660, %v2665
    %v2667 = vpack.c.bf16 %v2666, %v2666
    %v2668 = vtanh.bf16.pop %v2667
    %v2669 = vld [vmem:[#allocation11] sm:$0xf]
    %v2670 = vld [vmem:[#allocation11 + $0x4] sm:$0xf]
    %v2671 = vld [vmem:[#allocation11 + $0x8] sm:$0xf]
    %v2672 = vld [vmem:[#allocation11 + $0xc] sm:$0xf]
    %v2673 = vld [vmem:[#allocation11 + $0x10] sm:$0xf]
    %v2674 = vld [vmem:[#allocation11 + $0x14] sm:$0xf]
    %v2675 = vld [vmem:[#allocation11 + $0x18] sm:$0xf]
    %v2676 = vld [vmem:[#allocation11 + $0x1c] sm:$0xf]
    %v2677 = vld [vmem:[#allocation11 + $0x20] sm:$0xf]
    %v2678 = vld [vmem:[#allocation11 + $0x24] sm:$0xf]
    %v2679 = vld [vmem:[#allocation11 + $0x28] sm:$0xf]
    %v2680 = vld [vmem:[#allocation11 + $0x2c] sm:$0xf]
    %v2681 = vld [vmem:[#allocation11 + $0x30] sm:$0xf]
    %v2682 = vld [vmem:[#allocation11 + $0x34] sm:$0xf]
    %v2683 = vld [vmem:[#allocation11 + $0x38] sm:$0xf]
    %v2684 = vld [vmem:[#allocation11 + $0x3c] sm:$0xf]
    %v2685 = vld [vmem:[#allocation15 + $0x7] sm:$0x1]
    %v2687 = vlaneseq
    %v2688 = vshrl.u32 %v2687, 7
    %v2689 = vsub.s32 0, %v2688
    %v2690 = vrot.slane %v2685, %v2689
    %v2708 = vunpack.c.l.b16 %v2669
    %v2709 = vunpack.c.l.b16 %v2670
    %v2710 = vunpack.c.l.b16 %v2671
    %v2711 = vunpack.c.l.b16 %v2672
    %v2712 = vunpack.c.l.b16 %v2673
    %v2713 = vunpack.c.l.b16 %v2674
    %v2714 = vunpack.c.l.b16 %v2675
    %v2715 = vunpack.c.l.b16 %v2676
    %v2716 = vunpack.c.l.b16 %v2677
    %v2717 = vunpack.c.l.b16 %v2678
    %v2718 = vunpack.c.l.b16 %v2679
    %v2719 = vunpack.c.l.b16 %v2680
    %v2720 = vunpack.c.l.b16 %v2681
    %v2721 = vunpack.c.l.b16 %v2682
    %v2722 = vunpack.c.l.b16 %v2683
    %v2723 = vunpack.c.l.b16 %v2684
    %v2724 = vpack.c.b16 %v2709, %v2708
    %v2725 = vpack.c.b16 %v2711, %v2710
    %v2726 = vpack.c.b16 %v2713, %v2712
    %v2727 = vpack.c.b16 %v2715, %v2714
    %v2728 = vpack.c.b16 %v2717, %v2716
    %v2729 = vpack.c.b16 %v2719, %v2718
    %v2730 = vpack.c.b16 %v2721, %v2720
    %v2731 = vpack.c.b16 %v2723, %v2722
    %2740 = vmatprep.subr.bf16.mxu0 0
    %2741 = vmatpush1.bf16.msra.mxu0 %v2724
    %2742 = vmatprep.subr.bf16.mxu0 0
    %2743 = vmatpush1.bf16.msra.mxu0 %v2725
    %2744 = vmatprep.subr.bf16.mxu0 0
    %2745 = vmatpush1.bf16.msra.mxu0 %v2726
    %2746 = vmatprep.subr.bf16.mxu0 0
    %2747 = vmatpush1.bf16.msra.mxu0 %v2727
    %2748 = vmatprep.subr.bf16.mxu0 0
    %2749 = vmatpush1.bf16.msra.mxu0 %v2728
    %2750 = vmatprep.subr.bf16.mxu0 0
    %2751 = vmatpush1.bf16.msra.mxu0 %v2729
    %2752 = vmatprep.subr.bf16.mxu0 0
    %2753 = vmatpush1.bf16.msra.mxu0 %v2730
    %2754 = vmatprep.subr.bf16.mxu0 0
    %2755 = vmatpush1.bf16.msra.mxu0 %v2731
    %2756 = vmatprep.subr.bf16.mxu0 0
    %2757 = vmatpush1.bf16.msra.mxu0 0
    %2758 = vmatprep.subr.bf16.mxu0 0
    %2759 = vmatpush1.bf16.msra.mxu0 0
    %2760 = vmatprep.subr.bf16.mxu0 0
    %2761 = vmatpush1.bf16.msra.mxu0 0
    %2762 = vmatprep.subr.bf16.mxu0 0
    %2763 = vmatpush1.bf16.msra.mxu0 0
    %2764 = vmatprep.subr.bf16.mxu0 0
    %2765 = vmatpush1.bf16.msra.mxu0 0
    %2766 = vmatprep.subr.bf16.mxu0 0
    %2767 = vmatpush1.bf16.msra.mxu0 0
    %2768 = vmatprep.subr.bf16.mxu0 0
    %2769 = vmatpush1.bf16.msra.mxu0 0
    %2770 = vmatprep.subr.bf16.mxu0 0
    %2771 = vmatpush1.bf16.msra.mxu0 0
    %2772 = vmatprep.mubr.bf16.mxu0 0
    %2773 = vmatmul.mubr.bf16.gmra.mrb[0].mxu0 %v2668
    %v2774 = vpop.f32.mrb[0].mxu0
    %v2775 = vadd.f32 %v2690, %v2774
    %v2776 = vpop.f32.mrb[0].mxu0
    %v2777 = vpop.f32.mrb[0].mxu0
    %v2778 = vpop.f32.mrb[0].mxu0
    %2779 = vdwg.mxu0
    %v2780 = vsel %vm1869, %v2775, 0.0
    %s2781 = smul.f32 %s142, 49.0
    %v2782 = vstv %s2781
    %v2783 = vrcp.pop %v2782
    %s2784 = vtos %v2783
    %2785 = vadd.xlane.f32.xlu0 %v2780
    %v2786 = vpop.xlane.xlu0 %2785
    %v2787 = vrot.slane %v2786, 4
    %v2788 = vadd.f32 %v2786, %v2787
    %v2789 = vrot.slane %v2788, 2
    %v2790 = vadd.f32 %v2788, %v2789
    %v2791 = vrot.slane %v2790, 1
    %v2792 = vadd.f32 %v2790, %v2791
    %s2793 = vtos %v2792
    %s2794 = smul.f32 %s2793, %s2784
    %v2795 = vmul.f32 %v2780, %v2780
    %2796 = vadd.xlane.f32.xlu0 %v2795
    %v2797 = vpop.xlane.xlu0 %2796
    %v2798 = vrot.slane %v2797, 4
    %v2799 = vadd.f32 %v2797, %v2798
    %v2800 = vrot.slane %v2799, 2
    %v2801 = vadd.f32 %v2799, %v2800
    %v2802 = vrot.slane %v2801, 1
    %v2803 = vadd.f32 %v2801, %v2802
    %s2804 = vtos %v2803
    %s2805 = smul.f32 %s2804, %s2784
    %s2806 = smul.f32 %s2794, %s2794
    %s2807 = ssub.f32 %s2805, %s2806
    %v2808 = vstv %s2794
    %v2809 = vsub.f32 %v2775, %v2808
    %s2810 = sadd.f32 %s2807, 1e-05
    %v2811 = vstv %s2810
    %v2812 = vrsqrt.pop %v2811
    %s2813 = vtos %v2812
    %v2814 = vstv %s2813
    %v2815 = vmul.f32 %v2809, %v2814
    %v2816 = vpack.c.bf16 %v2815, %v2815
    %v2817 = vtanh.bf16.pop %v2816
    %s2818 = scalar_lea.vmem [#allocation11], 64
    %v2819 = vld [vmem:[%s2818] sm:$0xf]
    %v2820 = vld [vmem:[%s2818 + $0x4] sm:$0xf]
    %v2821 = vld [vmem:[%s2818 + $0x8] sm:$0xf]
    %v2822 = vld [vmem:[%s2818 + $0xc] sm:$0xf]
    %v2823 = vld [vmem:[%s2818 + $0x10] sm:$0xf]
    %v2824 = vld [vmem:[%s2818 + $0x14] sm:$0xf]
    %v2825 = vld [vmem:[%s2818 + $0x18] sm:$0xf]
    %v2826 = vld [vmem:[%s2818 + $0x1c] sm:$0xf]
    %v2827 = vld [vmem:[%s2818 + $0x20] sm:$0xf]
    %v2828 = vld [vmem:[%s2818 + $0x24] sm:$0xf]
    %v2829 = vld [vmem:[%s2818 + $0x28] sm:$0xf]
    %v2830 = vld [vmem:[%s2818 + $0x2c] sm:$0xf]
    %v2831 = vld [vmem:[%s2818 + $0x30] sm:$0xf]
    %v2832 = vld [vmem:[%s2818 + $0x34] sm:$0xf]
    %v2833 = vld [vmem:[%s2818 + $0x38] sm:$0xf]
    %v2834 = vld [vmem:[%s2818 + $0x3c] sm:$0xf]
    %v2835 = vld [vmem:[#allocation15 + $0x8] sm:$0x1]
    %v2837 = vlaneseq
    %v2838 = vshrl.u32 %v2837, 7
    %v2839 = vsub.s32 0, %v2838
    %v2840 = vrot.slane %v2835, %v2839
    %v2858 = vunpack.c.l.b16 %v2819
    %v2859 = vunpack.c.l.b16 %v2820
    %v2860 = vunpack.c.l.b16 %v2821
    %v2861 = vunpack.c.l.b16 %v2822
    %v2862 = vunpack.c.l.b16 %v2823
    %v2863 = vunpack.c.l.b16 %v2824
    %v2864 = vunpack.c.l.b16 %v2825
    %v2865 = vunpack.c.l.b16 %v2826
    %v2866 = vunpack.c.l.b16 %v2827
    %v2867 = vunpack.c.l.b16 %v2828
    %v2868 = vunpack.c.l.b16 %v2829
    %v2869 = vunpack.c.l.b16 %v2830
    %v2870 = vunpack.c.l.b16 %v2831
    %v2871 = vunpack.c.l.b16 %v2832
    %v2872 = vunpack.c.l.b16 %v2833
    %v2873 = vunpack.c.l.b16 %v2834
    %v2874 = vpack.c.b16 %v2859, %v2858
    %v2875 = vpack.c.b16 %v2861, %v2860
    %v2876 = vpack.c.b16 %v2863, %v2862
    %v2877 = vpack.c.b16 %v2865, %v2864
    %v2878 = vpack.c.b16 %v2867, %v2866
    %v2879 = vpack.c.b16 %v2869, %v2868
    %v2880 = vpack.c.b16 %v2871, %v2870
    %v2881 = vpack.c.b16 %v2873, %v2872
    %2890 = vmatprep.subr.bf16.mxu0 0
    %2891 = vmatpush1.bf16.msra.mxu0 %v2874
    %2892 = vmatprep.subr.bf16.mxu0 0
    %2893 = vmatpush1.bf16.msra.mxu0 %v2875
    %2894 = vmatprep.subr.bf16.mxu0 0
    %2895 = vmatpush1.bf16.msra.mxu0 %v2876
    %2896 = vmatprep.subr.bf16.mxu0 0
    %2897 = vmatpush1.bf16.msra.mxu0 %v2877
    %2898 = vmatprep.subr.bf16.mxu0 0
    %2899 = vmatpush1.bf16.msra.mxu0 %v2878
    %2900 = vmatprep.subr.bf16.mxu0 0
    %2901 = vmatpush1.bf16.msra.mxu0 %v2879
    %2902 = vmatprep.subr.bf16.mxu0 0
    %2903 = vmatpush1.bf16.msra.mxu0 %v2880
    %2904 = vmatprep.subr.bf16.mxu0 0
    %2905 = vmatpush1.bf16.msra.mxu0 %v2881
    %2906 = vmatprep.subr.bf16.mxu0 0
    %2907 = vmatpush1.bf16.msra.mxu0 0
    %2908 = vmatprep.subr.bf16.mxu0 0
    %2909 = vmatpush1.bf16.msra.mxu0 0
    %2910 = vmatprep.subr.bf16.mxu0 0
    %2911 = vmatpush1.bf16.msra.mxu0 0
    %2912 = vmatprep.subr.bf16.mxu0 0
    %2913 = vmatpush1.bf16.msra.mxu0 0
    %2914 = vmatprep.subr.bf16.mxu0 0
    %2915 = vmatpush1.bf16.msra.mxu0 0
    %2916 = vmatprep.subr.bf16.mxu0 0
    %2917 = vmatpush1.bf16.msra.mxu0 0
    %2918 = vmatprep.subr.bf16.mxu0 0
    %2919 = vmatpush1.bf16.msra.mxu0 0
    %2920 = vmatprep.subr.bf16.mxu0 0
    %2921 = vmatpush1.bf16.msra.mxu0 0
    %2922 = vmatprep.mubr.bf16.mxu0 0
    %2923 = vmatmul.mubr.bf16.gmra.mrb[0].mxu0 %v2817
    %v2924 = vpop.f32.mrb[0].mxu0
    %v2925 = vadd.f32 %v2840, %v2924
    %v2926 = vpop.f32.mrb[0].mxu0
    %v2927 = vpop.f32.mrb[0].mxu0
    %v2928 = vpop.f32.mrb[0].mxu0
    %2929 = vdwg.mxu0
    %v2930 = vsel %vm1869, %v2925, 0.0
    %s2931 = smul.f32 %s142, 32.0
    %v2932 = vstv %s2931
    %v2933 = vrcp.pop %v2932
    %s2934 = vtos %v2933
    %2935 = vadd.xlane.f32.xlu0 %v2930
    %v2936 = vpop.xlane.xlu0 %2935
    %v2937 = vrot.slane %v2936, 4
    %v2938 = vadd.f32 %v2936, %v2937
    %v2939 = vrot.slane %v2938, 2
    %v2940 = vadd.f32 %v2938, %v2939
    %v2941 = vrot.slane %v2940, 1
    %v2942 = vadd.f32 %v2940, %v2941
    %s2943 = vtos %v2942
    %s2944 = smul.f32 %s2943, %s2934
    %v2945 = vmul.f32 %v2930, %v2930
    %2946 = vadd.xlane.f32.xlu0 %v2945
    %v2947 = vpop.xlane.xlu0 %2946
    %v2948 = vrot.slane %v2947, 4
    %v2949 = vadd.f32 %v2947, %v2948
    %v2950 = vrot.slane %v2949, 2
    %v2951 = vadd.f32 %v2949, %v2950
    %v2952 = vrot.slane %v2951, 1
    %v2953 = vadd.f32 %v2951, %v2952
    %s2954 = vtos %v2953
    %s2955 = smul.f32 %s2954, %s2934
    %s2956 = smul.f32 %s2944, %s2944
    %s2957 = ssub.f32 %s2955, %s2956
    %v2958 = vstv %s2944
    %v2959 = vsub.f32 %v2925, %v2958
    %s2960 = sadd.f32 %s2957, 1e-05
    %v2961 = vstv %s2960
    %v2962 = vrsqrt.pop %v2961
    %s2963 = vtos %v2962
    %v2964 = vstv %s2963
    %v2965 = vmul.f32 %v2959, %v2964
    %v2966 = vpack.c.bf16 %v2965, %v2965
    %v2967 = vtanh.bf16.pop %v2966
    %s2968 = scalar_lea.vmem [#allocation11], 128
    %v2969 = vld [vmem:[%s2968] sm:$0xf]
    %v2970 = vld [vmem:[%s2968 + $0x4] sm:$0xf]
    %v2971 = vld [vmem:[%s2968 + $0x8] sm:$0xf]
    %v2972 = vld [vmem:[%s2968 + $0xc] sm:$0xf]
    %v2973 = vld [vmem:[%s2968 + $0x10] sm:$0xf]
    %v2974 = vld [vmem:[%s2968 + $0x14] sm:$0xf]
    %v2975 = vld [vmem:[%s2968 + $0x18] sm:$0xf]
    %v2976 = vld [vmem:[%s2968 + $0x1c] sm:$0xf]
    %v2977 = vld [vmem:[%s2968 + $0x20] sm:$0xf]
    %v2978 = vld [vmem:[%s2968 + $0x24] sm:$0xf]
    %v2979 = vld [vmem:[%s2968 + $0x28] sm:$0xf]
    %v2980 = vld [vmem:[%s2968 + $0x2c] sm:$0xf]
    %v2981 = vld [vmem:[%s2968 + $0x30] sm:$0xf]
    %v2982 = vld [vmem:[%s2968 + $0x34] sm:$0xf]
    %v2983 = vld [vmem:[%s2968 + $0x38] sm:$0xf]
    %v2984 = vld [vmem:[%s2968 + $0x3c] sm:$0xf]
    %v2985 = vld [vmem:[#allocation15 + $0x9] sm:$0x1]
    %v2987 = vlaneseq
    %v2988 = vshrl.u32 %v2987, 7
    %v2989 = vsub.s32 0, %v2988
    %v2990 = vrot.slane %v2985, %v2989
    %v3008 = vunpack.c.l.b16 %v2969
    %v3009 = vunpack.c.l.b16 %v2970
    %v3010 = vunpack.c.l.b16 %v2971
    %v3011 = vunpack.c.l.b16 %v2972
    %v3012 = vunpack.c.l.b16 %v2973
    %v3013 = vunpack.c.l.b16 %v2974
    %v3014 = vunpack.c.l.b16 %v2975
    %v3015 = vunpack.c.l.b16 %v2976
    %v3016 = vunpack.c.l.b16 %v2977
    %v3017 = vunpack.c.l.b16 %v2978
    %v3018 = vunpack.c.l.b16 %v2979
    %v3019 = vunpack.c.l.b16 %v2980
    %v3020 = vunpack.c.l.b16 %v2981
    %v3021 = vunpack.c.l.b16 %v2982
    %v3022 = vunpack.c.l.b16 %v2983
    %v3023 = vunpack.c.l.b16 %v2984
    %v3024 = vpack.c.b16 %v3009, %v3008
    %v3025 = vpack.c.b16 %v3011, %v3010
    %v3026 = vpack.c.b16 %v3013, %v3012
    %v3027 = vpack.c.b16 %v3015, %v3014
    %v3028 = vpack.c.b16 %v3017, %v3016
    %v3029 = vpack.c.b16 %v3019, %v3018
    %v3030 = vpack.c.b16 %v3021, %v3020
    %v3031 = vpack.c.b16 %v3023, %v3022
    %3040 = vmatprep.subr.bf16.mxu0 0
    %3041 = vmatpush1.bf16.msra.mxu0 %v3024
    %3042 = vmatprep.subr.bf16.mxu0 0
    %3043 = vmatpush1.bf16.msra.mxu0 %v3025
    %3044 = vmatprep.subr.bf16.mxu0 0
    %3045 = vmatpush1.bf16.msra.mxu0 %v3026
    %3046 = vmatprep.subr.bf16.mxu0 0
    %3047 = vmatpush1.bf16.msra.mxu0 %v3027
    %3048 = vmatprep.subr.bf16.mxu0 0
    %3049 = vmatpush1.bf16.msra.mxu0 %v3028
    %3050 = vmatprep.subr.bf16.mxu0 0
    %3051 = vmatpush1.bf16.msra.mxu0 %v3029
    %3052 = vmatprep.subr.bf16.mxu0 0
    %3053 = vmatpush1.bf16.msra.mxu0 %v3030
    %3054 = vmatprep.subr.bf16.mxu0 0
    %3055 = vmatpush1.bf16.msra.mxu0 %v3031
    %3056 = vmatprep.subr.bf16.mxu0 0
    %3057 = vmatpush1.bf16.msra.mxu0 0
    %3058 = vmatprep.subr.bf16.mxu0 0
    %3059 = vmatpush1.bf16.msra.mxu0 0
    %3060 = vmatprep.subr.bf16.mxu0 0
    %3061 = vmatpush1.bf16.msra.mxu0 0
    %3062 = vmatprep.subr.bf16.mxu0 0
    %3063 = vmatpush1.bf16.msra.mxu0 0
    %3064 = vmatprep.subr.bf16.mxu0 0
    %3065 = vmatpush1.bf16.msra.mxu0 0
    %3066 = vmatprep.subr.bf16.mxu0 0
    %3067 = vmatpush1.bf16.msra.mxu0 0
    %3068 = vmatprep.subr.bf16.mxu0 0
    %3069 = vmatpush1.bf16.msra.mxu0 0
    %3070 = vmatprep.subr.bf16.mxu0 0
    %3071 = vmatpush1.bf16.msra.mxu0 0
    %3072 = vmatprep.mubr.bf16.mxu0 0
    %3073 = vmatmul.mubr.bf16.gmra.mrb[0].mxu0 %v2967
    %v3074 = vpop.f32.mrb[0].mxu0
    %v3075 = vadd.f32 %v2990, %v3074
    %v3076 = vpop.f32.mrb[0].mxu0
    %v3077 = vpop.f32.mrb[0].mxu0
    %v3078 = vpop.f32.mrb[0].mxu0
    %3079 = vdwg.mxu0
    %v3080 = vpack.c.bf16 %v3075, %v3075
    %v3081 = vtanh.bf16.pop %v3080
    %s3082 = scalar_lea.vmem [#allocation11], 192
    %v3083 = vld [vmem:[%s3082] sm:$0xf]
    %v3084 = vld [vmem:[%s3082 + $0x4] sm:$0xf]
    %v3085 = vld [vmem:[%s3082 + $0x8] sm:$0xf]
    %v3086 = vld [vmem:[%s3082 + $0xc] sm:$0xf]
    %v3087 = vld [vmem:[%s3082 + $0x10] sm:$0xf]
    %v3088 = vld [vmem:[%s3082 + $0x14] sm:$0xf]
    %v3089 = vld [vmem:[%s3082 + $0x18] sm:$0xf]
    %v3090 = vld [vmem:[%s3082 + $0x1c] sm:$0xf]
    %v3091 = vld [vmem:[%s3082 + $0x20] sm:$0xf]
    %v3092 = vld [vmem:[%s3082 + $0x24] sm:$0xf]
    %v3093 = vld [vmem:[%s3082 + $0x28] sm:$0xf]
    %v3094 = vld [vmem:[%s3082 + $0x2c] sm:$0xf]
    %v3095 = vld [vmem:[%s3082 + $0x30] sm:$0xf]
    %v3096 = vld [vmem:[%s3082 + $0x34] sm:$0xf]
    %v3097 = vld [vmem:[%s3082 + $0x38] sm:$0xf]
    %v3098 = vld [vmem:[%s3082 + $0x3c] sm:$0xf]
    %v3099 = vld [vmem:[#allocation15 + $0xa] sm:$0x1]
    %v3101 = vlaneseq
    %v3102 = vshrl.u32 %v3101, 7
    %v3103 = vsub.s32 0, %v3102
    %v3104 = vrot.slane %v3099, %v3103
    %v3122 = vunpack.c.l.b16 %v3083
    %v3123 = vunpack.c.l.b16 %v3084
    %v3124 = vunpack.c.l.b16 %v3085
    %v3125 = vunpack.c.l.b16 %v3086
    %v3126 = vunpack.c.l.b16 %v3087
    %v3127 = vunpack.c.l.b16 %v3088
    %v3128 = vunpack.c.l.b16 %v3089
    %v3129 = vunpack.c.l.b16 %v3090
    %v3130 = vunpack.c.l.b16 %v3091
    %v3131 = vunpack.c.l.b16 %v3092
    %v3132 = vunpack.c.l.b16 %v3093
    %v3133 = vunpack.c.l.b16 %v3094
    %v3134 = vunpack.c.l.b16 %v3095
    %v3135 = vunpack.c.l.b16 %v3096
    %v3136 = vunpack.c.l.b16 %v3097
    %v3137 = vunpack.c.l.b16 %v3098
    %v3138 = vpack.c.b16 %v3123, %v3122
    %v3139 = vpack.c.b16 %v3125, %v3124
    %v3140 = vpack.c.b16 %v3127, %v3126
    %v3141 = vpack.c.b16 %v3129, %v3128
    %v3142 = vpack.c.b16 %v3131, %v3130
    %v3143 = vpack.c.b16 %v3133, %v3132
    %v3144 = vpack.c.b16 %v3135, %v3134
    %v3145 = vpack.c.b16 %v3137, %v3136
    %3154 = vmatprep.subr.bf16.mxu0 0
    %3155 = vmatpush1.bf16.msra.mxu0 %v3138
    %3156 = vmatprep.subr.bf16.mxu0 0
    %3157 = vmatpush1.bf16.msra.mxu0 %v3139
    %3158 = vmatprep.subr.bf16.mxu0 0
    %3159 = vmatpush1.bf16.msra.mxu0 %v3140
    %3160 = vmatprep.subr.bf16.mxu0 0
    %3161 = vmatpush1.bf16.msra.mxu0 %v3141
    %3162 = vmatprep.subr.bf16.mxu0 0
    %3163 = vmatpush1.bf16.msra.mxu0 %v3142
    %3164 = vmatprep.subr.bf16.mxu0 0
    %3165 = vmatpush1.bf16.msra.mxu0 %v3143
    %3166 = vmatprep.subr.bf16.mxu0 0
    %3167 = vmatpush1.bf16.msra.mxu0 %v3144
    %3168 = vmatprep.subr.bf16.mxu0 0
    %3169 = vmatpush1.bf16.msra.mxu0 %v3145
    %3170 = vmatprep.subr.bf16.mxu0 0
    %3171 = vmatpush1.bf16.msra.mxu0 0
    %3172 = vmatprep.subr.bf16.mxu0 0
    %3173 = vmatpush1.bf16.msra.mxu0 0
    %3174 = vmatprep.subr.bf16.mxu0 0
    %3175 = vmatpush1.bf16.msra.mxu0 0
    %3176 = vmatprep.subr.bf16.mxu0 0
    %3177 = vmatpush1.bf16.msra.mxu0 0
    %3178 = vmatprep.subr.bf16.mxu0 0
    %3179 = vmatpush1.bf16.msra.mxu0 0
    %3180 = vmatprep.subr.bf16.mxu0 0
    %3181 = vmatpush1.bf16.msra.mxu0 0
    %3182 = vmatprep.subr.bf16.mxu0 0
    %3183 = vmatpush1.bf16.msra.mxu0 0
    %3184 = vmatprep.subr.bf16.mxu0 0
    %3185 = vmatpush1.bf16.msra.mxu0 0
    %3186 = vmatprep.mubr.bf16.mxu0 0
    %3187 = vmatmul.mubr.bf16.gmra.mrb[0].mxu0 %v3081
    %v3188 = vpop.f32.mrb[0].mxu0
    %v3189 = vadd.f32 %v3104, %v3188
    %v3190 = vpop.f32.mrb[0].mxu0
    %v3191 = vpop.f32.mrb[0].mxu0
    %v3192 = vpop.f32.mrb[0].mxu0
    %3193 = vdwg.mxu0
    %v3194 = vpack.c.bf16 %v3189, %v3189
    %v3195 = vtanh.bf16.pop %v3194
    %s3196 = scalar_lea.vmem [#allocation11], 256
    %v3197 = vld [vmem:[%s3196] sm:$0xf]
    %v3198 = vld [vmem:[%s3196 + $0x4] sm:$0xf]
    %v3199 = vld [vmem:[%s3196 + $0x8] sm:$0xf]
    %v3200 = vld [vmem:[%s3196 + $0xc] sm:$0xf]
    %v3201 = vld [vmem:[%s3196 + $0x10] sm:$0xf]
    %v3202 = vld [vmem:[%s3196 + $0x14] sm:$0xf]
    %v3203 = vld [vmem:[%s3196 + $0x18] sm:$0xf]
    %v3204 = vld [vmem:[%s3196 + $0x1c] sm:$0xf]
    %v3205 = vld [vmem:[%s3196 + $0x20] sm:$0xf]
    %v3206 = vld [vmem:[%s3196 + $0x24] sm:$0xf]
    %v3207 = vld [vmem:[%s3196 + $0x28] sm:$0xf]
    %v3208 = vld [vmem:[%s3196 + $0x2c] sm:$0xf]
    %v3209 = vld [vmem:[%s3196 + $0x30] sm:$0xf]
    %v3210 = vld [vmem:[%s3196 + $0x34] sm:$0xf]
    %v3211 = vld [vmem:[%s3196 + $0x38] sm:$0xf]
    %v3212 = vld [vmem:[%s3196 + $0x3c] sm:$0xf]
    %v3213 = vld [vmem:[#allocation15 + $0xb] sm:$0x1]
    %v3215 = vlaneseq
    %v3216 = vshrl.u32 %v3215, 7
    %v3217 = vsub.s32 0, %v3216
    %v3218 = vrot.slane %v3213, %v3217
    %v3236 = vunpack.c.l.b16 %v3197
    %v3237 = vunpack.c.l.b16 %v3198
    %v3238 = vunpack.c.l.b16 %v3199
    %v3239 = vunpack.c.l.b16 %v3200
    %v3240 = vunpack.c.l.b16 %v3201
    %v3241 = vunpack.c.l.b16 %v3202
    %v3242 = vunpack.c.l.b16 %v3203
    %v3243 = vunpack.c.l.b16 %v3204
    %v3244 = vunpack.c.l.b16 %v3205
    %v3245 = vunpack.c.l.b16 %v3206
    %v3246 = vunpack.c.l.b16 %v3207
    %v3247 = vunpack.c.l.b16 %v3208
    %v3248 = vunpack.c.l.b16 %v3209
    %v3249 = vunpack.c.l.b16 %v3210
    %v3250 = vunpack.c.l.b16 %v3211
    %v3251 = vunpack.c.l.b16 %v3212
    %v3252 = vpack.c.b16 %v3237, %v3236
    %v3253 = vpack.c.b16 %v3239, %v3238
    %v3254 = vpack.c.b16 %v3241, %v3240
    %v3255 = vpack.c.b16 %v3243, %v3242
    %v3256 = vpack.c.b16 %v3245, %v3244
    %v3257 = vpack.c.b16 %v3247, %v3246
    %v3258 = vpack.c.b16 %v3249, %v3248
    %v3259 = vpack.c.b16 %v3251, %v3250
    %3268 = vmatprep.subr.bf16.mxu0 0
    %3269 = vmatpush1.bf16.msra.mxu0 %v3252
    %3270 = vmatprep.subr.bf16.mxu0 0
    %3271 = vmatpush1.bf16.msra.mxu0 %v3253
    %3272 = vmatprep.subr.bf16.mxu0 0
    %3273 = vmatpush1.bf16.msra.mxu0 %v3254
    %3274 = vmatprep.subr.bf16.mxu0 0
    %3275 = vmatpush1.bf16.msra.mxu0 %v3255
    %3276 = vmatprep.subr.bf16.mxu0 0
    %3277 = vmatpush1.bf16.msra.mxu0 %v3256
    %3278 = vmatprep.subr.bf16.mxu0 0
    %3279 = vmatpush1.bf16.msra.mxu0 %v3257
    %3280 = vmatprep.subr.bf16.mxu0 0
    %3281 = vmatpush1.bf16.msra.mxu0 %v3258
    %3282 = vmatprep.subr.bf16.mxu0 0
    %3283 = vmatpush1.bf16.msra.mxu0 %v3259
    %3284 = vmatprep.subr.bf16.mxu0 0
    %3285 = vmatpush1.bf16.msra.mxu0 0
    %3286 = vmatprep.subr.bf16.mxu0 0
    %3287 = vmatpush1.bf16.msra.mxu0 0
    %3288 = vmatprep.subr.bf16.mxu0 0
    %3289 = vmatpush1.bf16.msra.mxu0 0
    %3290 = vmatprep.subr.bf16.mxu0 0
    %3291 = vmatpush1.bf16.msra.mxu0 0
    %3292 = vmatprep.subr.bf16.mxu0 0
    %3293 = vmatpush1.bf16.msra.mxu0 0
    %3294 = vmatprep.subr.bf16.mxu0 0
    %3295 = vmatpush1.bf16.msra.mxu0 0
    %3296 = vmatprep.subr.bf16.mxu0 0
    %3297 = vmatpush1.bf16.msra.mxu0 0
    %3298 = vmatprep.subr.bf16.mxu0 0
    %3299 = vmatpush1.bf16.msra.mxu0 0
    %3300 = vmatprep.mubr.bf16.mxu0 0
    %3301 = vmatmul.mubr.bf16.gmra.mrb[0].mxu0 %v3195
    %v3302 = vpop.f32.mrb[0].mxu0
    %v3303 = vadd.f32 %v3218, %v3302
    %v3304 = vpop.f32.mrb[0].mxu0
    %v3305 = vpop.f32.mrb[0].mxu0
    %v3306 = vpop.f32.mrb[0].mxu0
    %3307 = vdwg.mxu0
    %v3308 = vpack.c.bf16 %v3303, %v3303
    %v3309 = vtanh.bf16.pop %v3308
    %v3310 = vld [vmem:[#allocation12] sm:$0xff]
    %v3311 = vld [vmem:[#allocation12 + $0x8] sm:$0xff]
    %v3312 = vld [vmem:[#allocation12 + $0x10] sm:$0xff]
    %v3313 = vld [vmem:[#allocation12 + $0x18] sm:$0xff]
    %v3314 = vld [vmem:[#allocation12 + $0x20] sm:$0xff]
    %v3315 = vld [vmem:[#allocation12 + $0x28] sm:$0xff]
    %v3316 = vld [vmem:[#allocation12 + $0x30] sm:$0xff]
    %v3317 = vld [vmem:[#allocation12 + $0x38] sm:$0xff]
    %v3318 = vld [vmem:[#allocation12 + $0x40] sm:$0xff]
    %v3319 = vld [vmem:[#allocation12 + $0x48] sm:$0xff]
    %v3320 = vld [vmem:[#allocation12 + $0x50] sm:$0xff]
    %v3321 = vld [vmem:[#allocation12 + $0x58] sm:$0xff]
    %v3322 = vld [vmem:[#allocation12 + $0x60] sm:$0xff]
    %v3323 = vld [vmem:[#allocation12 + $0x68] sm:$0xff]
    %v3324 = vld [vmem:[#allocation12 + $0x70] sm:$0xff]
    %v3325 = vld [vmem:[#allocation12 + $0x78] sm:$0xff]
    %v3326 = vld [vmem:[#allocation15 + $0xc] sm:$0x3]
    %v3328 = vlaneseq
    %v3329 = vshrl.u32 %v3328, 7
    %v3330 = vsub.s32 0, %v3329
    %v3331 = vrot.slane %v3326, %v3330
    %v3332 = vlaneseq
    %v3333 = vshrl.u32 %v3332, 7
    %v3334 = vsub.s32 1, %v3333
    %v3335 = vrot.slane %v3326, %v3334
    %v3354 = vunpack.c.l.b16 %v3310
    %v3355 = vunpack.c.h.b16 %v3310
    %v3356 = vunpack.c.l.b16 %v3311
    %v3357 = vunpack.c.h.b16 %v3311
    %v3358 = vunpack.c.l.b16 %v3312
    %v3359 = vunpack.c.h.b16 %v3312
    %v3360 = vunpack.c.l.b16 %v3313
    %v3361 = vunpack.c.h.b16 %v3313
    %v3362 = vunpack.c.l.b16 %v3314
    %v3363 = vunpack.c.h.b16 %v3314
    %v3364 = vunpack.c.l.b16 %v3315
    %v3365 = vunpack.c.h.b16 %v3315
    %v3366 = vunpack.c.l.b16 %v3316
    %v3367 = vunpack.c.h.b16 %v3316
    %v3368 = vunpack.c.l.b16 %v3317
    %v3369 = vunpack.c.h.b16 %v3317
    %v3370 = vunpack.c.l.b16 %v3318
    %v3371 = vunpack.c.h.b16 %v3318
    %v3372 = vunpack.c.l.b16 %v3319
    %v3373 = vunpack.c.h.b16 %v3319
    %v3374 = vunpack.c.l.b16 %v3320
    %v3375 = vunpack.c.h.b16 %v3320
    %v3376 = vunpack.c.l.b16 %v3321
    %v3377 = vunpack.c.h.b16 %v3321
    %v3378 = vunpack.c.l.b16 %v3322
    %v3379 = vunpack.c.h.b16 %v3322
    %v3380 = vunpack.c.l.b16 %v3323
    %v3381 = vunpack.c.h.b16 %v3323
    %v3382 = vunpack.c.l.b16 %v3324
    %v3383 = vunpack.c.h.b16 %v3324
    %v3384 = vunpack.c.l.b16 %v3325
    %v3385 = vunpack.c.h.b16 %v3325
    %v3386 = vpack.c.b16 %v3356, %v3354
    %v3387 = vpack.c.b16 %v3357, %v3355
    %v3388 = vpack.c.b16 %v3360, %v3358
    %v3389 = vpack.c.b16 %v3361, %v3359
    %v3390 = vpack.c.b16 %v3364, %v3362
    %v3391 = vpack.c.b16 %v3365, %v3363
    %v3392 = vpack.c.b16 %v3368, %v3366
    %v3393 = vpack.c.b16 %v3369, %v3367
    %v3394 = vpack.c.b16 %v3372, %v3370
    %v3395 = vpack.c.b16 %v3373, %v3371
    %v3396 = vpack.c.b16 %v3376, %v3374
    %v3397 = vpack.c.b16 %v3377, %v3375
    %v3398 = vpack.c.b16 %v3380, %v3378
    %v3399 = vpack.c.b16 %v3381, %v3379
    %v3400 = vpack.c.b16 %v3384, %v3382
    %v3401 = vpack.c.b16 %v3385, %v3383
    %3418 = vmatprep.subr.bf16.mxu0 %v3387
    %3419 = vmatpush1.bf16.msra.mxu0 %v3386
    %3420 = vmatprep.subr.bf16.mxu0 %v3389
    %3421 = vmatpush1.bf16.msra.mxu0 %v3388
    %3422 = vmatprep.subr.bf16.mxu0 %v3391
    %3423 = vmatpush1.bf16.msra.mxu0 %v3390
    %3424 = vmatprep.subr.bf16.mxu0 %v3393
    %3425 = vmatpush1.bf16.msra.mxu0 %v3392
    %3426 = vmatprep.subr.bf16.mxu0 %v3395
    %3427 = vmatpush1.bf16.msra.mxu0 %v3394
    %3428 = vmatprep.subr.bf16.mxu0 %v3397
    %3429 = vmatpush1.bf16.msra.mxu0 %v3396
    %3430 = vmatprep.subr.bf16.mxu0 %v3399
    %3431 = vmatpush1.bf16.msra.mxu0 %v3398
    %3432 = vmatprep.subr.bf16.mxu0 %v3401
    %3433 = vmatpush1.bf16.msra.mxu0 %v3400
    %3434 = vmatprep.subr.bf16.mxu0 0
    %3435 = vmatpush1.bf16.msra.mxu0 0
    %3436 = vmatprep.subr.bf16.mxu0 0
    %3437 = vmatpush1.bf16.msra.mxu0 0
    %3438 = vmatprep.subr.bf16.mxu0 0
    %3439 = vmatpush1.bf16.msra.mxu0 0
    %3440 = vmatprep.subr.bf16.mxu0 0
    %3441 = vmatpush1.bf16.msra.mxu0 0
    %3442 = vmatprep.subr.bf16.mxu0 0
    %3443 = vmatpush1.bf16.msra.mxu0 0
    %3444 = vmatprep.subr.bf16.mxu0 0
    %3445 = vmatpush1.bf16.msra.mxu0 0
    %3446 = vmatprep.subr.bf16.mxu0 0
    %3447 = vmatpush1.bf16.msra.mxu0 0
    %3448 = vmatprep.subr.bf16.mxu0 0
    %3449 = vmatpush1.bf16.msra.mxu0 0
    %3450 = vmatprep.mubr.bf16.mxu0 0
    %3451 = vmatmul.mubr.bf16.gmra.mrb[0].mxu0 %v3309
    %v3452 = vpop.f32.mrb[0].mxu0
    %v3453 = vadd.f32 %v3331, %v3452
    %v3454 = vpop.f32.mrb[0].mxu0
    %v3455 = vadd.f32 %v3335, %v3454
    %v3456 = vpop.f32.mrb[0].mxu0
    %v3457 = vpop.f32.mrb[0].mxu0
    %3458 = vdwg.mxu0
    %v3459 = vpack.c.bf16 %v3453, %v3453
    %v3460 = vpack.c.bf16 %v3455, %v3455
    %v3461 = vxor.u32 %v3459, 2147516416
    %v3462 = vxor.u32 %v3460, 2147516416
    %v3464 = vmul.bf16 %v3461, 1069105081
    %v3465 = vpow.bf16.pop %v3464
    %v3467 = vmul.bf16 %v3462, 1069105081
    %v3468 = vpow.bf16.pop %v3467
    %v3469 = vadd.bf16 %v3465, 1065369472
    %v3470 = vadd.bf16 %v3468, 1065369472
    %v3471 = vrcp.bf16.pop %v3469
    %v3472 = vmul.bf16 1065369472, %v3471
    %v3473 = vrcp.bf16.pop %v3470
    %v3474 = vmul.bf16 1065369472, %v3473
    %v3475 = vld [vmem:[#allocation14] sm:$0xff]
    %v3476 = vld [vmem:[#allocation14 + $0x8] sm:$0xff]
    %v3477 = vld [vmem:[#allocation14 + $0x10] sm:$0xff]
    %v3478 = vld [vmem:[#allocation14 + $0x18] sm:$0xf]
    %v3479 = vld [vmem:[#allocation14 + $0x1c] sm:$0xff]
    %v3480 = vld [vmem:[#allocation14 + $0x24] sm:$0xff]
    %v3481 = vld [vmem:[#allocation14 + $0x2c] sm:$0xff]
    %v3482 = vld [vmem:[#allocation14 + $0x34] sm:$0xf]
    %v3483 = vld [vmem:[#allocation14 + $0x38] sm:$0xff]
    %v3484 = vld [vmem:[#allocation14 + $0x40] sm:$0xff]
    %v3485 = vld [vmem:[#allocation14 + $0x48] sm:$0xff]
    %v3486 = vld [vmem:[#allocation14 + $0x50] sm:$0xf]
    %v3487 = vld [vmem:[#allocation14 + $0x54] sm:$0xff]
    %v3488 = vld [vmem:[#allocation14 + $0x5c] sm:$0xff]
    %v3489 = vld [vmem:[#allocation14 + $0x64] sm:$0xff]
    %v3490 = vld [vmem:[#allocation14 + $0x6c] sm:$0xf]
    %v3491 = vld [vmem:[#allocation14 + $0x70] sm:$0xff]
    %v3492 = vld [vmem:[#allocation14 + $0x78] sm:$0xff]
    %v3493 = vld [vmem:[#allocation14 + $0x80] sm:$0xff]
    %v3494 = vld [vmem:[#allocation14 + $0x88] sm:$0xf]
    %v3495 = vld [vmem:[#allocation14 + $0x8c] sm:$0xff]
    %v3496 = vld [vmem:[#allocation14 + $0x94] sm:$0xff]
    %v3497 = vld [vmem:[#allocation14 + $0x9c] sm:$0xff]
    %v3498 = vld [vmem:[#allocation14 + $0xa4] sm:$0xf]
    %v3499 = vld [vmem:[#allocation14 + $0xa8] sm:$0xff]
    %v3500 = vld [vmem:[#allocation14 + $0xb0] sm:$0xff]
    %v3501 = vld [vmem:[#allocation14 + $0xb8] sm:$0xff]
    %v3502 = vld [vmem:[#allocation14 + $0xc0] sm:$0xf]
    %v3503 = vld [vmem:[#allocation14 + $0xc4] sm:$0xff]
    %v3504 = vld [vmem:[#allocation14 + $0xcc] sm:$0xff]
    %v3505 = vld [vmem:[#allocation14 + $0xd4] sm:$0xff]
    %v3506 = vld [vmem:[#allocation14 + $0xdc] sm:$0xf]
    %v3507 = vld [vmem:[#allocation14 + $0xe0] sm:$0xff]
    %v3508 = vld [vmem:[#allocation14 + $0xe8] sm:$0xff]
    %v3509 = vld [vmem:[#allocation14 + $0xf0] sm:$0xff]
    %v3510 = vld [vmem:[#allocation14 + $0xf8] sm:$0xf]
    %v3511 = vld [vmem:[#allocation14 + $0xfc] sm:$0xff]
    %v3512 = vld [vmem:[#allocation14 + $0x104] sm:$0xff]
    %v3513 = vld [vmem:[#allocation14 + $0x10c] sm:$0xff]
    %v3514 = vld [vmem:[#allocation14 + $0x114] sm:$0xf]
    %v3515 = vld [vmem:[#allocation14 + $0x118] sm:$0xff]
    %v3516 = vld [vmem:[#allocation14 + $0x120] sm:$0xff]
    %v3517 = vld [vmem:[#allocation14 + $0x128] sm:$0xff]
    %v3518 = vld [vmem:[#allocation14 + $0x130] sm:$0xf]
    %v3519 = vld [vmem:[#allocation14 + $0x134] sm:$0xff]
    %v3520 = vld [vmem:[#allocation14 + $0x13c] sm:$0xff]
    %v3521 = vld [vmem:[#allocation14 + $0x144] sm:$0xff]
    %v3522 = vld [vmem:[#allocation14 + $0x14c] sm:$0xf]
    %v3523 = vld [vmem:[#allocation14 + $0x150] sm:$0xff]
    %v3524 = vld [vmem:[#allocation14 + $0x158] sm:$0xff]
    %v3525 = vld [vmem:[#allocation14 + $0x160] sm:$0xff]
    %v3526 = vld [vmem:[#allocation14 + $0x168] sm:$0xf]
    %v3527 = vld [vmem:[#allocation14 + $0x16c] sm:$0xff]
    %v3528 = vld [vmem:[#allocation14 + $0x174] sm:$0xff]
    %v3529 = vld [vmem:[#allocation14 + $0x17c] sm:$0xff]
    %v3530 = vld [vmem:[#allocation14 + $0x184] sm:$0xf]
    %v3531 = vld [vmem:[#allocation14 + $0x188] sm:$0xff]
    %v3532 = vld [vmem:[#allocation14 + $0x190] sm:$0xff]
    %v3533 = vld [vmem:[#allocation14 + $0x198] sm:$0xff]
    %v3534 = vld [vmem:[#allocation14 + $0x1a0] sm:$0xf]
    %v3535 = vld [vmem:[#allocation14 + $0x1a4] sm:$0xff]
    %v3536 = vld [vmem:[#allocation14 + $0x1ac] sm:$0xff]
    %v3537 = vld [vmem:[#allocation14 + $0x1b4] sm:$0xff]
    %v3538 = vld [vmem:[#allocation14 + $0x1bc] sm:$0xf]
    %v3539 = vld [vmem:[#allocation14 + $0x1c0] sm:$0xff]
    %v3540 = vld [vmem:[#allocation14 + $0x1c8] sm:$0xff]
    %v3541 = vld [vmem:[#allocation14 + $0x1d0] sm:$0xff]
    %v3542 = vld [vmem:[#allocation14 + $0x1d8] sm:$0xf]
    %v3543 = vld [vmem:[#allocation14 + $0x1dc] sm:$0xff]
    %v3544 = vld [vmem:[#allocation14 + $0x1e4] sm:$0xff]
    %v3545 = vld [vmem:[#allocation14 + $0x1ec] sm:$0xff]
    %v3546 = vld [vmem:[#allocation14 + $0x1f4] sm:$0xf]
    %v3547 = vld [vmem:[#allocation14 + $0x1f8] sm:$0xff]
    %v3548 = vld [vmem:[#allocation14 + $0x200] sm:$0xff]
    %v3549 = vld [vmem:[#allocation14 + $0x208] sm:$0xff]
    %v3550 = vld [vmem:[#allocation14 + $0x210] sm:$0xf]
    %v3551 = vld [vmem:[#allocation14 + $0x214] sm:$0xff]
    %v3552 = vld [vmem:[#allocation14 + $0x21c] sm:$0xff]
    %v3553 = vld [vmem:[#allocation14 + $0x224] sm:$0xff]
    %v3554 = vld [vmem:[#allocation14 + $0x22c] sm:$0xf]
    %v3555 = vld [vmem:[#allocation14 + $0x230] sm:$0xff]
    %v3556 = vld [vmem:[#allocation14 + $0x238] sm:$0xff]
    %v3557 = vld [vmem:[#allocation14 + $0x240] sm:$0xff]
    %v3558 = vld [vmem:[#allocation14 + $0x248] sm:$0xf]
    %v3559 = vld [vmem:[#allocation14 + $0x24c] sm:$0xff]
    %v3560 = vld [vmem:[#allocation14 + $0x254] sm:$0xff]
    %v3561 = vld [vmem:[#allocation14 + $0x25c] sm:$0xff]
    %v3562 = vld [vmem:[#allocation14 + $0x264] sm:$0xf]
    %v3563 = vld [vmem:[#allocation14 + $0x268] sm:$0xff]
    %v3564 = vld [vmem:[#allocation14 + $0x270] sm:$0xff]
    %v3565 = vld [vmem:[#allocation14 + $0x278] sm:$0xff]
    %v3566 = vld [vmem:[#allocation14 + $0x280] sm:$0xf]
    %v3567 = vld [vmem:[#allocation14 + $0x284] sm:$0xff]
    %v3568 = vld [vmem:[#allocation14 + $0x28c] sm:$0xff]
    %v3569 = vld [vmem:[#allocation14 + $0x294] sm:$0xff]
    %v3570 = vld [vmem:[#allocation14 + $0x29c] sm:$0xf]
    %v3571 = vld [vmem:[#allocation14 + $0x2a0] sm:$0xff]
    %v3572 = vld [vmem:[#allocation14 + $0x2a8] sm:$0xff]
    %v3573 = vld [vmem:[#allocation14 + $0x2b0] sm:$0xff]
    %v3574 = vld [vmem:[#allocation14 + $0x2b8] sm:$0xf]
    %v3575 = vld [vmem:[#allocation14 + $0x2bc] sm:$0xff]
    %v3576 = vld [vmem:[#allocation14 + $0x2c4] sm:$0xff]
    %v3577 = vld [vmem:[#allocation14 + $0x2cc] sm:$0xff]
    %v3578 = vld [vmem:[#allocation14 + $0x2d4] sm:$0xf]
    %v3579 = vld [vmem:[#allocation14 + $0x2d8] sm:$0xff]
    %v3580 = vld [vmem:[#allocation14 + $0x2e0] sm:$0xff]
    %v3581 = vld [vmem:[#allocation14 + $0x2e8] sm:$0xff]
    %v3582 = vld [vmem:[#allocation14 + $0x2f0] sm:$0xf]
    %v3583 = vld [vmem:[#allocation14 + $0x2f4] sm:$0xff]
    %v3584 = vld [vmem:[#allocation14 + $0x2fc] sm:$0xff]
    %v3585 = vld [vmem:[#allocation14 + $0x304] sm:$0xff]
    %v3586 = vld [vmem:[#allocation14 + $0x30c] sm:$0xf]
    %v3587 = vld [vmem:[#allocation14 + $0x310] sm:$0xff]
    %v3588 = vld [vmem:[#allocation14 + $0x318] sm:$0xff]
    %v3589 = vld [vmem:[#allocation14 + $0x320] sm:$0xff]
    %v3590 = vld [vmem:[#allocation14 + $0x328] sm:$0xf]
    %v3591 = vld [vmem:[#allocation14 + $0x32c] sm:$0xff]
    %v3592 = vld [vmem:[#allocation14 + $0x334] sm:$0xff]
    %v3593 = vld [vmem:[#allocation14 + $0x33c] sm:$0xff]
    %v3594 = vld [vmem:[#allocation14 + $0x344] sm:$0xf]
    %v3595 = vld [vmem:[#allocation14 + $0x348] sm:$0xff]
    %v3596 = vld [vmem:[#allocation14 + $0x350] sm:$0xff]
    %v3597 = vld [vmem:[#allocation14 + $0x358] sm:$0xff]
    %v3598 = vld [vmem:[#allocation14 + $0x360] sm:$0xf]
    %v3599 = vld [vmem:[#allocation14 + $0x364] sm:$0xff]
    %v3600 = vld [vmem:[#allocation14 + $0x36c] sm:$0xff]
    %v3601 = vld [vmem:[#allocation14 + $0x374] sm:$0xff]
    %v3602 = vld [vmem:[#allocation14 + $0x37c] sm:$0xf]
    %v3603 = vld [vmem:[#allocation15 + $0xe] sm:$0xff]
    %v3605 = vlaneseq
    %v3606 = vshrl.u32 %v3605, 7
    %v3607 = vsub.s32 0, %v3606
    %v3608 = vrot.slane %v3603, %v3607
    %v3609 = vlaneseq
    %v3610 = vshrl.u32 %v3609, 7
    %v3611 = vsub.s32 1, %v3610
    %v3612 = vrot.slane %v3603, %v3611
    %v3613 = vlaneseq
    %v3614 = vshrl.u32 %v3613, 7
    %v3615 = vsub.s32 2, %v3614
    %v3616 = vrot.slane %v3603, %v3615
    %v3617 = vlaneseq
    %v3618 = vshrl.u32 %v3617, 7
    %v3619 = vsub.s32 3, %v3618
    %v3620 = vrot.slane %v3603, %v3619
    %v3621 = vlaneseq
    %v3622 = vshrl.u32 %v3621, 7
    %v3623 = vsub.s32 4, %v3622
    %v3624 = vrot.slane %v3603, %v3623
    %v3625 = vlaneseq
    %v3626 = vshrl.u32 %v3625, 7
    %v3627 = vsub.s32 5, %v3626
    %v3628 = vrot.slane %v3603, %v3627
    %v3629 = vlaneseq
    %v3630 = vshrl.u32 %v3629, 7
    %v3631 = vsub.s32 6, %v3630
    %v3632 = vrot.slane %v3603, %v3631
    %v3768 = vunpack.c.l.b16 %v3475
    %v3769 = vunpack.c.h.b16 %v3475
    %v3770 = vunpack.c.l.b16 %v3476
    %v3771 = vunpack.c.h.b16 %v3476
    %v3772 = vunpack.c.l.b16 %v3477
    %v3773 = vunpack.c.h.b16 %v3477
    %v3774 = vunpack.c.l.b16 %v3478
    %v3775 = vunpack.c.l.b16 %v3479
    %v3776 = vunpack.c.h.b16 %v3479
    %v3777 = vunpack.c.l.b16 %v3480
    %v3778 = vunpack.c.h.b16 %v3480
    %v3779 = vunpack.c.l.b16 %v3481
    %v3780 = vunpack.c.h.b16 %v3481
    %v3781 = vunpack.c.l.b16 %v3482
    %v3782 = vunpack.c.l.b16 %v3483
    %v3783 = vunpack.c.h.b16 %v3483
    %v3784 = vunpack.c.l.b16 %v3484
    %v3785 = vunpack.c.h.b16 %v3484
    %v3786 = vunpack.c.l.b16 %v3485
    %v3787 = vunpack.c.h.b16 %v3485
    %v3788 = vunpack.c.l.b16 %v3486
    %v3789 = vunpack.c.l.b16 %v3487
    %v3790 = vunpack.c.h.b16 %v3487
    %v3791 = vunpack.c.l.b16 %v3488
    %v3792 = vunpack.c.h.b16 %v3488
    %v3793 = vunpack.c.l.b16 %v3489
    %v3794 = vunpack.c.h.b16 %v3489
    %v3795 = vunpack.c.l.b16 %v3490
    %v3796 = vunpack.c.l.b16 %v3491
    %v3797 = vunpack.c.h.b16 %v3491
    %v3798 = vunpack.c.l.b16 %v3492
    %v3799 = vunpack.c.h.b16 %v3492
    %v3800 = vunpack.c.l.b16 %v3493
    %v3801 = vunpack.c.h.b16 %v3493
    %v3802 = vunpack.c.l.b16 %v3494
    %v3803 = vunpack.c.l.b16 %v3495
    %v3804 = vunpack.c.h.b16 %v3495
    %v3805 = vunpack.c.l.b16 %v3496
    %v3806 = vunpack.c.h.b16 %v3496
    %v3807 = vunpack.c.l.b16 %v3497
    %v3808 = vunpack.c.h.b16 %v3497
    %v3809 = vunpack.c.l.b16 %v3498
    %v3810 = vunpack.c.l.b16 %v3499
    %v3811 = vunpack.c.h.b16 %v3499
    %v3812 = vunpack.c.l.b16 %v3500
    %v3813 = vunpack.c.h.b16 %v3500
    %v3814 = vunpack.c.l.b16 %v3501
    %v3815 = vunpack.c.h.b16 %v3501
    %v3816 = vunpack.c.l.b16 %v3502
    %v3817 = vunpack.c.l.b16 %v3503
    %v3818 = vunpack.c.h.b16 %v3503
    %v3819 = vunpack.c.l.b16 %v3504
    %v3820 = vunpack.c.h.b16 %v3504
    %v3821 = vunpack.c.l.b16 %v3505
    %v3822 = vunpack.c.h.b16 %v3505
    %v3823 = vunpack.c.l.b16 %v3506
    %v3824 = vunpack.c.l.b16 %v3507
    %v3825 = vunpack.c.h.b16 %v3507
    %v3826 = vunpack.c.l.b16 %v3508
    %v3827 = vunpack.c.h.b16 %v3508
    %v3828 = vunpack.c.l.b16 %v3509
    %v3829 = vunpack.c.h.b16 %v3509
    %v3830 = vunpack.c.l.b16 %v3510
    %v3831 = vunpack.c.l.b16 %v3511
    %v3832 = vunpack.c.h.b16 %v3511
    %v3833 = vunpack.c.l.b16 %v3512
    %v3834 = vunpack.c.h.b16 %v3512
    %v3835 = vunpack.c.l.b16 %v3513
    %v3836 = vunpack.c.h.b16 %v3513
    %v3837 = vunpack.c.l.b16 %v3514
    %v3838 = vunpack.c.l.b16 %v3515
    %v3839 = vunpack.c.h.b16 %v3515
    %v3840 = vunpack.c.l.b16 %v3516
    %v3841 = vunpack.c.h.b16 %v3516
    %v3842 = vunpack.c.l.b16 %v3517
    %v3843 = vunpack.c.h.b16 %v3517
    %v3844 = vunpack.c.l.b16 %v3518
    %v3845 = vunpack.c.l.b16 %v3519
    %v3846 = vunpack.c.h.b16 %v3519
    %v3847 = vunpack.c.l.b16 %v3520
    %v3848 = vunpack.c.h.b16 %v3520
    %v3849 = vunpack.c.l.b16 %v3521
    %v3850 = vunpack.c.h.b16 %v3521
    %v3851 = vunpack.c.l.b16 %v3522
    %v3852 = vunpack.c.l.b16 %v3523
    %v3853 = vunpack.c.h.b16 %v3523
    %v3854 = vunpack.c.l.b16 %v3524
    %v3855 = vunpack.c.h.b16 %v3524
    %v3856 = vunpack.c.l.b16 %v3525
    %v3857 = vunpack.c.h.b16 %v3525
    %v3858 = vunpack.c.l.b16 %v3526
    %v3859 = vunpack.c.l.b16 %v3527
    %v3860 = vunpack.c.h.b16 %v3527
    %v3861 = vunpack.c.l.b16 %v3528
    %v3862 = vunpack.c.h.b16 %v3528
    %v3863 = vunpack.c.l.b16 %v3529
    %v3864 = vunpack.c.h.b16 %v3529
    %v3865 = vunpack.c.l.b16 %v3530
    %v3866 = vunpack.c.l.b16 %v3531
    %v3867 = vunpack.c.h.b16 %v3531
    %v3868 = vunpack.c.l.b16 %v3532
    %v3869 = vunpack.c.h.b16 %v3532
    %v3870 = vunpack.c.l.b16 %v3533
    %v3871 = vunpack.c.h.b16 %v3533
    %v3872 = vunpack.c.l.b16 %v3534
    %v3873 = vunpack.c.l.b16 %v3535
    %v3874 = vunpack.c.h.b16 %v3535
    %v3875 = vunpack.c.l.b16 %v3536
    %v3876 = vunpack.c.h.b16 %v3536
    %v3877 = vunpack.c.l.b16 %v3537
    %v3878 = vunpack.c.h.b16 %v3537
    %v3879 = vunpack.c.l.b16 %v3538
    %v3880 = vunpack.c.l.b16 %v3539
    %v3881 = vunpack.c.h.b16 %v3539
    %v3882 = vunpack.c.l.b16 %v3540
    %v3883 = vunpack.c.h.b16 %v3540
    %v3884 = vunpack.c.l.b16 %v3541
    %v3885 = vunpack.c.h.b16 %v3541
    %v3886 = vunpack.c.l.b16 %v3542
    %v3887 = vunpack.c.l.b16 %v3543
    %v3888 = vunpack.c.h.b16 %v3543
    %v3889 = vunpack.c.l.b16 %v3544
    %v3890 = vunpack.c.h.b16 %v3544
    %v3891 = vunpack.c.l.b16 %v3545
    %v3892 = vunpack.c.h.b16 %v3545
    %v3893 = vunpack.c.l.b16 %v3546
    %v3894 = vunpack.c.l.b16 %v3547
    %v3895 = vunpack.c.h.b16 %v3547
    %v3896 = vunpack.c.l.b16 %v3548
    %v3897 = vunpack.c.h.b16 %v3548
    %v3898 = vunpack.c.l.b16 %v3549
    %v3899 = vunpack.c.h.b16 %v3549
    %v3900 = vunpack.c.l.b16 %v3550
    %v3901 = vunpack.c.l.b16 %v3551
    %v3902 = vunpack.c.h.b16 %v3551
    %v3903 = vunpack.c.l.b16 %v3552
    %v3904 = vunpack.c.h.b16 %v3552
    %v3905 = vunpack.c.l.b16 %v3553
    %v3906 = vunpack.c.h.b16 %v3553
    %v3907 = vunpack.c.l.b16 %v3554
    %v3908 = vunpack.c.l.b16 %v3555
    %v3909 = vunpack.c.h.b16 %v3555
    %v3910 = vunpack.c.l.b16 %v3556
    %v3911 = vunpack.c.h.b16 %v3556
    %v3912 = vunpack.c.l.b16 %v3557
    %v3913 = vunpack.c.h.b16 %v3557
    %v3914 = vunpack.c.l.b16 %v3558
    %v3915 = vunpack.c.l.b16 %v3559
    %v3916 = vunpack.c.h.b16 %v3559
    %v3917 = vunpack.c.l.b16 %v3560
    %v3918 = vunpack.c.h.b16 %v3560
    %v3919 = vunpack.c.l.b16 %v3561
    %v3920 = vunpack.c.h.b16 %v3561
    %v3921 = vunpack.c.l.b16 %v3562
    %v3922 = vunpack.c.l.b16 %v3563
    %v3923 = vunpack.c.h.b16 %v3563
    %v3924 = vunpack.c.l.b16 %v3564
    %v3925 = vunpack.c.h.b16 %v3564
    %v3926 = vunpack.c.l.b16 %v3565
    %v3927 = vunpack.c.h.b16 %v3565
    %v3928 = vunpack.c.l.b16 %v3566
    %v3929 = vunpack.c.l.b16 %v3567
    %v3930 = vunpack.c.h.b16 %v3567
    %v3931 = vunpack.c.l.b16 %v3568
    %v3932 = vunpack.c.h.b16 %v3568
    %v3933 = vunpack.c.l.b16 %v3569
    %v3934 = vunpack.c.h.b16 %v3569
    %v3935 = vunpack.c.l.b16 %v3570
    %v3936 = vunpack.c.l.b16 %v3571
    %v3937 = vunpack.c.h.b16 %v3571
    %v3938 = vunpack.c.l.b16 %v3572
    %v3939 = vunpack.c.h.b16 %v3572
    %v3940 = vunpack.c.l.b16 %v3573
    %v3941 = vunpack.c.h.b16 %v3573
    %v3942 = vunpack.c.l.b16 %v3574
    %v3943 = vunpack.c.l.b16 %v3575
    %v3944 = vunpack.c.h.b16 %v3575
    %v3945 = vunpack.c.l.b16 %v3576
    %v3946 = vunpack.c.h.b16 %v3576
    %v3947 = vunpack.c.l.b16 %v3577
    %v3948 = vunpack.c.h.b16 %v3577
    %v3949 = vunpack.c.l.b16 %v3578
    %v3950 = vunpack.c.l.b16 %v3579
    %v3951 = vunpack.c.h.b16 %v3579
    %v3952 = vunpack.c.l.b16 %v3580
    %v3953 = vunpack.c.h.b16 %v3580
    %v3954 = vunpack.c.l.b16 %v3581
    %v3955 = vunpack.c.h.b16 %v3581
    %v3956 = vunpack.c.l.b16 %v3582
    %v3957 = vunpack.c.l.b16 %v3583
    %v3958 = vunpack.c.h.b16 %v3583
    %v3959 = vunpack.c.l.b16 %v3584
    %v3960 = vunpack.c.h.b16 %v3584
    %v3961 = vunpack.c.l.b16 %v3585
    %v3962 = vunpack.c.h.b16 %v3585
    %v3963 = vunpack.c.l.b16 %v3586
    %v3964 = vunpack.c.l.b16 %v3587
    %v3965 = vunpack.c.h.b16 %v3587
    %v3966 = vunpack.c.l.b16 %v3588
    %v3967 = vunpack.c.h.b16 %v3588
    %v3968 = vunpack.c.l.b16 %v3589
    %v3969 = vunpack.c.h.b16 %v3589
    %v3970 = vunpack.c.l.b16 %v3590
    %v3971 = vunpack.c.l.b16 %v3591
    %v3972 = vunpack.c.h.b16 %v3591
    %v3973 = vunpack.c.l.b16 %v3592
    %v3974 = vunpack.c.h.b16 %v3592
    %v3975 = vunpack.c.l.b16 %v3593
    %v3976 = vunpack.c.h.b16 %v3593
    %v3977 = vunpack.c.l.b16 %v3594
    %v3978 = vunpack.c.l.b16 %v3595
    %v3979 = vunpack.c.h.b16 %v3595
    %v3980 = vunpack.c.l.b16 %v3596
    %v3981 = vunpack.c.h.b16 %v3596
    %v3982 = vunpack.c.l.b16 %v3597
    %v3983 = vunpack.c.h.b16 %v3597
    %v3984 = vunpack.c.l.b16 %v3598
    %v3985 = vunpack.c.l.b16 %v3599
    %v3986 = vunpack.c.h.b16 %v3599
    %v3987 = vunpack.c.l.b16 %v3600
    %v3988 = vunpack.c.h.b16 %v3600
    %v3989 = vunpack.c.l.b16 %v3601
    %v3990 = vunpack.c.h.b16 %v3601
    %v3991 = vunpack.c.l.b16 %v3602
    %v3992 = vpack.c.b16 %v3775, %v3768
    %v3993 = vpack.c.b16 %v3776, %v3769
    %v3994 = vpack.c.b16 %v3777, %v3770
    %v3995 = vpack.c.b16 %v3778, %v3771
    %v3996 = vpack.c.b16 %v3779, %v3772
    %v3997 = vpack.c.b16 %v3780, %v3773
    %v3998 = vpack.c.b16 %v3781, %v3774
    %v3999 = vpack.c.b16 %v3789, %v3782
    %v4000 = vpack.c.b16 %v3790, %v3783
    %v4001 = vpack.c.b16 %v3791, %v3784
    %v4002 = vpack.c.b16 %v3792, %v3785
    %v4003 = vpack.c.b16 %v3793, %v3786
    %v4004 = vpack.c.b16 %v3794, %v3787
    %v4005 = vpack.c.b16 %v3795, %v3788
    %v4006 = vpack.c.b16 %v3803, %v3796
    %v4007 = vpack.c.b16 %v3804, %v3797
    %v4008 = vpack.c.b16 %v3805, %v3798
    %v4009 = vpack.c.b16 %v3806, %v3799
    %v4010 = vpack.c.b16 %v3807, %v3800
    %v4011 = vpack.c.b16 %v3808, %v3801
    %v4012 = vpack.c.b16 %v3809, %v3802
    %v4013 = vpack.c.b16 %v3817, %v3810
    %v4014 = vpack.c.b16 %v3818, %v3811
    %v4015 = vpack.c.b16 %v3819, %v3812
    %v4016 = vpack.c.b16 %v3820, %v3813
    %v4017 = vpack.c.b16 %v3821, %v3814
    %v4018 = vpack.c.b16 %v3822, %v3815
    %v4019 = vpack.c.b16 %v3823, %v3816
    %v4020 = vpack.c.b16 %v3831, %v3824
    %v4021 = vpack.c.b16 %v3832, %v3825
    %v4022 = vpack.c.b16 %v3833, %v3826
    %v4023 = vpack.c.b16 %v3834, %v3827
    %v4024 = vpack.c.b16 %v3835, %v3828
    %v4025 = vpack.c.b16 %v3836, %v3829
    %v4026 = vpack.c.b16 %v3837, %v3830
    %v4027 = vpack.c.b16 %v3845, %v3838
    %v4028 = vpack.c.b16 %v3846, %v3839
    %v4029 = vpack.c.b16 %v3847, %v3840
    %v4030 = vpack.c.b16 %v3848, %v3841
    %v4031 = vpack.c.b16 %v3849, %v3842
    %v4032 = vpack.c.b16 %v3850, %v3843
    %v4033 = vpack.c.b16 %v3851, %v3844
    %v4034 = vpack.c.b16 %v3859, %v3852
    %v4035 = vpack.c.b16 %v3860, %v3853
    %v4036 = vpack.c.b16 %v3861, %v3854
    %v4037 = vpack.c.b16 %v3862, %v3855
    %v4038 = vpack.c.b16 %v3863, %v3856
    %v4039 = vpack.c.b16 %v3864, %v3857
    %v4040 = vpack.c.b16 %v3865, %v3858
    %v4041 = vpack.c.b16 %v3873, %v3866
    %v4042 = vpack.c.b16 %v3874, %v3867
    %v4043 = vpack.c.b16 %v3875, %v3868
    %v4044 = vpack.c.b16 %v3876, %v3869
    %v4045 = vpack.c.b16 %v3877, %v3870
    %v4046 = vpack.c.b16 %v3878, %v3871
    %v4047 = vpack.c.b16 %v3879, %v3872
    %v4048 = vpack.c.b16 %v3887, %v3880
    %v4049 = vpack.c.b16 %v3888, %v3881
    %v4050 = vpack.c.b16 %v3889, %v3882
    %v4051 = vpack.c.b16 %v3890, %v3883
    %v4052 = vpack.c.b16 %v3891, %v3884
    %v4053 = vpack.c.b16 %v3892, %v3885
    %v4054 = vpack.c.b16 %v3893, %v3886
    %v4055 = vpack.c.b16 %v3901, %v3894
    %v4056 = vpack.c.b16 %v3902, %v3895
    %v4057 = vpack.c.b16 %v3903, %v3896
    %v4058 = vpack.c.b16 %v3904, %v3897
    %v4059 = vpack.c.b16 %v3905, %v3898
    %v4060 = vpack.c.b16 %v3906, %v3899
    %v4061 = vpack.c.b16 %v3907, %v3900
    %v4062 = vpack.c.b16 %v3915, %v3908
    %v4063 = vpack.c.b16 %v3916, %v3909
    %v4064 = vpack.c.b16 %v3917, %v3910
    %v4065 = vpack.c.b16 %v3918, %v3911
    %v4066 = vpack.c.b16 %v3919, %v3912
    %v4067 = vpack.c.b16 %v3920, %v3913
    %v4068 = vpack.c.b16 %v3921, %v3914
    %v4069 = vpack.c.b16 %v3929, %v3922
    %v4070 = vpack.c.b16 %v3930, %v3923
    %v4071 = vpack.c.b16 %v3931, %v3924
    %v4072 = vpack.c.b16 %v3932, %v3925
    %v4073 = vpack.c.b16 %v3933, %v3926
    %v4074 = vpack.c.b16 %v3934, %v3927
    %v4075 = vpack.c.b16 %v3935, %v3928
    %v4076 = vpack.c.b16 %v3943, %v3936
    %v4077 = vpack.c.b16 %v3944, %v3937
    %v4078 = vpack.c.b16 %v3945, %v3938
    %v4079 = vpack.c.b16 %v3946, %v3939
    %v4080 = vpack.c.b16 %v3947, %v3940
    %v4081 = vpack.c.b16 %v3948, %v3941
    %v4082 = vpack.c.b16 %v3949, %v3942
    %v4083 = vpack.c.b16 %v3957, %v3950
    %v4084 = vpack.c.b16 %v3958, %v3951
    %v4085 = vpack.c.b16 %v3959, %v3952
    %v4086 = vpack.c.b16 %v3960, %v3953
    %v4087 = vpack.c.b16 %v3961, %v3954
    %v4088 = vpack.c.b16 %v3962, %v3955
    %v4089 = vpack.c.b16 %v3963, %v3956
    %v4090 = vpack.c.b16 %v3971, %v3964
    %v4091 = vpack.c.b16 %v3972, %v3965
    %v4092 = vpack.c.b16 %v3973, %v3966
    %v4093 = vpack.c.b16 %v3974, %v3967
    %v4094 = vpack.c.b16 %v3975, %v3968
    %v4095 = vpack.c.b16 %v3976, %v3969
    %v4096 = vpack.c.b16 %v3977, %v3970
    %v4097 = vpack.c.b16 %v3985, %v3978
    %v4098 = vpack.c.b16 %v3986, %v3979
    %v4099 = vpack.c.b16 %v3987, %v3980
    %v4100 = vpack.c.b16 %v3988, %v3981
    %v4101 = vpack.c.b16 %v3989, %v3982
    %v4102 = vpack.c.b16 %v3990, %v3983
    %v4103 = vpack.c.b16 %v3991, %v3984
    %4216 = vmatprep.subr.bf16.mxu0 %v3993
    %4217 = vmatpush1.bf16.msra.mxu0 %v3992
    %4218 = vmatprep.subr.bf16.mxu0 %v4000
    %4219 = vmatpush1.bf16.msra.mxu0 %v3999
    %4220 = vmatprep.subr.bf16.mxu0 %v4007
    %4221 = vmatpush1.bf16.msra.mxu0 %v4006
    %4222 = vmatprep.subr.bf16.mxu0 %v4014
    %4223 = vmatpush1.bf16.msra.mxu0 %v4013
    %4224 = vmatprep.subr.bf16.mxu0 %v4021
    %4225 = vmatpush1.bf16.msra.mxu0 %v4020
    %4226 = vmatprep.subr.bf16.mxu0 %v4028
    %4227 = vmatpush1.bf16.msra.mxu0 %v4027
    %4228 = vmatprep.subr.bf16.mxu0 %v4035
    %4229 = vmatpush1.bf16.msra.mxu0 %v4034
    %4230 = vmatprep.subr.bf16.mxu0 %v4042
    %4231 = vmatpush1.bf16.msra.mxu0 %v4041
    %4232 = vmatprep.subr.bf16.mxu0 %v4049
    %4233 = vmatpush1.bf16.msra.mxu0 %v4048
    %4234 = vmatprep.subr.bf16.mxu0 %v4056
    %4235 = vmatpush1.bf16.msra.mxu0 %v4055
    %4236 = vmatprep.subr.bf16.mxu0 %v4063
    %4237 = vmatpush1.bf16.msra.mxu0 %v4062
    %4238 = vmatprep.subr.bf16.mxu0 %v4070
    %4239 = vmatpush1.bf16.msra.mxu0 %v4069
    %4240 = vmatprep.subr.bf16.mxu0 %v4077
    %4241 = vmatpush1.bf16.msra.mxu0 %v4076
    %4242 = vmatprep.subr.bf16.mxu0 %v4084
    %4243 = vmatpush1.bf16.msra.mxu0 %v4083
    %4244 = vmatprep.subr.bf16.mxu0 %v4091
    %4245 = vmatpush1.bf16.msra.mxu0 %v4090
    %4246 = vmatprep.subr.bf16.mxu0 %v4098
    %4247 = vmatpush1.bf16.msra.mxu0 %v4097
    %4248 = vmatprep.mubr.bf16.mxu0 %v3474
    %4249 = vmatmul.mubr.bf16.gmra.mrb[0].mxu0 %v3472
    %v4250 = vpop.f32.mrb[0].mxu0
    %v4251 = vadd.f32 %v3608, %v4250
    %v4252 = vpop.f32.mrb[0].mxu0
    %v4253 = vadd.f32 %v3612, %v4252
    %v4254 = vpop.f32.mrb[0].mxu0
    %v4255 = vpop.f32.mrb[0].mxu0
    %4256 = vdwg.mxu0
    %4257 = vmatprep.subr.bf16.mxu0 %v3995
    %4258 = vmatpush1.bf16.msra.mxu0 %v3994
    %4259 = vmatprep.subr.bf16.mxu0 %v4002
    %4260 = vmatpush1.bf16.msra.mxu0 %v4001
    %4261 = vmatprep.subr.bf16.mxu0 %v4009
    %4262 = vmatpush1.bf16.msra.mxu0 %v4008
    %4263 = vmatprep.subr.bf16.mxu0 %v4016
    %4264 = vmatpush1.bf16.msra.mxu0 %v4015
    %4265 = vmatprep.subr.bf16.mxu0 %v4023
    %4266 = vmatpush1.bf16.msra.mxu0 %v4022
    %4267 = vmatprep.subr.bf16.mxu0 %v4030
    %4268 = vmatpush1.bf16.msra.mxu0 %v4029
    %4269 = vmatprep.subr.bf16.mxu0 %v4037
    %4270 = vmatpush1.bf16.msra.mxu0 %v4036
    %4271 = vmatprep.subr.bf16.mxu0 %v4044
    %4272 = vmatpush1.bf16.msra.mxu0 %v4043
    %4273 = vmatprep.subr.bf16.mxu0 %v4051
    %4274 = vmatpush1.bf16.msra.mxu0 %v4050
    %4275 = vmatprep.subr.bf16.mxu0 %v4058
    %4276 = vmatpush1.bf16.msra.mxu0 %v4057
    %4277 = vmatprep.subr.bf16.mxu0 %v4065
    %4278 = vmatpush1.bf16.msra.mxu0 %v4064
    %4279 = vmatprep.subr.bf16.mxu0 %v4072
    %4280 = vmatpush1.bf16.msra.mxu0 %v4071
    %4281 = vmatprep.subr.bf16.mxu0 %v4079
    %4282 = vmatpush1.bf16.msra.mxu0 %v4078
    %4283 = vmatprep.subr.bf16.mxu0 %v4086
    %4284 = vmatpush1.bf16.msra.mxu0 %v4085
    %4285 = vmatprep.subr.bf16.mxu0 %v4093
    %4286 = vmatpush1.bf16.msra.mxu0 %v4092
    %4287 = vmatprep.subr.bf16.mxu0 %v4100
    %4288 = vmatpush1.bf16.msra.mxu0 %v4099
    %4289 = vmatprep.mubr.bf16.mxu0 %v3474
    %4290 = vmatmul.mubr.bf16.gmra.mrb[0].mxu0 %v3472
    %v4291 = vpop.f32.mrb[0].mxu0
    %v4292 = vadd.f32 %v3616, %v4291
    %v4293 = vpop.f32.mrb[0].mxu0
    %v4294 = vadd.f32 %v3620, %v4293
    %v4295 = vpop.f32.mrb[0].mxu0
    %v4296 = vpop.f32.mrb[0].mxu0
    %4297 = vdwg.mxu0
    %4298 = vmatprep.subr.bf16.mxu0 %v3997
    %4299 = vmatpush1.bf16.msra.mxu0 %v3996
    %4300 = vmatprep.subr.bf16.mxu0 %v4004
    %4301 = vmatpush1.bf16.msra.mxu0 %v4003
    %4302 = vmatprep.subr.bf16.mxu0 %v4011
    %4303 = vmatpush1.bf16.msra.mxu0 %v4010
    %4304 = vmatprep.subr.bf16.mxu0 %v4018
    %4305 = vmatpush1.bf16.msra.mxu0 %v4017
    %4306 = vmatprep.subr.bf16.mxu0 %v4025
    %4307 = vmatpush1.bf16.msra.mxu0 %v4024
    %4308 = vmatprep.subr.bf16.mxu0 %v4032
    %4309 = vmatpush1.bf16.msra.mxu0 %v4031
    %4310 = vmatprep.subr.bf16.mxu0 %v4039
    %4311 = vmatpush1.bf16.msra.mxu0 %v4038
    %4312 = vmatprep.subr.bf16.mxu0 %v4046
    %4313 = vmatpush1.bf16.msra.mxu0 %v4045
    %4314 = vmatprep.subr.bf16.mxu0 %v4053
    %4315 = vmatpush1.bf16.msra.mxu0 %v4052
    %4316 = vmatprep.subr.bf16.mxu0 %v4060
    %4317 = vmatpush1.bf16.msra.mxu0 %v4059
    %4318 = vmatprep.subr.bf16.mxu0 %v4067
    %4319 = vmatpush1.bf16.msra.mxu0 %v4066
    %4320 = vmatprep.subr.bf16.mxu0 %v4074
    %4321 = vmatpush1.bf16.msra.mxu0 %v4073
    %4322 = vmatprep.subr.bf16.mxu0 %v4081
    %4323 = vmatpush1.bf16.msra.mxu0 %v4080
    %4324 = vmatprep.subr.bf16.mxu0 %v4088
    %4325 = vmatpush1.bf16.msra.mxu0 %v4087
    %4326 = vmatprep.subr.bf16.mxu0 %v4095
    %4327 = vmatpush1.bf16.msra.mxu0 %v4094
    %4328 = vmatprep.subr.bf16.mxu0 %v4102
    %4329 = vmatpush1.bf16.msra.mxu0 %v4101
    %4330 = vmatprep.mubr.bf16.mxu0 %v3474
    %4331 = vmatmul.mubr.bf16.gmra.mrb[0].mxu0 %v3472
    %v4332 = vpop.f32.mrb[0].mxu0
    %v4333 = vadd.f32 %v3624, %v4332
    %v4334 = vpop.f32.mrb[0].mxu0
    %v4335 = vadd.f32 %v3628, %v4334
    %v4336 = vpop.f32.mrb[0].mxu0
    %v4337 = vpop.f32.mrb[0].mxu0
    %4338 = vdwg.mxu0
    %4339 = vmatprep.subr.bf16.mxu0 0
    %4340 = vmatpush1.bf16.msra.mxu0 %v3998
    %4341 = vmatprep.subr.bf16.mxu0 0
    %4342 = vmatpush1.bf16.msra.mxu0 %v4005
    %4343 = vmatprep.subr.bf16.mxu0 0
    %4344 = vmatpush1.bf16.msra.mxu0 %v4012
    %4345 = vmatprep.subr.bf16.mxu0 0
    %4346 = vmatpush1.bf16.msra.mxu0 %v4019
    %4347 = vmatprep.subr.bf16.mxu0 0
    %4348 = vmatpush1.bf16.msra.mxu0 %v4026
    %4349 = vmatprep.subr.bf16.mxu0 0
    %4350 = vmatpush1.bf16.msra.mxu0 %v4033
    %4351 = vmatprep.subr.bf16.mxu0 0
    %4352 = vmatpush1.bf16.msra.mxu0 %v4040
    %4353 = vmatprep.subr.bf16.mxu0 0
    %4354 = vmatpush1.bf16.msra.mxu0 %v4047
    %4355 = vmatprep.subr.bf16.mxu0 0
    %4356 = vmatpush1.bf16.msra.mxu0 %v4054
    %4357 = vmatprep.subr.bf16.mxu0 0
    %4358 = vmatpush1.bf16.msra.mxu0 %v4061
    %4359 = vmatprep.subr.bf16.mxu0 0
    %4360 = vmatpush1.bf16.msra.mxu0 %v4068
    %4361 = vmatprep.subr.bf16.mxu0 0
    %4362 = vmatpush1.bf16.msra.mxu0 %v4075
    %4363 = vmatprep.subr.bf16.mxu0 0
    %4364 = vmatpush1.bf16.msra.mxu0 %v4082
    %4365 = vmatprep.subr.bf16.mxu0 0
    %4366 = vmatpush1.bf16.msra.mxu0 %v4089
    %4367 = vmatprep.subr.bf16.mxu0 0
    %4368 = vmatpush1.bf16.msra.mxu0 %v4096
    %4369 = vmatprep.subr.bf16.mxu0 0
    %4370 = vmatpush1.bf16.msra.mxu0 %v4103
    %4371 = vmatprep.mubr.bf16.mxu0 %v3474
    %4372 = vmatmul.mubr.bf16.gmra.mrb[0].mxu0 %v3472
    %v4373 = vpop.f32.mrb[0].mxu0
    %v4374 = vadd.f32 %v3632, %v4373
    %v4375 = vpop.f32.mrb[0].mxu0
    %v4376 = vpop.f32.mrb[0].mxu0
    %v4377 = vpop.f32.mrb[0].mxu0
    %4378 = vdwg.mxu0
    %v4379 = vxor.u32 %v4251, 2147483648
    %v4380 = vxor.u32 %v4253, 2147483648
    %v4381 = vxor.u32 %v4292, 2147483648
    %v4382 = vxor.u32 %v4294, 2147483648
    %v4383 = vxor.u32 %v4333, 2147483648
    %v4384 = vxor.u32 %v4335, 2147483648
    %v4385 = vxor.u32 %v4374, 2147483648
    %v4386 = vmul.f32 %v4379, 1.442695
    %v4387 = vpow.pop %v4386
    %v4388 = vmul.f32 %v4380, 1.442695
    %v4389 = vpow.pop %v4388
    %v4390 = vmul.f32 %v4381, 1.442695
    %v4391 = vpow.pop %v4390
    %v4392 = vmul.f32 %v4382, 1.442695
    %v4393 = vpow.pop %v4392
    %v4394 = vmul.f32 %v4383, 1.442695
    %v4395 = vpow.pop %v4394
    %v4396 = vmul.f32 %v4384, 1.442695
    %v4397 = vpow.pop %v4396
    %v4398 = vmul.f32 %v4385, 1.442695
    %v4399 = vpow.pop %v4398
    %v4400 = vadd.f32 %v4387, 1.0
    %v4401 = vadd.f32 %v4389, 1.0
    %v4402 = vadd.f32 %v4391, 1.0
    %v4403 = vadd.f32 %v4393, 1.0
    %v4404 = vadd.f32 %v4395, 1.0
    %v4405 = vadd.f32 %v4397, 1.0
    %v4406 = vadd.f32 %v4399, 1.0
    %v4407 = vrcp.pop %v4400
    %v4408 = vmul.f32 1.0, %v4407
    %v4409 = vrcp.pop %v4401
    %v4410 = vmul.f32 1.0, %v4409
    %v4411 = vrcp.pop %v4402
    %v4412 = vmul.f32 1.0, %v4411
    %v4413 = vrcp.pop %v4403
    %v4414 = vmul.f32 1.0, %v4413
    %v4415 = vrcp.pop %v4404
    %v4416 = vmul.f32 1.0, %v4415
    %v4417 = vrcp.pop %v4405
    %v4418 = vmul.f32 1.0, %v4417
    %v4419 = vrcp.pop %v4406
    %v4420 = vmul.f32 1.0, %v4419
    %4421 = vst [vmem:[#allocation17] sm:$0xff] %v4408
    %4422 = vst [vmem:[#allocation17 + $0x8] sm:$0xff] %v4410
    %4423 = vst [vmem:[#allocation17 + $0x10] sm:$0xff] %v4412
    %4424 = vst [vmem:[#allocation17 + $0x18] sm:$0xff] %v4414
    %4425 = vst [vmem:[#allocation17 + $0x20] sm:$0xff] %v4416
    %4426 = vst [vmem:[#allocation17 + $0x28] sm:$0xff] %v4418
    %4427 = vst [vmem:[#allocation17 + $0x30] sm:$0xff] %v4420
    // Predicated region
    $region70: #{complex_autoencoder_forward.1} parent=1 // pred_check
      _
    $region71: #{complex_autoencoder_forward.1} parent=1 // pred_check_branch
      %4429 = sbr.rel (0) target = $region73
    $region72: #{complex_autoencoder_forward.1} parent=1 // pred_region
      %s4431 = ssub.s32 896, 896
      %4432 = vsyncadd [#allocation5], %s4431
      %s4434 = sshll.u32 [#allocation17], 4
      %s4435 = int_to_ptr.vmem [resolvable:$true] %s4434
      %4437 = dma.vmem_to_hbm [thread:$0]  %s4435, 896, %s9, [#allocation5]
    $region73: #{complex_autoencoder_forward.1} parent=1 // pred_fallthru
      _
    // Predicated region
    $region74: #{complex_autoencoder_forward.1} parent=1 // pred_check
      _
    $region75: #{complex_autoencoder_forward.1} parent=1 // pred_check_branch
      %4439 = sbr.rel (0) target = $region77
    $region76: #{complex_autoencoder_forward.1} parent=1 // pred_region
      %4440 = dma.done [#allocation5], 896
    $region77: #{complex_autoencoder_forward.1} parent=1 // pred_fallthru
      _
    %4441 = vsyncpa [#allocation4], 1
    %4442 = vsyncpa [#allocation7], 1
    %4443 = vsyncpa [#allocation10], 1
    %4444 = vsyncpa [#allocation13], 1
    %4445 = vsyncpa [#allocation16], 1
    %4446 = vsyncpa [#allocation5], 1

</llo_original>
